<compile_context>
chip_gen: v7x
topology: tpu7x:2x2x1
jax: 0.10.0
libtpu: 0.0.40
codegen_flags: <defaults>
</compile_context>

<pallas_src>
import jax
import jax.numpy as jnp
from jax.experimental import pallas as pl
from jax.experimental.pallas import tpu as pltpu

# ---- config (mirrors RNConv.__init__ arguments) ----
INPUT_SIZE = 4        # f
OUTPUT_SIZE = 2
OUT_CHANNEL = 8       # unused by forward (as in the torch module)
KERNEL = 3
N_LAYERS = 2          # recurrence is hand-interleaved for exactly 2 layers
HIDDEN = 32
SEQ_LEN = 8
SEQ_PRED_LEN = 4
BATCH = 8             # must equal SEQ_LEN (proj_out-over-batch quirk, see NOTE)
DROPOUT = 0.0
TPAD = SEQ_LEN + KERNEL - 1          # left-padded conv input length (10)
KAUG = 48                            # per-slot contraction block: 40 taps + 1 bias + pad
# TODO(synk): nn.Dropout / LSTM inter-layer dropout are training-only; identity here.


# ----------------------------------------------------------------------------
# Single fused kernel: (conv ⊗ Wih0) -> interleaved 2-layer LSTM -> proj_out -> linear2
# ----------------------------------------------------------------------------
def rnconv_fused_kernel(xbig_ref, wfused_ref, wrec_ref, bdproj_ref, w2b_ref,
                        o_ref, xe_ref):
    # xbig_ref  : (64, 384)  block-diag conv input; row r = t*B + b
    # wfused_ref: (384, 128) conv weight folded into layer-0 Wih (gate-scaled, + bias)
    # wrec_ref  : (104, 128) rows [0:32]=Whh1, [32:64]=Wih2, [64:96]=Whh2, [96]=bias2 (scaled)
    # bdproj_ref: (32, 64)   block-diag(wproj) for proj_out-over-batch
    # w2b_ref   : (33, 2)    rows [0:32]=w2^T, [32]=b2
    # o_ref     : (32, 2)    output (T*P, O)
    # xe_ref    : (64, 32)   VMEM scratch for the layer-2 hidden sequence
    T, B, H = SEQ_LEN, BATCH, HIDDEN
    f32 = jnp.float32

    # layer-0 gate pre-activations for every (t, b): one lane-dense MXU matmul.
    # row r = t*B + b, 128 gate lanes in torch order [i f g o]; i/f/o lanes pre-scaled 0.5
    xp0 = jnp.dot(xbig_ref[...], wfused_ref[...],
                  preferred_element_type=f32)                       # (64, 128)

    whh1 = wrec_ref[0 * H:1 * H, :]          # (32, 128) layer-1 hidden weight (scaled)
    wih2 = wrec_ref[1 * H:2 * H, :]          # (32, 128) layer-2 input  weight (scaled)
    whh2 = wrec_ref[2 * H:3 * H, :]          # (32, 128) layer-2 hidden weight (scaled)
    b2l = wrec_ref[3 * H:3 * H + 1, :]       # (1, 128)  layer-2 bias (scaled)

    def cell(gates_scaled, c_prev):
        # gates_scaled = [i/2, f/2, g, o/2]; sigmoid(x) == 0.5 + 0.5*tanh(x/2)
        tg = jnp.tanh(gates_scaled)          # one EUP pass over the full (8,128) vreg
        sg = 0.5 + 0.5 * tg
        i_g = sg[:, 0 * H:1 * H]
        f_g = sg[:, 1 * H:2 * H]
        g_g = tg[:, 2 * H:3 * H]
        o_g = sg[:, 3 * H:4 * H]
        c_new = f_g * c_prev + i_g * g_g
        h_new = o_g * jnp.tanh(c_new)        # second (last) EUP pass of the step
        return h_new, c_new

    zeros = jnp.zeros((B, H), f32)
    h1, c1, h2, c2 = zeros, zeros, zeros, zeros

    for t in range(T):                       # static unroll; layers interleaved in time
        # layer 1, step t
        g1 = xp0[t * B:(t + 1) * B, :] + jnp.dot(h1, whh1,
                                                 preferred_element_type=f32)
        h1, c1 = cell(g1, c1)
        # layer 2, step t (only needs fresh h1 and previous h2 -> pipelines behind layer 1)
        g2 = (jnp.dot(h1, wih2, preferred_element_type=f32)
              + jnp.dot(h2, whh2, preferred_element_type=f32) + b2l)
        h2, c2 = cell(g2, c2)
        xe_ref[t * B:(t + 1) * B, :] = h2    # aligned 8-row store (no concat assembly)

    # head: proj_out over the batch axis (block-diag matmul), then linear2
    tmp = jnp.dot(bdproj_ref[...], xe_ref[...],
                  preferred_element_type=f32)                       # (32, 32)
    o_ref[...] = (jnp.dot(tmp, w2b_ref[0:H, :], preferred_element_type=f32)
                  + w2b_ref[H:H + 1, :])                            # (32, 2)


def rnconv_forward(x, p):
    T, B, F_ = x.shape
    assert B == T, "proj_out is applied over the batch axis; requires batch == seq_len"
    f32 = jnp.float32
    # exact torch .view() / left-pad semantics
    xr = jnp.reshape(x, (B, F_, T))
    x_pad = jnp.pad(xr, ((0, 0), (0, 0), (KERNEL - 1, 0)))          # (B, F, TPAD)
    xpf = jnp.reshape(x_pad, (B, F_ * TPAD))                        # (8, 40)
    xpf_aug = (jnp.zeros((B, KAUG), f32)
               .at[:, :F_ * TPAD].set(xpf)
               .at[:, F_ * TPAD].set(1.0))                          # (8, 48) +bias col
    # block-diagonal LHS so the kernel gets the scrambled layout with ONE matmul:
    # xbig[t*B + b, b*KAUG + j] = xpf_aug[t, j]   (fuses with the pad/reshape above)
    eye = jnp.eye(B, dtype=f32)
    xbig = (xpf_aug[:, None, None, :] * eye[None, :, :, None]).reshape(T * B, B * KAUG)

    vmem = lambda: pl.BlockSpec(memory_space=pltpu.MemorySpace.VMEM)
    out2d = pl.pallas_call(
        rnconv_fused_kernel,
        out_shape=jax.ShapeDtypeStruct((T * SEQ_PRED_LEN, OUTPUT_SIZE), jnp.float32),
        in_specs=[vmem() for _ in range(5)],
        out_specs=vmem(),
        scratch_shapes=[pltpu.VMEM((T * BATCH, HIDDEN), jnp.float32)],
    )(xbig, p['wfused'], p['wrec'], p['bdproj'], p['w2b'])
    return jnp.reshape(out2d, (T, SEQ_PRED_LEN, OUTPUT_SIZE))


# ----------------------------------------------------------------------------
# Parameters (raw torch-layout params + kernel-friendly derived layouts)
# ----------------------------------------------------------------------------
def init_params(key):
    ks = jax.random.split(key, 9)
    f32 = jnp.float32

    def u(k, shape, bound):
        return jax.random.uniform(k, shape, f32, -bound, bound)

    kconv = 1.0 / (INPUT_SIZE * KERNEL) ** 0.5
    conv_w = u(ks[0], (HIDDEN, INPUT_SIZE, KERNEL), kconv)   # torch (C_out, C_in, K)
    conv_b = u(ks[1], (HIDDEN,), kconv)
    klstm = 1.0 / HIDDEN ** 0.5
    wih = u(ks[2], (N_LAYERS, 4 * HIDDEN, HIDDEN), klstm)
    whh = u(ks[3], (N_LAYERS, 4 * HIDDEN, HIDDEN), klstm)
    bih = u(ks[4], (N_LAYERS, 4 * HIDDEN), klstm)
    bhh = u(ks[5], (N_LAYERS, 4 * HIDDEN), klstm)
    w2 = u(ks[6], (OUTPUT_SIZE, HIDDEN), klstm)
    b2 = u(ks[7], (OUTPUT_SIZE,), klstm)
    wproj = u(ks[8], (SEQ_PRED_LEN, SEQ_LEN), 1.0 / SEQ_LEN ** 0.5)

    # --- per-batch-slot im2col conv weight reproducing the .view() scramble:
    #     (xpf[t] @ w3[b] + cb[b])[h] == x_en[t, b, h] ---
    b_i = jnp.arange(BATCH).reshape(BATCH, 1, 1, 1)
    f_i = jnp.arange(INPUT_SIZE).reshape(1, INPUT_SIZE, 1, 1)
    j_i = jnp.arange(TPAD).reshape(1, 1, TPAD, 1)
    h_i = jnp.arange(HIDDEN).reshape(1, 1, 1, HIDDEN)
    m = b_i * HIDDEN + h_i
    c_idx = m // SEQ_LEN                                     # conv out-channel
    tau = m % SEQ_LEN                                        # conv time index
    k_idx = j_i - tau
    valid = (k_idx >= 0) & (k_idx < KERNEL)
    kc = jnp.clip(k_idx, 0, KERNEL - 1)
    w3 = jnp.where(valid, conv_w[c_idx, f_i, kc], 0.0)       # (B, F, TPAD, H)
    w3 = w3.reshape(BATCH, INPUT_SIZE * TPAD, HIDDEN)        # (8, 40, 32)
    cb = conv_b[(jnp.arange(BATCH)[:, None] * HIDDEN
                 + jnp.arange(HIDDEN)[None, :]) // SEQ_LEN]  # (8, 32)

    # gate scale: fold the x/2 of sigmoid(x)=0.5*(1+tanh(x/2)) into i/f/o lanes
    s = jnp.concatenate([jnp.full((HIDDEN,), 0.5), jnp.full((HIDDEN,), 0.5),
                         jnp.ones((HIDDEN,)), jnp.full((HIDDEN,), 0.5)]).astype(f32)

    wih0_s = wih[0].T * s[None, :]                           # (32, 128)
    lb0_s = (bih[0] + bhh[0]) * s                            # (128,)

    # fold conv into layer-0's input projection (per batch-slot KAUG-row block + bias row)
    blocks = []
    for b in range(BATCH):
        blk = jnp.zeros((KAUG, 4 * HIDDEN), f32)
        blk = blk.at[:INPUT_SIZE * TPAD, :].set(w3[b] @ wih0_s)
        blk = blk.at[INPUT_SIZE * TPAD, :].set(cb[b] @ wih0_s + lb0_s)
        blocks.append(blk)
    wfused = jnp.concatenate(blocks, axis=0)                 # (384, 128)

    # recurrence weights (gate-scaled): [Whh1 ; Wih2 ; Whh2 ; bias2 ; zero pad]
    wrec = jnp.zeros((104, 4 * HIDDEN), f32)
    wrec = wrec.at[0 * HIDDEN:1 * HIDDEN, :].set(whh[0].T * s[None, :])
    wrec = wrec.at[1 * HIDDEN:2 * HIDDEN, :].set(wih[1].T * s[None, :])
    wrec = wrec.at[2 * HIDDEN:3 * HIDDEN, :].set(whh[1].T * s[None, :])
    wrec = wrec.at[3 * HIDDEN, :].set((bih[1] + bhh[1]) * s)

    # block-diagonal proj_out weight: bdproj[s*P+p, s*B+b] = wproj[p, b]
    bdproj = jnp.kron(jnp.eye(SEQ_LEN, dtype=f32), wproj)    # (32, 64)
    w2b = (jnp.zeros((HIDDEN + 1, OUTPUT_SIZE), f32)
           .at[:HIDDEN, :].set(w2.T).at[HIDDEN, :].set(b2))  # (33, 2)

    return {
        # kernel-friendly packed layouts
        'wfused': wfused, 'wrec': wrec, 'bdproj': bdproj, 'w2b': w2b,
        # raw copies for the pure-JAX reference
        'raw': dict(conv_w=conv_w, conv_b=conv_b, wih=wih, whh=whh,
                    bih=bih, bhh=bhh, w2=w2, b2=b2, wproj=wproj),
    }


# ----------------------------------------------------------------------------
# Pure-JAX reference (same math, no Pallas) for correctness check
# ----------------------------------------------------------------------------
def reference(x, p):
    raw = p['raw']
    T, B, F_ = x.shape
    xr = jnp.reshape(x, (B, F_, T))
    pad = KERNEL - 1
    x_pad = jnp.pad(xr, ((0, 0), (0, 0), (pad, 0)))
    conv_out = raw['conv_b'][None, :, None] + sum(
        jnp.einsum('cf,bft->bct', raw['conv_w'][:, :, k], x_pad[:, :, k:k + T])
        for k in range(KERNEL))
    seq = jnp.reshape(conv_out, (T, B, HIDDEN))
    for l in range(N_LAYERS):
        wih = raw['wih'][l]
        whh = raw['whh'][l]
        b = raw['bih'][l] + raw['bhh'][l]
        h = jnp.zeros((B, HIDDEN), jnp.float32)
        c = jnp.zeros((B, HIDDEN), jnp.float32)
        outs = []
        for t in range(T):
            gates = seq[t] @ wih.T + h @ whh.T + b
            i_g = jax.nn.sigmoid(gates[:, :HIDDEN])
            f_g = jax.nn.sigmoid(gates[:, HIDDEN:2 * HIDDEN])
            g_g = jnp.tanh(gates[:, 2 * HIDDEN:3 * HIDDEN])
            o_g = jax.nn.sigmoid(gates[:, 3 * HIDDEN:])
            c = f_g * c + i_g * g_g
            h = o_g * jnp.tanh(c)
            outs.append(h)
        seq = jnp.stack(outs, 0)
    tmp = jnp.einsum('pb,sbh->sph', raw['wproj'], seq)
    return jnp.einsum('sph,oh->spo', tmp, raw['w2']) + raw['b2']


if __name__ == "__main__":
    key = jax.random.PRNGKey(0)
    kp, kx = jax.random.split(key)
    params = init_params(kp)
    x = jax.random.normal(kx, (SEQ_LEN, BATCH, INPUT_SIZE), jnp.float32)

    fwd = jax.jit(rnconv_forward)
    out = jax.block_until_ready(fwd(x, params))
    ref = jax.block_until_ready(reference(x, params))

    assert out.shape == (SEQ_LEN, SEQ_PRED_LEN, OUTPUT_SIZE), out.shape
    max_err = float(jnp.max(jnp.abs(out - ref)))
    assert jnp.allclose(out, ref, atol=2e-3, rtol=2e-3), max_err
    print("KERNEL_OK")
</pallas_src>

<mosaic_0001>
module attributes {stable_mosaic.version = 11 : i64} {
  func.func @rnconv_fused_kernel(%arg0: memref<64x384xf32, #tpu.memory_space<vmem>>, %arg1: memref<384x128xf32, #tpu.memory_space<vmem>>, %arg2: memref<104x128xf32, #tpu.memory_space<vmem>>, %arg3: memref<32x64xf32, #tpu.memory_space<vmem>>, %arg4: memref<33x2xf32, #tpu.memory_space<vmem>>, %arg5: memref<32x2xf32, #tpu.memory_space<vmem>>, %arg6: memref<64x32xf32, #tpu.memory_space<vmem>>) attributes {dimension_semantics = [], scalar_prefetch = 0 : i64, scratch_operands = 1 : i64, tpu.core_type = #tpu.core_type<tc>} {
    %c0 = arith.constant 0 : index
    %c0_0 = arith.constant 0 : index
    %0 = vector.load %arg0[%c0, %c0_0] : memref<64x384xf32, #tpu.memory_space<vmem>>, vector<64x384xf32>
    %c0_1 = arith.constant 0 : index
    %c0_2 = arith.constant 0 : index
    %1 = vector.load %arg1[%c0_1, %c0_2] : memref<384x128xf32, #tpu.memory_space<vmem>>, vector<384x128xf32>
    %cst = arith.constant dense<0.000000e+00> : vector<64x128xf32>
    %2 = tpu.matmul %0, %1, %cst {dimension_numbers = #tpu.dot_dimension_numbers<[1], [0], [0], [1], [0, 0, 1, 1], [], []>} : vector<64x384xf32>, vector<384x128xf32>, vector<64x128xf32> -> vector<64x128xf32>
    %c0_3 = arith.constant 0 : index
    %c0_4 = arith.constant 0 : index
    %3 = vector.load %arg2[%c0_3, %c0_4] : memref<104x128xf32, #tpu.memory_space<vmem>>, vector<32x128xf32>
    %c32 = arith.constant 32 : index
    %c0_5 = arith.constant 0 : index
    %4 = vector.load %arg2[%c32, %c0_5] : memref<104x128xf32, #tpu.memory_space<vmem>>, vector<32x128xf32>
    %c64 = arith.constant 64 : index
    %c0_6 = arith.constant 0 : index
    %5 = vector.load %arg2[%c64, %c0_6] : memref<104x128xf32, #tpu.memory_space<vmem>>, vector<32x128xf32>
    %c96 = arith.constant 96 : index
    %c0_7 = arith.constant 0 : index
    %6 = vector.load %arg2[%c96, %c0_7] : memref<104x128xf32, #tpu.memory_space<vmem>>, vector<1x128xf32>
    %cst_8 = arith.constant 0.000000e+00 : f32
    %7 = vector.broadcast %cst_8 : f32 to vector<8x32xf32>
    %8 = vector.extract_strided_slice %2 {offsets = [0, 0], sizes = [8, 128], strides = [1, 1]} : vector<64x128xf32> to vector<8x128xf32>
    %cst_9 = arith.constant dense<0.000000e+00> : vector<8x128xf32>
    %9 = tpu.matmul %7, %3, %cst_9 {dimension_numbers = #tpu.dot_dimension_numbers<[1], [0], [0], [1], [0, 0, 1, 1], [], []>} : vector<8x32xf32>, vector<32x128xf32>, vector<8x128xf32> -> vector<8x128xf32>
    %10 = arith.addf %8, %9 : vector<8x128xf32>
    %11 = math.tanh %10 : vector<8x128xf32>
    %cst_10 = arith.constant 5.000000e-01 : f32
    %12 = vector.broadcast %cst_10 : f32 to vector<8x128xf32>
    %13 = arith.mulf %12, %11 : vector<8x128xf32>
    %cst_11 = arith.constant 5.000000e-01 : f32
    %14 = vector.broadcast %cst_11 : f32 to vector<8x128xf32>
    %15 = arith.addf %14, %13 : vector<8x128xf32>
    %16 = vector.extract_strided_slice %15 {offsets = [0, 0], sizes = [8, 32], strides = [1, 1]} : vector<8x128xf32> to vector<8x32xf32>
    %17 = vector.extract_strided_slice %15 {offsets = [0, 32], sizes = [8, 32], strides = [1, 1]} : vector<8x128xf32> to vector<8x32xf32>
    %18 = vector.extract_strided_slice %11 {offsets = [0, 64], sizes = [8, 32], strides = [1, 1]} : vector<8x128xf32> to vector<8x32xf32>
    %19 = vector.extract_strided_slice %15 {offsets = [0, 96], sizes = [8, 32], strides = [1, 1]} : vector<8x128xf32> to vector<8x32xf32>
    %20 = arith.mulf %17, %7 : vector<8x32xf32>
    %21 = arith.mulf %16, %18 : vector<8x32xf32>
    %22 = arith.addf %20, %21 : vector<8x32xf32>
    %23 = math.tanh %22 : vector<8x32xf32>
    %24 = arith.mulf %19, %23 : vector<8x32xf32>
    %cst_12 = arith.constant dense<0.000000e+00> : vector<8x128xf32>
    %25 = tpu.matmul %24, %4, %cst_12 {dimension_numbers = #tpu.dot_dimension_numbers<[1], [0], [0], [1], [0, 0, 1, 1], [], []>} : vector<8x32xf32>, vector<32x128xf32>, vector<8x128xf32> -> vector<8x128xf32>
    %cst_13 = arith.constant dense<0.000000e+00> : vector<8x128xf32>
    %26 = tpu.matmul %7, %5, %cst_13 {dimension_numbers = #tpu.dot_dimension_numbers<[1], [0], [0], [1], [0, 0, 1, 1], [], []>} : vector<8x32xf32>, vector<32x128xf32>, vector<8x128xf32> -> vector<8x128xf32>
    %27 = arith.addf %25, %26 : vector<8x128xf32>
    %28 = vector.broadcast %6 : vector<1x128xf32> to vector<8x128xf32>
    %29 = arith.addf %27, %28 : vector<8x128xf32>
    %30 = math.tanh %29 : vector<8x128xf32>
    %cst_14 = arith.constant 5.000000e-01 : f32
    %31 = vector.broadcast %cst_14 : f32 to vector<8x128xf32>
    %32 = arith.mulf %31, %30 : vector<8x128xf32>
    %cst_15 = arith.constant 5.000000e-01 : f32
    %33 = vector.broadcast %cst_15 : f32 to vector<8x128xf32>
    %34 = arith.addf %33, %32 : vector<8x128xf32>
    %35 = vector.extract_strided_slice %34 {offsets = [0, 0], sizes = [8, 32], strides = [1, 1]} : vector<8x128xf32> to vector<8x32xf32>
    %36 = vector.extract_strided_slice %34 {offsets = [0, 32], sizes = [8, 32], strides = [1, 1]} : vector<8x128xf32> to vector<8x32xf32>
    %37 = vector.extract_strided_slice %30 {offsets = [0, 64], sizes = [8, 32], strides = [1, 1]} : vector<8x128xf32> to vector<8x32xf32>
    %38 = vector.extract_strided_slice %34 {offsets = [0, 96], sizes = [8, 32], strides = [1, 1]} : vector<8x128xf32> to vector<8x32xf32>
    %39 = arith.mulf %36, %7 : vector<8x32xf32>
    %40 = arith.mulf %35, %37 : vector<8x32xf32>
    %41 = arith.addf %39, %40 : vector<8x32xf32>
    %42 = math.tanh %41 : vector<8x32xf32>
    %43 = arith.mulf %38, %42 : vector<8x32xf32>
    %c0_16 = arith.constant 0 : index
    %c0_17 = arith.constant 0 : index
    %44 = vector.load %arg6[%c0_16, %c0_17] : memref<64x32xf32, #tpu.memory_space<vmem>>, vector<8x32xf32>
    tpu.vector_store %arg6[%c0_16, %c0_17], %43 {strides = array<i32>} : memref<64x32xf32, #tpu.memory_space<vmem>>, vector<8x32xf32>,
    %45 = vector.extract_strided_slice %2 {offsets = [8, 0], sizes = [8, 128], strides = [1, 1]} : vector<64x128xf32> to vector<8x128xf32>
    %cst_18 = arith.constant dense<0.000000e+00> : vector<8x128xf32>
    %46 = tpu.matmul %24, %3, %cst_18 {dimension_numbers = #tpu.dot_dimension_numbers<[1], [0], [0], [1], [0, 0, 1, 1], [], []>} : vector<8x32xf32>, vector<32x128xf32>, vector<8x128xf32> -> vector<8x128xf32>
    %47 = arith.addf %45, %46 : vector<8x128xf32>
    %48 = math.tanh %47 : vector<8x128xf32>
    %cst_19 = arith.constant 5.000000e-01 : f32
    %49 = vector.broadcast %cst_19 : f32 to vector<8x128xf32>
    %50 = arith.mulf %49, %48 : vector<8x128xf32>
    %cst_20 = arith.constant 5.000000e-01 : f32
    %51 = vector.broadcast %cst_20 : f32 to vector<8x128xf32>
    %52 = arith.addf %51, %50 : vector<8x128xf32>
    %53 = vector.extract_strided_slice %52 {offsets = [0, 0], sizes = [8, 32], strides = [1, 1]} : vector<8x128xf32> to vector<8x32xf32>
    %54 = vector.extract_strided_slice %52 {offsets = [0, 32], sizes = [8, 32], strides = [1, 1]} : vector<8x128xf32> to vector<8x32xf32>
    %55 = vector.extract_strided_slice %48 {offsets = [0, 64], sizes = [8, 32], strides = [1, 1]} : vector<8x128xf32> to vector<8x32xf32>
    %56 = vector.extract_strided_slice %52 {offsets = [0, 96], sizes = [8, 32], strides = [1, 1]} : vector<8x128xf32> to vector<8x32xf32>
    %57 = arith.mulf %54, %22 : vector<8x32xf32>
    %58 = arith.mulf %53, %55 : vector<8x32xf32>
    %59 = arith.addf %57, %58 : vector<8x32xf32>
    %60 = math.tanh %59 : vector<8x32xf32>
    %61 = arith.mulf %56, %60 : vector<8x32xf32>
    %cst_21 = arith.constant dense<0.000000e+00> : vector<8x128xf32>
    %62 = tpu.matmul %61, %4, %cst_21 {dimension_numbers = #tpu.dot_dimension_numbers<[1], [0], [0], [1], [0, 0, 1, 1], [], []>} : vector<8x32xf32>, vector<32x128xf32>, vector<8x128xf32> -> vector<8x128xf32>
    %cst_22 = arith.constant dense<0.000000e+00> : vector<8x128xf32>
    %63 = tpu.matmul %43, %5, %cst_22 {dimension_numbers = #tpu.dot_dimension_numbers<[1], [0], [0], [1], [0, 0, 1, 1], [], []>} : vector<8x32xf32>, vector<32x128xf32>, vector<8x128xf32> -> vector<8x128xf32>
    %64 = arith.addf %62, %63 : vector<8x128xf32>
    %65 = vector.broadcast %6 : vector<1x128xf32> to vector<8x128xf32>
    %66 = arith.addf %64, %65 : vector<8x128xf32>
    %67 = math.tanh %66 : vector<8x128xf32>
    %cst_23 = arith.constant 5.000000e-01 : f32
    %68 = vector.broadcast %cst_23 : f32 to vector<8x128xf32>
    %69 = arith.mulf %68, %67 : vector<8x128xf32>
    %cst_24 = arith.constant 5.000000e-01 : f32
    %70 = vector.broadcast %cst_24 : f32 to vector<8x128xf32>
    %71 = arith.addf %70, %69 : vector<8x128xf32>
    %72 = vector.extract_strided_slice %71 {offsets = [0, 0], sizes = [8, 32], strides = [1, 1]} : vector<8x128xf32> to vector<8x32xf32>
    %73 = vector.extract_strided_slice %71 {offsets = [0, 32], sizes = [8, 32], strides = [1, 1]} : vector<8x128xf32> to vector<8x32xf32>
    %74 = vector.extract_strided_slice %67 {offsets = [0, 64], sizes = [8, 32], strides = [1, 1]} : vector<8x128xf32> to vector<8x32xf32>
    %75 = vector.extract_strided_slice %71 {offsets = [0, 96], sizes = [8, 32], strides = [1, 1]} : vector<8x128xf32> to vector<8x32xf32>
    %76 = arith.mulf %73, %41 : vector<8x32xf32>
    %77 = arith.mulf %72, %74 : vector<8x32xf32>
    %78 = arith.addf %76, %77 : vector<8x32xf32>
    %79 = math.tanh %78 : vector<8x32xf32>
    %80 = arith.mulf %75, %79 : vector<8x32xf32>
    %c8 = arith.constant 8 : index
    %c0_25 = arith.constant 0 : index
    %81 = vector.load %arg6[%c8, %c0_25] : memref<64x32xf32, #tpu.memory_space<vmem>>, vector<8x32xf32>
    tpu.vector_store %arg6[%c8, %c0_25], %80 {strides = array<i32>} : memref<64x32xf32, #tpu.memory_space<vmem>>, vector<8x32xf32>,
    %82 = vector.extract_strided_slice %2 {offsets = [16, 0], sizes = [8, 128], strides = [1, 1]} : vector<64x128xf32> to vector<8x128xf32>
    %cst_26 = arith.constant dense<0.000000e+00> : vector<8x128xf32>
    %83 = tpu.matmul %61, %3, %cst_26 {dimension_numbers = #tpu.dot_dimension_numbers<[1], [0], [0], [1], [0, 0, 1, 1], [], []>} : vector<8x32xf32>, vector<32x128xf32>, vector<8x128xf32> -> vector<8x128xf32>
    %84 = arith.addf %82, %83 : vector<8x128xf32>
    %85 = math.tanh %84 : vector<8x128xf32>
    %cst_27 = arith.constant 5.000000e-01 : f32
    %86 = vector.broadcast %cst_27 : f32 to vector<8x128xf32>
    %87 = arith.mulf %86, %85 : vector<8x128xf32>
    %cst_28 = arith.constant 5.000000e-01 : f32
    %88 = vector.broadcast %cst_28 : f32 to vector<8x128xf32>
    %89 = arith.addf %88, %87 : vector<8x128xf32>
    %90 = vector.extract_strided_slice %89 {offsets = [0, 0], sizes = [8, 32], strides = [1, 1]} : vector<8x128xf32> to vector<8x32xf32>
    %91 = vector.extract_strided_slice %89 {offsets = [0, 32], sizes = [8, 32], strides = [1, 1]} : vector<8x128xf32> to vector<8x32xf32>
    %92 = vector.extract_strided_slice %85 {offsets = [0, 64], sizes = [8, 32], strides = [1, 1]} : vector<8x128xf32> to vector<8x32xf32>
    %93 = vector.extract_strided_slice %89 {offsets = [0, 96], sizes = [8, 32], strides = [1, 1]} : vector<8x128xf32> to vector<8x32xf32>
    %94 = arith.mulf %91, %59 : vector<8x32xf32>
    %95 = arith.mulf %90, %92 : vector<8x32xf32>
    %96 = arith.addf %94, %95 : vector<8x32xf32>
    %97 = math.tanh %96 : vector<8x32xf32>
    %98 = arith.mulf %93, %97 : vector<8x32xf32>
    %cst_29 = arith.constant dense<0.000000e+00> : vector<8x128xf32>
    %99 = tpu.matmul %98, %4, %cst_29 {dimension_numbers = #tpu.dot_dimension_numbers<[1], [0], [0], [1], [0, 0, 1, 1], [], []>} : vector<8x32xf32>, vector<32x128xf32>, vector<8x128xf32> -> vector<8x128xf32>
    %cst_30 = arith.constant dense<0.000000e+00> : vector<8x128xf32>
    %100 = tpu.matmul %80, %5, %cst_30 {dimension_numbers = #tpu.dot_dimension_numbers<[1], [0], [0], [1], [0, 0, 1, 1], [], []>} : vector<8x32xf32>, vector<32x128xf32>, vector<8x128xf32> -> vector<8x128xf32>
    %101 = arith.addf %99, %100 : vector<8x128xf32>
    %102 = vector.broadcast %6 : vector<1x128xf32> to vector<8x128xf32>
    %103 = arith.addf %101, %102 : vector<8x128xf32>
    %104 = math.tanh %103 : vector<8x128xf32>
    %cst_31 = arith.constant 5.000000e-01 : f32
    %105 = vector.broadcast %cst_31 : f32 to vector<8x128xf32>
    %106 = arith.mulf %105, %104 : vector<8x128xf32>
    %cst_32 = arith.constant 5.000000e-01 : f32
    %107 = vector.broadcast %cst_32 : f32 to vector<8x128xf32>
    %108 = arith.addf %107, %106 : vector<8x128xf32>
    %109 = vector.extract_strided_slice %108 {offsets = [0, 0], sizes = [8, 32], strides = [1, 1]} : vector<8x128xf32> to vector<8x32xf32>
    %110 = vector.extract_strided_slice %108 {offsets = [0, 32], sizes = [8, 32], strides = [1, 1]} : vector<8x128xf32> to vector<8x32xf32>
    %111 = vector.extract_strided_slice %104 {offsets = [0, 64], sizes = [8, 32], strides = [1, 1]} : vector<8x128xf32> to vector<8x32xf32>
    %112 = vector.extract_strided_slice %108 {offsets = [0, 96], sizes = [8, 32], strides = [1, 1]} : vector<8x128xf32> to vector<8x32xf32>
    %113 = arith.mulf %110, %78 : vector<8x32xf32>
    %114 = arith.mulf %109, %111 : vector<8x32xf32>
    %115 = arith.addf %113, %114 : vector<8x32xf32>
    %116 = math.tanh %115 : vector<8x32xf32>
    %117 = arith.mulf %112, %116 : vector<8x32xf32>
    %c16 = arith.constant 16 : index
    %c0_33 = arith.constant 0 : index
    %118 = vector.load %arg6[%c16, %c0_33] : memref<64x32xf32, #tpu.memory_space<vmem>>, vector<8x32xf32>
    tpu.vector_store %arg6[%c16, %c0_33], %117 {strides = array<i32>} : memref<64x32xf32, #tpu.memory_space<vmem>>, vector<8x32xf32>,
    %119 = vector.extract_strided_slice %2 {offsets = [24, 0], sizes = [8, 128], strides = [1, 1]} : vector<64x128xf32> to vector<8x128xf32>
    %cst_34 = arith.constant dense<0.000000e+00> : vector<8x128xf32>
    %120 = tpu.matmul %98, %3, %cst_34 {dimension_numbers = #tpu.dot_dimension_numbers<[1], [0], [0], [1], [0, 0, 1, 1], [], []>} : vector<8x32xf32>, vector<32x128xf32>, vector<8x128xf32> -> vector<8x128xf32>
    %121 = arith.addf %119, %120 : vector<8x128xf32>
    %122 = math.tanh %121 : vector<8x128xf32>
    %cst_35 = arith.constant 5.000000e-01 : f32
    %123 = vector.broadcast %cst_35 : f32 to vector<8x128xf32>
    %124 = arith.mulf %123, %122 : vector<8x128xf32>
    %cst_36 = arith.constant 5.000000e-01 : f32
    %125 = vector.broadcast %cst_36 : f32 to vector<8x128xf32>
    %126 = arith.addf %125, %124 : vector<8x128xf32>
    %127 = vector.extract_strided_slice %126 {offsets = [0, 0], sizes = [8, 32], strides = [1, 1]} : vector<8x128xf32> to vector<8x32xf32>
    %128 = vector.extract_strided_slice %126 {offsets = [0, 32], sizes = [8, 32], strides = [1, 1]} : vector<8x128xf32> to vector<8x32xf32>
    %129 = vector.extract_strided_slice %122 {offsets = [0, 64], sizes = [8, 32], strides = [1, 1]} : vector<8x128xf32> to vector<8x32xf32>
    %130 = vector.extract_strided_slice %126 {offsets = [0, 96], sizes = [8, 32], strides = [1, 1]} : vector<8x128xf32> to vector<8x32xf32>
    %131 = arith.mulf %128, %96 : vector<8x32xf32>
    %132 = arith.mulf %127, %129 : vector<8x32xf32>
    %133 = arith.addf %131, %132 : vector<8x32xf32>
    %134 = math.tanh %133 : vector<8x32xf32>
    %135 = arith.mulf %130, %134 : vector<8x32xf32>
    %cst_37 = arith.constant dense<0.000000e+00> : vector<8x128xf32>
    %136 = tpu.matmul %135, %4, %cst_37 {dimension_numbers = #tpu.dot_dimension_numbers<[1], [0], [0], [1], [0, 0, 1, 1], [], []>} : vector<8x32xf32>, vector<32x128xf32>, vector<8x128xf32> -> vector<8x128xf32>
    %cst_38 = arith.constant dense<0.000000e+00> : vector<8x128xf32>
    %137 = tpu.matmul %117, %5, %cst_38 {dimension_numbers = #tpu.dot_dimension_numbers<[1], [0], [0], [1], [0, 0, 1, 1], [], []>} : vector<8x32xf32>, vector<32x128xf32>, vector<8x128xf32> -> vector<8x128xf32>
    %138 = arith.addf %136, %137 : vector<8x128xf32>
    %139 = vector.broadcast %6 : vector<1x128xf32> to vector<8x128xf32>
    %140 = arith.addf %138, %139 : vector<8x128xf32>
    %141 = math.tanh %140 : vector<8x128xf32>
    %cst_39 = arith.constant 5.000000e-01 : f32
    %142 = vector.broadcast %cst_39 : f32 to vector<8x128xf32>
    %143 = arith.mulf %142, %141 : vector<8x128xf32>
    %cst_40 = arith.constant 5.000000e-01 : f32
    %144 = vector.broadcast %cst_40 : f32 to vector<8x128xf32>
    %145 = arith.addf %144, %143 : vector<8x128xf32>
    %146 = vector.extract_strided_slice %145 {offsets = [0, 0], sizes = [8, 32], strides = [1, 1]} : vector<8x128xf32> to vector<8x32xf32>
    %147 = vector.extract_strided_slice %145 {offsets = [0, 32], sizes = [8, 32], strides = [1, 1]} : vector<8x128xf32> to vector<8x32xf32>
    %148 = vector.extract_strided_slice %141 {offsets = [0, 64], sizes = [8, 32], strides = [1, 1]} : vector<8x128xf32> to vector<8x32xf32>
    %149 = vector.extract_strided_slice %145 {offsets = [0, 96], sizes = [8, 32], strides = [1, 1]} : vector<8x128xf32> to vector<8x32xf32>
    %150 = arith.mulf %147, %115 : vector<8x32xf32>
    %151 = arith.mulf %146, %148 : vector<8x32xf32>
    %152 = arith.addf %150, %151 : vector<8x32xf32>
    %153 = math.tanh %152 : vector<8x32xf32>
    %154 = arith.mulf %149, %153 : vector<8x32xf32>
    %c24 = arith.constant 24 : index
    %c0_41 = arith.constant 0 : index
    %155 = vector.load %arg6[%c24, %c0_41] : memref<64x32xf32, #tpu.memory_space<vmem>>, vector<8x32xf32>
    tpu.vector_store %arg6[%c24, %c0_41], %154 {strides = array<i32>} : memref<64x32xf32, #tpu.memory_space<vmem>>, vector<8x32xf32>,
    %156 = vector.extract_strided_slice %2 {offsets = [32, 0], sizes = [8, 128], strides = [1, 1]} : vector<64x128xf32> to vector<8x128xf32>
    %cst_42 = arith.constant dense<0.000000e+00> : vector<8x128xf32>
    %157 = tpu.matmul %135, %3, %cst_42 {dimension_numbers = #tpu.dot_dimension_numbers<[1], [0], [0], [1], [0, 0, 1, 1], [], []>} : vector<8x32xf32>, vector<32x128xf32>, vector<8x128xf32> -> vector<8x128xf32>
    %158 = arith.addf %156, %157 : vector<8x128xf32>
    %159 = math.tanh %158 : vector<8x128xf32>
    %cst_43 = arith.constant 5.000000e-01 : f32
    %160 = vector.broadcast %cst_43 : f32 to vector<8x128xf32>
    %161 = arith.mulf %160, %159 : vector<8x128xf32>
    %cst_44 = arith.constant 5.000000e-01 : f32
    %162 = vector.broadcast %cst_44 : f32 to vector<8x128xf32>
    %163 = arith.addf %162, %161 : vector<8x128xf32>
    %164 = vector.extract_strided_slice %163 {offsets = [0, 0], sizes = [8, 32], strides = [1, 1]} : vector<8x128xf32> to vector<8x32xf32>
    %165 = vector.extract_strided_slice %163 {offsets = [0, 32], sizes = [8, 32], strides = [1, 1]} : vector<8x128xf32> to vector<8x32xf32>
    %166 = vector.extract_strided_slice %159 {offsets = [0, 64], sizes = [8, 32], strides = [1, 1]} : vector<8x128xf32> to vector<8x32xf32>
    %167 = vector.extract_strided_slice %163 {offsets = [0, 96], sizes = [8, 32], strides = [1, 1]} : vector<8x128xf32> to vector<8x32xf32>
    %168 = arith.mulf %165, %133 : vector<8x32xf32>
    %169 = arith.mulf %164, %166 : vector<8x32xf32>
    %170 = arith.addf %168, %169 : vector<8x32xf32>
    %171 = math.tanh %170 : vector<8x32xf32>
    %172 = arith.mulf %167, %171 : vector<8x32xf32>
    %cst_45 = arith.constant dense<0.000000e+00> : vector<8x128xf32>
    %173 = tpu.matmul %172, %4, %cst_45 {dimension_numbers = #tpu.dot_dimension_numbers<[1], [0], [0], [1], [0, 0, 1, 1], [], []>} : vector<8x32xf32>, vector<32x128xf32>, vector<8x128xf32> -> vector<8x128xf32>
    %cst_46 = arith.constant dense<0.000000e+00> : vector<8x128xf32>
    %174 = tpu.matmul %154, %5, %cst_46 {dimension_numbers = #tpu.dot_dimension_numbers<[1], [0], [0], [1], [0, 0, 1, 1], [], []>} : vector<8x32xf32>, vector<32x128xf32>, vector<8x128xf32> -> vector<8x128xf32>
    %175 = arith.addf %173, %174 : vector<8x128xf32>
    %176 = vector.broadcast %6 : vector<1x128xf32> to vector<8x128xf32>
    %177 = arith.addf %175, %176 : vector<8x128xf32>
    %178 = math.tanh %177 : vector<8x128xf32>
    %cst_47 = arith.constant 5.000000e-01 : f32
    %179 = vector.broadcast %cst_47 : f32 to vector<8x128xf32>
    %180 = arith.mulf %179, %178 : vector<8x128xf32>
    %cst_48 = arith.constant 5.000000e-01 : f32
    %181 = vector.broadcast %cst_48 : f32 to vector<8x128xf32>
    %182 = arith.addf %181, %180 : vector<8x128xf32>
    %183 = vector.extract_strided_slice %182 {offsets = [0, 0], sizes = [8, 32], strides = [1, 1]} : vector<8x128xf32> to vector<8x32xf32>
    %184 = vector.extract_strided_slice %182 {offsets = [0, 32], sizes = [8, 32], strides = [1, 1]} : vector<8x128xf32> to vector<8x32xf32>
    %185 = vector.extract_strided_slice %178 {offsets = [0, 64], sizes = [8, 32], strides = [1, 1]} : vector<8x128xf32> to vector<8x32xf32>
    %186 = vector.extract_strided_slice %182 {offsets = [0, 96], sizes = [8, 32], strides = [1, 1]} : vector<8x128xf32> to vector<8x32xf32>
    %187 = arith.mulf %184, %152 : vector<8x32xf32>
    %188 = arith.mulf %183, %185 : vector<8x32xf32>
    %189 = arith.addf %187, %188 : vector<8x32xf32>
    %190 = math.tanh %189 : vector<8x32xf32>
    %191 = arith.mulf %186, %190 : vector<8x32xf32>
    %c32_49 = arith.constant 32 : index
    %c0_50 = arith.constant 0 : index
    %192 = vector.load %arg6[%c32_49, %c0_50] : memref<64x32xf32, #tpu.memory_space<vmem>>, vector<8x32xf32>
    tpu.vector_store %arg6[%c32_49, %c0_50], %191 {strides = array<i32>} : memref<64x32xf32, #tpu.memory_space<vmem>>, vector<8x32xf32>,
    %193 = vector.extract_strided_slice %2 {offsets = [40, 0], sizes = [8, 128], strides = [1, 1]} : vector<64x128xf32> to vector<8x128xf32>
    %cst_51 = arith.constant dense<0.000000e+00> : vector<8x128xf32>
    %194 = tpu.matmul %172, %3, %cst_51 {dimension_numbers = #tpu.dot_dimension_numbers<[1], [0], [0], [1], [0, 0, 1, 1], [], []>} : vector<8x32xf32>, vector<32x128xf32>, vector<8x128xf32> -> vector<8x128xf32>
    %195 = arith.addf %193, %194 : vector<8x128xf32>
    %196 = math.tanh %195 : vector<8x128xf32>
    %cst_52 = arith.constant 5.000000e-01 : f32
    %197 = vector.broadcast %cst_52 : f32 to vector<8x128xf32>
    %198 = arith.mulf %197, %196 : vector<8x128xf32>
    %cst_53 = arith.constant 5.000000e-01 : f32
    %199 = vector.broadcast %cst_53 : f32 to vector<8x128xf32>
    %200 = arith.addf %199, %198 : vector<8x128xf32>
    %201 = vector.extract_strided_slice %200 {offsets = [0, 0], sizes = [8, 32], strides = [1, 1]} : vector<8x128xf32> to vector<8x32xf32>
    %202 = vector.extract_strided_slice %200 {offsets = [0, 32], sizes = [8, 32], strides = [1, 1]} : vector<8x128xf32> to vector<8x32xf32>
    %203 = vector.extract_strided_slice %196 {offsets = [0, 64], sizes = [8, 32], strides = [1, 1]} : vector<8x128xf32> to vector<8x32xf32>
    %204 = vector.extract_strided_slice %200 {offsets = [0, 96], sizes = [8, 32], strides = [1, 1]} : vector<8x128xf32> to vector<8x32xf32>
    %205 = arith.mulf %202, %170 : vector<8x32xf32>
    %206 = arith.mulf %201, %203 : vector<8x32xf32>
    %207 = arith.addf %205, %206 : vector<8x32xf32>
    %208 = math.tanh %207 : vector<8x32xf32>
    %209 = arith.mulf %204, %208 : vector<8x32xf32>
    %cst_54 = arith.constant dense<0.000000e+00> : vector<8x128xf32>
    %210 = tpu.matmul %209, %4, %cst_54 {dimension_numbers = #tpu.dot_dimension_numbers<[1], [0], [0], [1], [0, 0, 1, 1], [], []>} : vector<8x32xf32>, vector<32x128xf32>, vector<8x128xf32> -> vector<8x128xf32>
    %cst_55 = arith.constant dense<0.000000e+00> : vector<8x128xf32>
    %211 = tpu.matmul %191, %5, %cst_55 {dimension_numbers = #tpu.dot_dimension_numbers<[1], [0], [0], [1], [0, 0, 1, 1], [], []>} : vector<8x32xf32>, vector<32x128xf32>, vector<8x128xf32> -> vector<8x128xf32>
    %212 = arith.addf %210, %211 : vector<8x128xf32>
    %213 = vector.broadcast %6 : vector<1x128xf32> to vector<8x128xf32>
    %214 = arith.addf %212, %213 : vector<8x128xf32>
    %215 = math.tanh %214 : vector<8x128xf32>
    %cst_56 = arith.constant 5.000000e-01 : f32
    %216 = vector.broadcast %cst_56 : f32 to vector<8x128xf32>
    %217 = arith.mulf %216, %215 : vector<8x128xf32>
    %cst_57 = arith.constant 5.000000e-01 : f32
    %218 = vector.broadcast %cst_57 : f32 to vector<8x128xf32>
    %219 = arith.addf %218, %217 : vector<8x128xf32>
    %220 = vector.extract_strided_slice %219 {offsets = [0, 0], sizes = [8, 32], strides = [1, 1]} : vector<8x128xf32> to vector<8x32xf32>
    %221 = vector.extract_strided_slice %219 {offsets = [0, 32], sizes = [8, 32], strides = [1, 1]} : vector<8x128xf32> to vector<8x32xf32>
    %222 = vector.extract_strided_slice %215 {offsets = [0, 64], sizes = [8, 32], strides = [1, 1]} : vector<8x128xf32> to vector<8x32xf32>
    %223 = vector.extract_strided_slice %219 {offsets = [0, 96], sizes = [8, 32], strides = [1, 1]} : vector<8x128xf32> to vector<8x32xf32>
    %224 = arith.mulf %221, %189 : vector<8x32xf32>
    %225 = arith.mulf %220, %222 : vector<8x32xf32>
    %226 = arith.addf %224, %225 : vector<8x32xf32>
    %227 = math.tanh %226 : vector<8x32xf32>
    %228 = arith.mulf %223, %227 : vector<8x32xf32>
    %c40 = arith.constant 40 : index
    %c0_58 = arith.constant 0 : index
    %229 = vector.load %arg6[%c40, %c0_58] : memref<64x32xf32, #tpu.memory_space<vmem>>, vector<8x32xf32>
    tpu.vector_store %arg6[%c40, %c0_58], %228 {strides = array<i32>} : memref<64x32xf32, #tpu.memory_space<vmem>>, vector<8x32xf32>,
    %230 = vector.extract_strided_slice %2 {offsets = [48, 0], sizes = [8, 128], strides = [1, 1]} : vector<64x128xf32> to vector<8x128xf32>
    %cst_59 = arith.constant dense<0.000000e+00> : vector<8x128xf32>
    %231 = tpu.matmul %209, %3, %cst_59 {dimension_numbers = #tpu.dot_dimension_numbers<[1], [0], [0], [1], [0, 0, 1, 1], [], []>} : vector<8x32xf32>, vector<32x128xf32>, vector<8x128xf32> -> vector<8x128xf32>
    %232 = arith.addf %230, %231 : vector<8x128xf32>
    %233 = math.tanh %232 : vector<8x128xf32>
    %cst_60 = arith.constant 5.000000e-01 : f32
    %234 = vector.broadcast %cst_60 : f32 to vector<8x128xf32>
    %235 = arith.mulf %234, %233 : vector<8x128xf32>
    %cst_61 = arith.constant 5.000000e-01 : f32
    %236 = vector.broadcast %cst_61 : f32 to vector<8x128xf32>
    %237 = arith.addf %236, %235 : vector<8x128xf32>
    %238 = vector.extract_strided_slice %237 {offsets = [0, 0], sizes = [8, 32], strides = [1, 1]} : vector<8x128xf32> to vector<8x32xf32>
    %239 = vector.extract_strided_slice %237 {offsets = [0, 32], sizes = [8, 32], strides = [1, 1]} : vector<8x128xf32> to vector<8x32xf32>
    %240 = vector.extract_strided_slice %233 {offsets = [0, 64], sizes = [8, 32], strides = [1, 1]} : vector<8x128xf32> to vector<8x32xf32>
    %241 = vector.extract_strided_slice %237 {offsets = [0, 96], sizes = [8, 32], strides = [1, 1]} : vector<8x128xf32> to vector<8x32xf32>
    %242 = arith.mulf %239, %207 : vector<8x32xf32>
    %243 = arith.mulf %238, %240 : vector<8x32xf32>
    %244 = arith.addf %242, %243 : vector<8x32xf32>
    %245 = math.tanh %244 : vector<8x32xf32>
    %246 = arith.mulf %241, %245 : vector<8x32xf32>
    %cst_62 = arith.constant dense<0.000000e+00> : vector<8x128xf32>
    %247 = tpu.matmul %246, %4, %cst_62 {dimension_numbers = #tpu.dot_dimension_numbers<[1], [0], [0], [1], [0, 0, 1, 1], [], []>} : vector<8x32xf32>, vector<32x128xf32>, vector<8x128xf32> -> vector<8x128xf32>
    %cst_63 = arith.constant dense<0.000000e+00> : vector<8x128xf32>
    %248 = tpu.matmul %228, %5, %cst_63 {dimension_numbers = #tpu.dot_dimension_numbers<[1], [0], [0], [1], [0, 0, 1, 1], [], []>} : vector<8x32xf32>, vector<32x128xf32>, vector<8x128xf32> -> vector<8x128xf32>
    %249 = arith.addf %247, %248 : vector<8x128xf32>
    %250 = vector.broadcast %6 : vector<1x128xf32> to vector<8x128xf32>
    %251 = arith.addf %249, %250 : vector<8x128xf32>
    %252 = math.tanh %251 : vector<8x128xf32>
    %cst_64 = arith.constant 5.000000e-01 : f32
    %253 = vector.broadcast %cst_64 : f32 to vector<8x128xf32>
    %254 = arith.mulf %253, %252 : vector<8x128xf32>
    %cst_65 = arith.constant 5.000000e-01 : f32
    %255 = vector.broadcast %cst_65 : f32 to vector<8x128xf32>
    %256 = arith.addf %255, %254 : vector<8x128xf32>
    %257 = vector.extract_strided_slice %256 {offsets = [0, 0], sizes = [8, 32], strides = [1, 1]} : vector<8x128xf32> to vector<8x32xf32>
    %258 = vector.extract_strided_slice %256 {offsets = [0, 32], sizes = [8, 32], strides = [1, 1]} : vector<8x128xf32> to vector<8x32xf32>
    %259 = vector.extract_strided_slice %252 {offsets = [0, 64], sizes = [8, 32], strides = [1, 1]} : vector<8x128xf32> to vector<8x32xf32>
    %260 = vector.extract_strided_slice %256 {offsets = [0, 96], sizes = [8, 32], strides = [1, 1]} : vector<8x128xf32> to vector<8x32xf32>
    %261 = arith.mulf %258, %226 : vector<8x32xf32>
    %262 = arith.mulf %257, %259 : vector<8x32xf32>
    %263 = arith.addf %261, %262 : vector<8x32xf32>
    %264 = math.tanh %263 : vector<8x32xf32>
    %265 = arith.mulf %260, %264 : vector<8x32xf32>
    %c48 = arith.constant 48 : index
    %c0_66 = arith.constant 0 : index
    %266 = vector.load %arg6[%c48, %c0_66] : memref<64x32xf32, #tpu.memory_space<vmem>>, vector<8x32xf32>
    tpu.vector_store %arg6[%c48, %c0_66], %265 {strides = array<i32>} : memref<64x32xf32, #tpu.memory_space<vmem>>, vector<8x32xf32>,
    %267 = vector.extract_strided_slice %2 {offsets = [56, 0], sizes = [8, 128], strides = [1, 1]} : vector<64x128xf32> to vector<8x128xf32>
    %cst_67 = arith.constant dense<0.000000e+00> : vector<8x128xf32>
    %268 = tpu.matmul %246, %3, %cst_67 {dimension_numbers = #tpu.dot_dimension_numbers<[1], [0], [0], [1], [0, 0, 1, 1], [], []>} : vector<8x32xf32>, vector<32x128xf32>, vector<8x128xf32> -> vector<8x128xf32>
    %269 = arith.addf %267, %268 : vector<8x128xf32>
    %270 = math.tanh %269 : vector<8x128xf32>
    %cst_68 = arith.constant 5.000000e-01 : f32
    %271 = vector.broadcast %cst_68 : f32 to vector<8x128xf32>
    %272 = arith.mulf %271, %270 : vector<8x128xf32>
    %cst_69 = arith.constant 5.000000e-01 : f32
    %273 = vector.broadcast %cst_69 : f32 to vector<8x128xf32>
    %274 = arith.addf %273, %272 : vector<8x128xf32>
    %275 = vector.extract_strided_slice %274 {offsets = [0, 0], sizes = [8, 32], strides = [1, 1]} : vector<8x128xf32> to vector<8x32xf32>
    %276 = vector.extract_strided_slice %274 {offsets = [0, 32], sizes = [8, 32], strides = [1, 1]} : vector<8x128xf32> to vector<8x32xf32>
    %277 = vector.extract_strided_slice %270 {offsets = [0, 64], sizes = [8, 32], strides = [1, 1]} : vector<8x128xf32> to vector<8x32xf32>
    %278 = vector.extract_strided_slice %274 {offsets = [0, 96], sizes = [8, 32], strides = [1, 1]} : vector<8x128xf32> to vector<8x32xf32>
    %279 = arith.mulf %276, %244 : vector<8x32xf32>
    %280 = arith.mulf %275, %277 : vector<8x32xf32>
    %281 = arith.addf %279, %280 : vector<8x32xf32>
    %282 = math.tanh %281 : vector<8x32xf32>
    %283 = arith.mulf %278, %282 : vector<8x32xf32>
    %cst_70 = arith.constant dense<0.000000e+00> : vector<8x128xf32>
    %284 = tpu.matmul %283, %4, %cst_70 {dimension_numbers = #tpu.dot_dimension_numbers<[1], [0], [0], [1], [0, 0, 1, 1], [], []>} : vector<8x32xf32>, vector<32x128xf32>, vector<8x128xf32> -> vector<8x128xf32>
    %cst_71 = arith.constant dense<0.000000e+00> : vector<8x128xf32>
    %285 = tpu.matmul %265, %5, %cst_71 {dimension_numbers = #tpu.dot_dimension_numbers<[1], [0], [0], [1], [0, 0, 1, 1], [], []>} : vector<8x32xf32>, vector<32x128xf32>, vector<8x128xf32> -> vector<8x128xf32>
    %286 = arith.addf %284, %285 : vector<8x128xf32>
    %287 = vector.broadcast %6 : vector<1x128xf32> to vector<8x128xf32>
    %288 = arith.addf %286, %287 : vector<8x128xf32>
    %289 = math.tanh %288 : vector<8x128xf32>
    %cst_72 = arith.constant 5.000000e-01 : f32
    %290 = vector.broadcast %cst_72 : f32 to vector<8x128xf32>
    %291 = arith.mulf %290, %289 : vector<8x128xf32>
    %cst_73 = arith.constant 5.000000e-01 : f32
    %292 = vector.broadcast %cst_73 : f32 to vector<8x128xf32>
    %293 = arith.addf %292, %291 : vector<8x128xf32>
    %294 = vector.extract_strided_slice %293 {offsets = [0, 0], sizes = [8, 32], strides = [1, 1]} : vector<8x128xf32> to vector<8x32xf32>
    %295 = vector.extract_strided_slice %293 {offsets = [0, 32], sizes = [8, 32], strides = [1, 1]} : vector<8x128xf32> to vector<8x32xf32>
    %296 = vector.extract_strided_slice %289 {offsets = [0, 64], sizes = [8, 32], strides = [1, 1]} : vector<8x128xf32> to vector<8x32xf32>
    %297 = vector.extract_strided_slice %293 {offsets = [0, 96], sizes = [8, 32], strides = [1, 1]} : vector<8x128xf32> to vector<8x32xf32>
    %298 = arith.mulf %295, %263 : vector<8x32xf32>
    %299 = arith.mulf %294, %296 : vector<8x32xf32>
    %300 = arith.addf %298, %299 : vector<8x32xf32>
    %301 = math.tanh %300 : vector<8x32xf32>
    %302 = arith.mulf %297, %301 : vector<8x32xf32>
    %c56 = arith.constant 56 : index
    %c0_74 = arith.constant 0 : index
    %303 = vector.load %arg6[%c56, %c0_74] : memref<64x32xf32, #tpu.memory_space<vmem>>, vector<8x32xf32>
    tpu.vector_store %arg6[%c56, %c0_74], %302 {strides = array<i32>} : memref<64x32xf32, #tpu.memory_space<vmem>>, vector<8x32xf32>,
    %c0_75 = arith.constant 0 : index
    %c0_76 = arith.constant 0 : index
    %304 = vector.load %arg3[%c0_75, %c0_76] : memref<32x64xf32, #tpu.memory_space<vmem>>, vector<32x64xf32>
    %c0_77 = arith.constant 0 : index
    %c0_78 = arith.constant 0 : index
    %305 = vector.load %arg6[%c0_77, %c0_78] : memref<64x32xf32, #tpu.memory_space<vmem>>, vector<64x32xf32>
    %cst_79 = arith.constant dense<0.000000e+00> : vector<32x32xf32>
    %306 = tpu.matmul %304, %305, %cst_79 {dimension_numbers = #tpu.dot_dimension_numbers<[1], [0], [0], [1], [0, 0, 1, 1], [], []>} : vector<32x64xf32>, vector<64x32xf32>, vector<32x32xf32> -> vector<32x32xf32>
    %c0_80 = arith.constant 0 : index
    %c0_81 = arith.constant 0 : index
    %307 = vector.load %arg4[%c0_80, %c0_81] : memref<33x2xf32, #tpu.memory_space<vmem>>, vector<32x2xf32>
    %cst_82 = arith.constant dense<0.000000e+00> : vector<32x2xf32>
    %308 = tpu.matmul %306, %307, %cst_82 {dimension_numbers = #tpu.dot_dimension_numbers<[1], [0], [0], [1], [0, 0, 1, 1], [], []>} : vector<32x32xf32>, vector<32x2xf32>, vector<32x2xf32> -> vector<32x2xf32>
    %c32_83 = arith.constant 32 : index
    %c0_84 = arith.constant 0 : index
    %309 = vector.load %arg4[%c32_83, %c0_84] : memref<33x2xf32, #tpu.memory_space<vmem>>, vector<1x2xf32>
    %310 = vector.broadcast %309 : vector<1x2xf32> to vector<32x2xf32>
    %311 = arith.addf %308, %310 : vector<32x2xf32>
    %c0_85 = arith.constant 0 : index
    %c0_86 = arith.constant 0 : index
    %312 = vector.load %arg5[%c0_85, %c0_86] : memref<32x2xf32, #tpu.memory_space<vmem>>, vector<32x2xf32>
    tpu.vector_store %arg5[%c0_85, %c0_86], %311 {strides = array<i32>} : memref<32x2xf32, #tpu.memory_space<vmem>>, vector<32x2xf32>,
    return
  }
}

</mosaic_0001>

<llo_original>
// kernel: rnconv_forward.1
$region0: #{rnconv_forward.1}
  #allocation0 [shape = 'u32[]', space=smem, size = 0x4, offset = 0x4, fixed_abs, tag = 'smem constant byte address 0x4 - core index']
  #allocation1 [shape = 'u32[144,128]{1,0:T(1,128)}', space=vmem, size = 0x12000, scoped, tag = 'internal scratch']
  #allocation2 [shape = 'f32[64,32]{1,0:T(8,128)}', space=vmem, size = 0x8000, scoped, tag = 'scratch operand']
  %s0 = inlined_call_operand.vmem [shape: f32[64,384], index: 0, kind: input, shape index: {}]
  %s1 = inlined_call_operand.vmem [shape: f32[384,128], index: 1, kind: input, shape index: {}]
  %s2 = inlined_call_operand.vmem [shape: f32[104,128], index: 2, kind: input, shape index: {}]
  %s3 = inlined_call_operand.vmem [shape: f32[32,64], index: 3, kind: input, shape index: {}]
  %s4 = inlined_call_operand.vmem [shape: f32[33,2], index: 4, kind: input, shape index: {}]
  %s5 = inlined_call_operand.vmem [shape: f32[32,2], index: 5, kind: output, shape index: {}]
  %s6 = sld [smem:[#allocation0]]
  $region30: #{rnconv_forward.1} parent=0
    _
  %s8 = ssub.s32 1, %s6
  %s9 = scalar_select 0, %s8, %s6
  // Predicated region
  $region2: #{rnconv_forward.1} parent=0 // pred_check
    _
  $region3: #{rnconv_forward.1} parent=0 // pred_check_branch
    %11 = sbr.rel (0) target = $region5
  $region4: #{rnconv_forward.1} parent=0 // pred_region
    _
  $region5: #{rnconv_forward.1} parent=0 // pred_fallthru
    _
  // Predicated region
  $region6: #{rnconv_forward.1} parent=0 // pred_check
    _
  $region7: #{rnconv_forward.1} parent=0 // pred_check_branch
    %13 = sbr.rel (0) target = $region9
  $region8: #{rnconv_forward.1} parent=0 // pred_region
    _
  $region9: #{rnconv_forward.1} parent=0 // pred_fallthru
    _
  // Predicated region
  $region10: #{rnconv_forward.1} parent=0 // pred_check
    _
  $region11: #{rnconv_forward.1} parent=0 // pred_check_branch
    %15 = sbr.rel (0) target = $region13
  $region12: #{rnconv_forward.1} parent=0 // pred_region
    _
  $region13: #{rnconv_forward.1} parent=0 // pred_fallthru
    _
  // Predicated region
  $region14: #{rnconv_forward.1} parent=0 // pred_check
    _
  $region15: #{rnconv_forward.1} parent=0 // pred_check_branch
    %17 = sbr.rel (0) target = $region17
  $region16: #{rnconv_forward.1} parent=0 // pred_region
    _
  $region17: #{rnconv_forward.1} parent=0 // pred_fallthru
    _
  // Predicated region
  $region18: #{rnconv_forward.1} parent=0 // pred_check
    _
  $region19: #{rnconv_forward.1} parent=0 // pred_check_branch
    %19 = sbr.rel (0) target = $region21
  $region20: #{rnconv_forward.1} parent=0 // pred_region
    _
  $region21: #{rnconv_forward.1} parent=0 // pred_fallthru
    _
  %v20 = vld [vmem:[%s0] sm:$0xff]
  %v21 = vld [vmem:[%s0 + $0x8] sm:$0xff]
  %v22 = vld [vmem:[%s0 + $0x10] sm:$0xff]
  %v23 = vld [vmem:[%s0 + $0x18] sm:$0xff]
  %v24 = vld [vmem:[%s0 + $0x20] sm:$0xff]
  %v25 = vld [vmem:[%s0 + $0x28] sm:$0xff]
  %v26 = vld [vmem:[%s0 + $0x30] sm:$0xff]
  %v27 = vld [vmem:[%s0 + $0x38] sm:$0xff]
  %v28 = vld [vmem:[%s0 + $0x40] sm:$0xff]
  %v29 = vld [vmem:[%s0 + $0x48] sm:$0xff]
  %v30 = vld [vmem:[%s0 + $0x50] sm:$0xff]
  %v31 = vld [vmem:[%s0 + $0x58] sm:$0xff]
  %v32 = vld [vmem:[%s0 + $0x60] sm:$0xff]
  %v33 = vld [vmem:[%s0 + $0x68] sm:$0xff]
  %v34 = vld [vmem:[%s0 + $0x70] sm:$0xff]
  %v35 = vld [vmem:[%s0 + $0x78] sm:$0xff]
  %v36 = vld [vmem:[%s0 + $0x80] sm:$0xff]
  %v37 = vld [vmem:[%s0 + $0x88] sm:$0xff]
  %v38 = vld [vmem:[%s0 + $0x90] sm:$0xff]
  %v39 = vld [vmem:[%s0 + $0x98] sm:$0xff]
  %v40 = vld [vmem:[%s0 + $0xa0] sm:$0xff]
  %v41 = vld [vmem:[%s0 + $0xa8] sm:$0xff]
  %v42 = vld [vmem:[%s0 + $0xb0] sm:$0xff]
  %v43 = vld [vmem:[%s0 + $0xb8] sm:$0xff]
  %v44 = vld [vmem:[%s1] sm:$0xff]
  %v45 = vld [vmem:[%s1 + $0x8] sm:$0xff]
  %v46 = vld [vmem:[%s1 + $0x10] sm:$0xff]
  %v47 = vld [vmem:[%s1 + $0x18] sm:$0xff]
  %v48 = vld [vmem:[%s1 + $0x20] sm:$0xff]
  %v49 = vld [vmem:[%s1 + $0x28] sm:$0xff]
  %v50 = vld [vmem:[%s1 + $0x30] sm:$0xff]
  %v51 = vld [vmem:[%s1 + $0x38] sm:$0xff]
  %v52 = vld [vmem:[%s1 + $0x40] sm:$0xff]
  %v53 = vld [vmem:[%s1 + $0x48] sm:$0xff]
  %v54 = vld [vmem:[%s1 + $0x50] sm:$0xff]
  %v55 = vld [vmem:[%s1 + $0x58] sm:$0xff]
  %v56 = vld [vmem:[%s1 + $0x60] sm:$0xff]
  %v57 = vld [vmem:[%s1 + $0x68] sm:$0xff]
  %v58 = vld [vmem:[%s1 + $0x70] sm:$0xff]
  %v59 = vld [vmem:[%s1 + $0x78] sm:$0xff]
  %v60 = vld [vmem:[%s1 + $0x80] sm:$0xff]
  %v61 = vld [vmem:[%s1 + $0x88] sm:$0xff]
  %v62 = vld [vmem:[%s1 + $0x90] sm:$0xff]
  %v63 = vld [vmem:[%s1 + $0x98] sm:$0xff]
  %v64 = vld [vmem:[%s1 + $0xa0] sm:$0xff]
  %v65 = vld [vmem:[%s1 + $0xa8] sm:$0xff]
  %v66 = vld [vmem:[%s1 + $0xb0] sm:$0xff]
  %v67 = vld [vmem:[%s1 + $0xb8] sm:$0xff]
  %v68 = vld [vmem:[%s1 + $0xc0] sm:$0xff]
  %v69 = vld [vmem:[%s1 + $0xc8] sm:$0xff]
  %v70 = vld [vmem:[%s1 + $0xd0] sm:$0xff]
  %v71 = vld [vmem:[%s1 + $0xd8] sm:$0xff]
  %v72 = vld [vmem:[%s1 + $0xe0] sm:$0xff]
  %v73 = vld [vmem:[%s1 + $0xe8] sm:$0xff]
  %v74 = vld [vmem:[%s1 + $0xf0] sm:$0xff]
  %v75 = vld [vmem:[%s1 + $0xf8] sm:$0xff]
  %v76 = vld [vmem:[%s1 + $0x100] sm:$0xff]
  %v77 = vld [vmem:[%s1 + $0x108] sm:$0xff]
  %v78 = vld [vmem:[%s1 + $0x110] sm:$0xff]
  %v79 = vld [vmem:[%s1 + $0x118] sm:$0xff]
  %v80 = vld [vmem:[%s1 + $0x120] sm:$0xff]
  %v81 = vld [vmem:[%s1 + $0x128] sm:$0xff]
  %v82 = vld [vmem:[%s1 + $0x130] sm:$0xff]
  %v83 = vld [vmem:[%s1 + $0x138] sm:$0xff]
  %v84 = vld [vmem:[%s1 + $0x140] sm:$0xff]
  %v85 = vld [vmem:[%s1 + $0x148] sm:$0xff]
  %v86 = vld [vmem:[%s1 + $0x150] sm:$0xff]
  %v87 = vld [vmem:[%s1 + $0x158] sm:$0xff]
  %v88 = vld [vmem:[%s1 + $0x160] sm:$0xff]
  %v89 = vld [vmem:[%s1 + $0x168] sm:$0xff]
  %v90 = vld [vmem:[%s1 + $0x170] sm:$0xff]
  %v91 = vld [vmem:[%s1 + $0x178] sm:$0xff]
  %92 = vmatprep.subr.mxu0 0.0
  %93 = vmatpush1.msra.mxu0 %v44
  %94 = vmatprep.subr.mxu0 0.0
  %95 = vmatpush1.msra.mxu0 %v45
  %96 = vmatprep.subr.mxu0 0.0
  %97 = vmatpush1.msra.mxu0 %v46
  %98 = vmatprep.subr.mxu0 0.0
  %99 = vmatpush1.msra.mxu0 %v47
  %100 = vmatprep.subr.mxu0 0.0
  %101 = vmatpush1.msra.mxu0 %v48
  %102 = vmatprep.subr.mxu0 0.0
  %103 = vmatpush1.msra.mxu0 %v49
  %104 = vmatprep.subr.mxu0 0.0
  %105 = vmatpush1.msra.mxu0 %v50
  %106 = vmatprep.subr.mxu0 0.0
  %107 = vmatpush1.msra.mxu0 %v51
  %108 = vmatprep.subr.mxu0 0.0
  %109 = vmatpush1.msra.mxu0 %v52
  %110 = vmatprep.subr.mxu0 0.0
  %111 = vmatpush1.msra.mxu0 %v53
  %112 = vmatprep.subr.mxu0 0.0
  %113 = vmatpush1.msra.mxu0 %v54
  %114 = vmatprep.subr.mxu0 0.0
  %115 = vmatpush1.msra.mxu0 %v55
  %116 = vmatprep.subr.mxu0 0.0
  %117 = vmatpush1.msra.mxu0 %v56
  %118 = vmatprep.subr.mxu0 0.0
  %119 = vmatpush1.msra.mxu0 %v57
  %120 = vmatprep.subr.mxu0 0.0
  %121 = vmatpush1.msra.mxu0 %v58
  %122 = vmatprep.subr.mxu0 0.0
  %123 = vmatpush1.msra.mxu0 %v59
  %124 = vmatprep.subr.mxu0 0.0
  %125 = vmatpush1.msra.mxu0 %v60
  %126 = vmatprep.subr.mxu0 0.0
  %127 = vmatpush1.msra.mxu0 %v61
  %128 = vmatprep.subr.mxu0 0.0
  %129 = vmatpush1.msra.mxu0 %v62
  %130 = vmatprep.subr.mxu0 0.0
  %131 = vmatpush1.msra.mxu0 %v63
  %132 = vmatprep.subr.mxu0 0.0
  %133 = vmatpush1.msra.mxu0 %v64
  %134 = vmatprep.subr.mxu0 0.0
  %135 = vmatpush1.msra.mxu0 %v65
  %136 = vmatprep.subr.mxu0 0.0
  %137 = vmatpush1.msra.mxu0 %v66
  %138 = vmatprep.subr.mxu0 0.0
  %139 = vmatpush1.msra.mxu0 %v67
  %140 = vmatprep.subr.mxu0 0.0
  %141 = vmatpush1.msra.mxu0 %v68
  %142 = vmatprep.subr.mxu0 0.0
  %143 = vmatpush1.msra.mxu0 %v69
  %144 = vmatprep.subr.mxu0 0.0
  %145 = vmatpush1.msra.mxu0 %v70
  %146 = vmatprep.subr.mxu0 0.0
  %147 = vmatpush1.msra.mxu0 %v71
  %148 = vmatprep.subr.mxu0 0.0
  %149 = vmatpush1.msra.mxu0 %v72
  %150 = vmatprep.subr.mxu0 0.0
  %151 = vmatpush1.msra.mxu0 %v73
  %152 = vmatprep.subr.mxu0 0.0
  %153 = vmatpush1.msra.mxu0 %v74
  %154 = vmatprep.subr.mxu0 0.0
  %155 = vmatpush1.msra.mxu0 %v75
  %156 = vmatprep.mubr.f32.mxu0 %v21
  %157 = vmatmul.mubr.f32.gmra.mrb[0].mxu0 %v20
  %v158 = vpop.f32.mrb[0].mxu0
  %v159 = vadd.f32 0.0, %v158
  %v160 = vpop.f32.mrb[0].mxu0
  %161 = vmatprep.mubr.f32.mxu0 %v24
  %162 = vmatmul.mubr.f32.gmra.mrb[0].mxu0 %v23
  %v163 = vpop.f32.mrb[0].mxu0
  %v164 = vadd.f32 0.0, %v163
  %v165 = vpop.f32.mrb[0].mxu0
  %166 = vmatprep.mubr.f32.mxu0 %v27
  %167 = vmatmul.mubr.f32.gmra.mrb[0].mxu0 %v26
  %v168 = vpop.f32.mrb[0].mxu0
  %v169 = vadd.f32 0.0, %v168
  %v170 = vpop.f32.mrb[0].mxu0
  %171 = vmatprep.mubr.f32.mxu0 %v30
  %172 = vmatmul.mubr.f32.gmra.mrb[0].mxu0 %v29
  %v173 = vpop.f32.mrb[0].mxu0
  %v174 = vadd.f32 0.0, %v173
  %v175 = vpop.f32.mrb[0].mxu0
  %176 = vmatprep.mubr.f32.mxu0 %v33
  %177 = vmatmul.mubr.f32.gmra.mrb[0].mxu0 %v32
  %v178 = vpop.f32.mrb[0].mxu0
  %v179 = vadd.f32 0.0, %v178
  %v180 = vpop.f32.mrb[0].mxu0
  %181 = vmatprep.mubr.f32.mxu0 %v36
  %182 = vmatmul.mubr.f32.gmra.mrb[0].mxu0 %v35
  %v183 = vpop.f32.mrb[0].mxu0
  %v184 = vadd.f32 0.0, %v183
  %v185 = vpop.f32.mrb[0].mxu0
  %186 = vmatprep.mubr.f32.mxu0 %v39
  %187 = vmatmul.mubr.f32.gmra.mrb[0].mxu0 %v38
  %v188 = vpop.f32.mrb[0].mxu0
  %v189 = vadd.f32 0.0, %v188
  %v190 = vpop.f32.mrb[0].mxu0
  %191 = vmatprep.mubr.f32.mxu0 %v42
  %192 = vmatmul.mubr.f32.gmra.mrb[0].mxu0 %v41
  %v193 = vpop.f32.mrb[0].mxu0
  %v194 = vadd.f32 0.0, %v193
  %v195 = vpop.f32.mrb[0].mxu0
  %196 = vdwg.mxu0
  %197 = vmatprep.subr.mxu0 0.0
  %198 = vmatpush1.msra.mxu0 %v76
  %199 = vmatprep.subr.mxu0 0.0
  %200 = vmatpush1.msra.mxu0 %v77
  %201 = vmatprep.subr.mxu0 0.0
  %202 = vmatpush1.msra.mxu0 %v78
  %203 = vmatprep.subr.mxu0 0.0
  %204 = vmatpush1.msra.mxu0 %v79
  %205 = vmatprep.subr.mxu0 0.0
  %206 = vmatpush1.msra.mxu0 %v80
  %207 = vmatprep.subr.mxu0 0.0
  %208 = vmatpush1.msra.mxu0 %v81
  %209 = vmatprep.subr.mxu0 0.0
  %210 = vmatpush1.msra.mxu0 %v82
  %211 = vmatprep.subr.mxu0 0.0
  %212 = vmatpush1.msra.mxu0 %v83
  %213 = vmatprep.subr.mxu0 0.0
  %214 = vmatpush1.msra.mxu0 %v84
  %215 = vmatprep.subr.mxu0 0.0
  %216 = vmatpush1.msra.mxu0 %v85
  %217 = vmatprep.subr.mxu0 0.0
  %218 = vmatpush1.msra.mxu0 %v86
  %219 = vmatprep.subr.mxu0 0.0
  %220 = vmatpush1.msra.mxu0 %v87
  %221 = vmatprep.subr.mxu0 0.0
  %222 = vmatpush1.msra.mxu0 %v88
  %223 = vmatprep.subr.mxu0 0.0
  %224 = vmatpush1.msra.mxu0 %v89
  %225 = vmatprep.subr.mxu0 0.0
  %226 = vmatpush1.msra.mxu0 %v90
  %227 = vmatprep.subr.mxu0 0.0
  %228 = vmatpush1.msra.mxu0 %v91
  %229 = vmatprep.subr.mxu0 0.0
  %230 = vmatpush1.msra.mxu0 0.0
  %231 = vmatprep.subr.mxu0 0.0
  %232 = vmatpush1.msra.mxu0 0.0
  %233 = vmatprep.subr.mxu0 0.0
  %234 = vmatpush1.msra.mxu0 0.0
  %235 = vmatprep.subr.mxu0 0.0
  %236 = vmatpush1.msra.mxu0 0.0
  %237 = vmatprep.subr.mxu0 0.0
  %238 = vmatpush1.msra.mxu0 0.0
  %239 = vmatprep.subr.mxu0 0.0
  %240 = vmatpush1.msra.mxu0 0.0
  %241 = vmatprep.subr.mxu0 0.0
  %242 = vmatpush1.msra.mxu0 0.0
  %243 = vmatprep.subr.mxu0 0.0
  %244 = vmatpush1.msra.mxu0 0.0
  %245 = vmatprep.subr.mxu0 0.0
  %246 = vmatpush1.msra.mxu0 0.0
  %247 = vmatprep.subr.mxu0 0.0
  %248 = vmatpush1.msra.mxu0 0.0
  %249 = vmatprep.subr.mxu0 0.0
  %250 = vmatpush1.msra.mxu0 0.0
  %251 = vmatprep.subr.mxu0 0.0
  %252 = vmatpush1.msra.mxu0 0.0
  %253 = vmatprep.subr.mxu0 0.0
  %254 = vmatpush1.msra.mxu0 0.0
  %255 = vmatprep.subr.mxu0 0.0
  %256 = vmatpush1.msra.mxu0 0.0
  %257 = vmatprep.subr.mxu0 0.0
  %258 = vmatpush1.msra.mxu0 0.0
  %259 = vmatprep.subr.mxu0 0.0
  %260 = vmatpush1.msra.mxu0 0.0
  %261 = vmatprep.mubr.f32.mxu0 0.0
  %262 = vmatmul.mubr.f32.gmra.mrb[0].mxu0 %v22
  %v263 = vpop.f32.mrb[0].mxu0
  %v264 = vadd.f32 %v159, %v263
  %v265 = vpop.f32.mrb[0].mxu0
  %266 = vmatprep.mubr.f32.mxu0 0.0
  %267 = vmatmul.mubr.f32.gmra.mrb[0].mxu0 %v25
  %v268 = vpop.f32.mrb[0].mxu0
  %v269 = vadd.f32 %v164, %v268
  %v270 = vpop.f32.mrb[0].mxu0
  %271 = vmatprep.mubr.f32.mxu0 0.0
  %272 = vmatmul.mubr.f32.gmra.mrb[0].mxu0 %v28
  %v273 = vpop.f32.mrb[0].mxu0
  %v274 = vadd.f32 %v169, %v273
  %v275 = vpop.f32.mrb[0].mxu0
  %276 = vmatprep.mubr.f32.mxu0 0.0
  %277 = vmatmul.mubr.f32.gmra.mrb[0].mxu0 %v31
  %v278 = vpop.f32.mrb[0].mxu0
  %v279 = vadd.f32 %v174, %v278
  %v280 = vpop.f32.mrb[0].mxu0
  %281 = vmatprep.mubr.f32.mxu0 0.0
  %282 = vmatmul.mubr.f32.gmra.mrb[0].mxu0 %v34
  %v283 = vpop.f32.mrb[0].mxu0
  %v284 = vadd.f32 %v179, %v283
  %v285 = vpop.f32.mrb[0].mxu0
  %286 = vmatprep.mubr.f32.mxu0 0.0
  %287 = vmatmul.mubr.f32.gmra.mrb[0].mxu0 %v37
  %v288 = vpop.f32.mrb[0].mxu0
  %v289 = vadd.f32 %v184, %v288
  %v290 = vpop.f32.mrb[0].mxu0
  %291 = vmatprep.mubr.f32.mxu0 0.0
  %292 = vmatmul.mubr.f32.gmra.mrb[0].mxu0 %v40
  %v293 = vpop.f32.mrb[0].mxu0
  %v294 = vadd.f32 %v189, %v293
  %v295 = vpop.f32.mrb[0].mxu0
  %296 = vmatprep.mubr.f32.mxu0 0.0
  %297 = vmatmul.mubr.f32.gmra.mrb[0].mxu0 %v43
  %v298 = vpop.f32.mrb[0].mxu0
  %v299 = vadd.f32 %v194, %v298
  %v300 = vpop.f32.mrb[0].mxu0
  %301 = vdwg.mxu0
  %v302 = vld [vmem:[%s2] sm:$0xff]
  %v303 = vld [vmem:[%s2 + $0x8] sm:$0xff]
  %v304 = vld [vmem:[%s2 + $0x10] sm:$0xff]
  %v305 = vld [vmem:[%s2 + $0x18] sm:$0xff]
  %v306 = vld [vmem:[%s2 + $0x20] sm:$0xff]
  %v307 = vld [vmem:[%s2 + $0x28] sm:$0xff]
  %v308 = vld [vmem:[%s2 + $0x30] sm:$0xff]
  %v309 = vld [vmem:[%s2 + $0x38] sm:$0xff]
  %v310 = vld [vmem:[%s2 + $0x40] sm:$0xff]
  %v311 = vld [vmem:[%s2 + $0x48] sm:$0xff]
  %v312 = vld [vmem:[%s2 + $0x50] sm:$0xff]
  %v313 = vld [vmem:[%s2 + $0x58] sm:$0xff]
  %v314 = vld [vmem:[%s2 + $0x60] sm:$0x1]
  %vm315 = vcmask 261120
  %v317 = vsel %vm315, 0.0, 0
  %319 = vmatprep.subr.mxu0 0.0
  %320 = vmatpush1.msra.mxu0 %v302
  %321 = vmatprep.subr.mxu0 0.0
  %322 = vmatpush1.msra.mxu0 %v303
  %323 = vmatprep.subr.mxu0 0.0
  %324 = vmatpush1.msra.mxu0 %v304
  %325 = vmatprep.subr.mxu0 0.0
  %326 = vmatpush1.msra.mxu0 %v305
  %327 = vmatprep.subr.mxu0 0.0
  %328 = vmatpush1.msra.mxu0 0.0
  %329 = vmatprep.subr.mxu0 0.0
  %330 = vmatpush1.msra.mxu0 0.0
  %331 = vmatprep.subr.mxu0 0.0
  %332 = vmatpush1.msra.mxu0 0.0
  %333 = vmatprep.subr.mxu0 0.0
  %334 = vmatpush1.msra.mxu0 0.0
  %335 = vmatprep.subr.mxu0 0.0
  %336 = vmatpush1.msra.mxu0 0.0
  %337 = vmatprep.subr.mxu0 0.0
  %338 = vmatpush1.msra.mxu0 0.0
  %339 = vmatprep.subr.mxu0 0.0
  %340 = vmatpush1.msra.mxu0 0.0
  %341 = vmatprep.subr.mxu0 0.0
  %342 = vmatpush1.msra.mxu0 0.0
  %343 = vmatprep.subr.mxu0 0.0
  %344 = vmatpush1.msra.mxu0 0.0
  %345 = vmatprep.subr.mxu0 0.0
  %346 = vmatpush1.msra.mxu0 0.0
  %347 = vmatprep.subr.mxu0 0.0
  %348 = vmatpush1.msra.mxu0 0.0
  %349 = vmatprep.subr.mxu0 0.0
  %350 = vmatpush1.msra.mxu0 0.0
  %351 = vmatprep.subr.mxu0 0.0
  %352 = vmatpush1.msra.mxu0 0.0
  %353 = vmatprep.subr.mxu0 0.0
  %354 = vmatpush1.msra.mxu0 0.0
  %355 = vmatprep.subr.mxu0 0.0
  %356 = vmatpush1.msra.mxu0 0.0
  %357 = vmatprep.subr.mxu0 0.0
  %358 = vmatpush1.msra.mxu0 0.0
  %359 = vmatprep.subr.mxu0 0.0
  %360 = vmatpush1.msra.mxu0 0.0
  %361 = vmatprep.subr.mxu0 0.0
  %362 = vmatpush1.msra.mxu0 0.0
  %363 = vmatprep.subr.mxu0 0.0
  %364 = vmatpush1.msra.mxu0 0.0
  %365 = vmatprep.subr.mxu0 0.0
  %366 = vmatpush1.msra.mxu0 0.0
  %367 = vmatprep.subr.mxu0 0.0
  %368 = vmatpush1.msra.mxu0 0.0
  %369 = vmatprep.subr.mxu0 0.0
  %370 = vmatpush1.msra.mxu0 0.0
  %371 = vmatprep.subr.mxu0 0.0
  %372 = vmatpush1.msra.mxu0 0.0
  %373 = vmatprep.subr.mxu0 0.0
  %374 = vmatpush1.msra.mxu0 0.0
  %375 = vmatprep.subr.mxu0 0.0
  %376 = vmatpush1.msra.mxu0 0.0
  %377 = vmatprep.subr.mxu0 0.0
  %378 = vmatpush1.msra.mxu0 0.0
  %379 = vmatprep.subr.mxu0 0.0
  %380 = vmatpush1.msra.mxu0 0.0
  %381 = vmatprep.subr.mxu0 0.0
  %382 = vmatpush1.msra.mxu0 0.0
  %383 = vmatprep.mubr.f32.mxu0 0.0
  %384 = vmatmul.mubr.f32.gmra.mrb[0].mxu0 %v317
  %v385 = vpop.f32.mrb[0].mxu0
  %v386 = vadd.f32 0.0, %v385
  %v387 = vpop.f32.mrb[0].mxu0
  %388 = vdwg.mxu0
  %v389 = vadd.f32 %v264, %v386
  %v390 = vtanh.pop %v389
  %v391 = vmul.f32 %v390, 0.5
  %v392 = vadd.f32 %v391, 0.5
  %v393 = vmul.f32 %v392, 0.0
  %395 = vrot.lane.b32.xlu0 %v390, 64
  %v396 = vpop.permute.xlu0 %395
  %v398 = vmul.f32 %v392, %v396
  %400 = vrot.lane.b32.xlu0 %v398, 32
  %v401 = vpop.permute.xlu0 %400
  %v403 = vadd.f32 %v393, %v401
  %v404 = vtanh.pop %v403
  %406 = vrot.lane.b32.xlu0 %v404, 64
  %v407 = vpop.permute.xlu0 %406
  %v409 = vmul.f32 %v392, %v407
  %410 = vmatprep.subr.mxu0 0.0
  %411 = vmatpush1.msra.mxu0 %v310
  %412 = vmatprep.subr.mxu0 0.0
  %413 = vmatpush1.msra.mxu0 %v311
  %414 = vmatprep.subr.mxu0 0.0
  %415 = vmatpush1.msra.mxu0 %v312
  %416 = vmatprep.subr.mxu0 0.0
  %417 = vmatpush1.msra.mxu0 %v313
  %418 = vmatprep.subr.mxu0 0.0
  %419 = vmatpush1.msra.mxu0 0.0
  %420 = vmatprep.subr.mxu0 0.0
  %421 = vmatpush1.msra.mxu0 0.0
  %422 = vmatprep.subr.mxu0 0.0
  %423 = vmatpush1.msra.mxu0 0.0
  %424 = vmatprep.subr.mxu0 0.0
  %425 = vmatpush1.msra.mxu0 0.0
  %426 = vmatprep.subr.mxu0 0.0
  %427 = vmatpush1.msra.mxu0 0.0
  %428 = vmatprep.subr.mxu0 0.0
  %429 = vmatpush1.msra.mxu0 0.0
  %430 = vmatprep.subr.mxu0 0.0
  %431 = vmatpush1.msra.mxu0 0.0
  %432 = vmatprep.subr.mxu0 0.0
  %433 = vmatpush1.msra.mxu0 0.0
  %434 = vmatprep.subr.mxu0 0.0
  %435 = vmatpush1.msra.mxu0 0.0
  %436 = vmatprep.subr.mxu0 0.0
  %437 = vmatpush1.msra.mxu0 0.0
  %438 = vmatprep.subr.mxu0 0.0
  %439 = vmatpush1.msra.mxu0 0.0
  %440 = vmatprep.subr.mxu0 0.0
  %441 = vmatpush1.msra.mxu0 0.0
  %442 = vmatprep.subr.mxu0 0.0
  %443 = vmatpush1.msra.mxu0 0.0
  %444 = vmatprep.subr.mxu0 0.0
  %445 = vmatpush1.msra.mxu0 0.0
  %446 = vmatprep.subr.mxu0 0.0
  %447 = vmatpush1.msra.mxu0 0.0
  %448 = vmatprep.subr.mxu0 0.0
  %449 = vmatpush1.msra.mxu0 0.0
  %450 = vmatprep.subr.mxu0 0.0
  %451 = vmatpush1.msra.mxu0 0.0
  %452 = vmatprep.subr.mxu0 0.0
  %453 = vmatpush1.msra.mxu0 0.0
  %454 = vmatprep.subr.mxu0 0.0
  %455 = vmatpush1.msra.mxu0 0.0
  %456 = vmatprep.subr.mxu0 0.0
  %457 = vmatpush1.msra.mxu0 0.0
  %458 = vmatprep.subr.mxu0 0.0
  %459 = vmatpush1.msra.mxu0 0.0
  %460 = vmatprep.subr.mxu0 0.0
  %461 = vmatpush1.msra.mxu0 0.0
  %462 = vmatprep.subr.mxu0 0.0
  %463 = vmatpush1.msra.mxu0 0.0
  %464 = vmatprep.subr.mxu0 0.0
  %465 = vmatpush1.msra.mxu0 0.0
  %466 = vmatprep.subr.mxu0 0.0
  %467 = vmatpush1.msra.mxu0 0.0
  %468 = vmatprep.subr.mxu0 0.0
  %469 = vmatpush1.msra.mxu0 0.0
  %470 = vmatprep.subr.mxu0 0.0
  %471 = vmatpush1.msra.mxu0 0.0
  %472 = vmatprep.subr.mxu0 0.0
  %473 = vmatpush1.msra.mxu0 0.0
  %474 = vmatprep.mubr.f32.mxu0 0.0
  %475 = vmatmul.mubr.f32.gmra.mrb[0].mxu0 %v317
  %v476 = vpop.f32.mrb[0].mxu0
  %v477 = vadd.f32 0.0, %v476
  %v478 = vpop.f32.mrb[0].mxu0
  %479 = vdwg.mxu0
  %481 = vrot.lane.b32.xlu0 %v409, 32
  %v482 = vpop.permute.xlu0 %481
  %v483 = vsel %vm315, %v482, 0
  %485 = vmatprep.subr.mxu0 0.0
  %486 = vmatpush1.msra.mxu0 %v306
  %487 = vmatprep.subr.mxu0 0.0
  %488 = vmatpush1.msra.mxu0 %v307
  %489 = vmatprep.subr.mxu0 0.0
  %490 = vmatpush1.msra.mxu0 %v308
  %491 = vmatprep.subr.mxu0 0.0
  %492 = vmatpush1.msra.mxu0 %v309
  %493 = vmatprep.subr.mxu0 0.0
  %494 = vmatpush1.msra.mxu0 0.0
  %495 = vmatprep.subr.mxu0 0.0
  %496 = vmatpush1.msra.mxu0 0.0
  %497 = vmatprep.subr.mxu0 0.0
  %498 = vmatpush1.msra.mxu0 0.0
  %499 = vmatprep.subr.mxu0 0.0
  %500 = vmatpush1.msra.mxu0 0.0
  %501 = vmatprep.subr.mxu0 0.0
  %502 = vmatpush1.msra.mxu0 0.0
  %503 = vmatprep.subr.mxu0 0.0
  %504 = vmatpush1.msra.mxu0 0.0
  %505 = vmatprep.subr.mxu0 0.0
  %506 = vmatpush1.msra.mxu0 0.0
  %507 = vmatprep.subr.mxu0 0.0
  %508 = vmatpush1.msra.mxu0 0.0
  %509 = vmatprep.subr.mxu0 0.0
  %510 = vmatpush1.msra.mxu0 0.0
  %511 = vmatprep.subr.mxu0 0.0
  %512 = vmatpush1.msra.mxu0 0.0
  %513 = vmatprep.subr.mxu0 0.0
  %514 = vmatpush1.msra.mxu0 0.0
  %515 = vmatprep.subr.mxu0 0.0
  %516 = vmatpush1.msra.mxu0 0.0
  %517 = vmatprep.subr.mxu0 0.0
  %518 = vmatpush1.msra.mxu0 0.0
  %519 = vmatprep.subr.mxu0 0.0
  %520 = vmatpush1.msra.mxu0 0.0
  %521 = vmatprep.subr.mxu0 0.0
  %522 = vmatpush1.msra.mxu0 0.0
  %523 = vmatprep.subr.mxu0 0.0
  %524 = vmatpush1.msra.mxu0 0.0
  %525 = vmatprep.subr.mxu0 0.0
  %526 = vmatpush1.msra.mxu0 0.0
  %527 = vmatprep.subr.mxu0 0.0
  %528 = vmatpush1.msra.mxu0 0.0
  %529 = vmatprep.subr.mxu0 0.0
  %530 = vmatpush1.msra.mxu0 0.0
  %531 = vmatprep.subr.mxu0 0.0
  %532 = vmatpush1.msra.mxu0 0.0
  %533 = vmatprep.subr.mxu0 0.0
  %534 = vmatpush1.msra.mxu0 0.0
  %535 = vmatprep.subr.mxu0 0.0
  %536 = vmatpush1.msra.mxu0 0.0
  %537 = vmatprep.subr.mxu0 0.0
  %538 = vmatpush1.msra.mxu0 0.0
  %539 = vmatprep.subr.mxu0 0.0
  %540 = vmatpush1.msra.mxu0 0.0
  %541 = vmatprep.subr.mxu0 0.0
  %542 = vmatpush1.msra.mxu0 0.0
  %543 = vmatprep.subr.mxu0 0.0
  %544 = vmatpush1.msra.mxu0 0.0
  %545 = vmatprep.subr.mxu0 0.0
  %546 = vmatpush1.msra.mxu0 0.0
  %547 = vmatprep.subr.mxu0 0.0
  %548 = vmatpush1.msra.mxu0 0.0
  %549 = vmatprep.mubr.f32.mxu0 0.0
  %550 = vmatmul.mubr.f32.gmra.mrb[0].mxu0 %v483
  %v551 = vpop.f32.mrb[0].mxu0
  %v552 = vadd.f32 %v477, %v551
  %v553 = vpop.f32.mrb[0].mxu0
  %554 = vdwg.mxu0
  %v555 = vlaneseq
  %v556 = vshrl.u32 %v555, 7
  %v557 = vsub.s32 0, %v556
  %v558 = vrot.slane %v314, %v557
  %v559 = vadd.f32 %v552, %v558
  %v560 = vtanh.pop %v559
  %v561 = vmul.f32 %v560, 0.5
  %v562 = vadd.f32 %v561, 0.5
  %v563 = vmul.f32 %v562, 0.0
  %565 = vrot.lane.b32.xlu0 %v560, 64
  %v566 = vpop.permute.xlu0 %565
  %v568 = vmul.f32 %v562, %v566
  %570 = vrot.lane.b32.xlu0 %v568, 32
  %v571 = vpop.permute.xlu0 %570
  %v573 = vadd.f32 %v563, %v571
  %v574 = vtanh.pop %v573
  %576 = vrot.lane.b32.xlu0 %v574, 64
  %v577 = vpop.permute.xlu0 %576
  %v579 = vmul.f32 %v562, %v577
  %581 = vrot.lane.b32.xlu0 %v579, 32
  %v582 = vpop.permute.xlu0 %581
  %584 = vst.msk [vmem:[#allocation2] sm:$0xff] %vm315, %v582
  %585 = vmatprep.subr.mxu0 0.0
  %586 = vmatpush1.msra.mxu0 %v302
  %587 = vmatprep.subr.mxu0 0.0
  %588 = vmatpush1.msra.mxu0 %v303
  %589 = vmatprep.subr.mxu0 0.0
  %590 = vmatpush1.msra.mxu0 %v304
  %591 = vmatprep.subr.mxu0 0.0
  %592 = vmatpush1.msra.mxu0 %v305
  %593 = vmatprep.subr.mxu0 0.0
  %594 = vmatpush1.msra.mxu0 0.0
  %595 = vmatprep.subr.mxu0 0.0
  %596 = vmatpush1.msra.mxu0 0.0
  %597 = vmatprep.subr.mxu0 0.0
  %598 = vmatpush1.msra.mxu0 0.0
  %599 = vmatprep.subr.mxu0 0.0
  %600 = vmatpush1.msra.mxu0 0.0
  %601 = vmatprep.subr.mxu0 0.0
  %602 = vmatpush1.msra.mxu0 0.0
  %603 = vmatprep.subr.mxu0 0.0
  %604 = vmatpush1.msra.mxu0 0.0
  %605 = vmatprep.subr.mxu0 0.0
  %606 = vmatpush1.msra.mxu0 0.0
  %607 = vmatprep.subr.mxu0 0.0
  %608 = vmatpush1.msra.mxu0 0.0
  %609 = vmatprep.subr.mxu0 0.0
  %610 = vmatpush1.msra.mxu0 0.0
  %611 = vmatprep.subr.mxu0 0.0
  %612 = vmatpush1.msra.mxu0 0.0
  %613 = vmatprep.subr.mxu0 0.0
  %614 = vmatpush1.msra.mxu0 0.0
  %615 = vmatprep.subr.mxu0 0.0
  %616 = vmatpush1.msra.mxu0 0.0
  %617 = vmatprep.subr.mxu0 0.0
  %618 = vmatpush1.msra.mxu0 0.0
  %619 = vmatprep.subr.mxu0 0.0
  %620 = vmatpush1.msra.mxu0 0.0
  %621 = vmatprep.subr.mxu0 0.0
  %622 = vmatpush1.msra.mxu0 0.0
  %623 = vmatprep.subr.mxu0 0.0
  %624 = vmatpush1.msra.mxu0 0.0
  %625 = vmatprep.subr.mxu0 0.0
  %626 = vmatpush1.msra.mxu0 0.0
  %627 = vmatprep.subr.mxu0 0.0
  %628 = vmatpush1.msra.mxu0 0.0
  %629 = vmatprep.subr.mxu0 0.0
  %630 = vmatpush1.msra.mxu0 0.0
  %631 = vmatprep.subr.mxu0 0.0
  %632 = vmatpush1.msra.mxu0 0.0
  %633 = vmatprep.subr.mxu0 0.0
  %634 = vmatpush1.msra.mxu0 0.0
  %635 = vmatprep.subr.mxu0 0.0
  %636 = vmatpush1.msra.mxu0 0.0
  %637 = vmatprep.subr.mxu0 0.0
  %638 = vmatpush1.msra.mxu0 0.0
  %639 = vmatprep.subr.mxu0 0.0
  %640 = vmatpush1.msra.mxu0 0.0
  %641 = vmatprep.subr.mxu0 0.0
  %642 = vmatpush1.msra.mxu0 0.0
  %643 = vmatprep.subr.mxu0 0.0
  %644 = vmatpush1.msra.mxu0 0.0
  %645 = vmatprep.subr.mxu0 0.0
  %646 = vmatpush1.msra.mxu0 0.0
  %647 = vmatprep.subr.mxu0 0.0
  %648 = vmatpush1.msra.mxu0 0.0
  %649 = vmatprep.mubr.f32.mxu0 0.0
  %650 = vmatmul.mubr.f32.gmra.mrb[0].mxu0 %v483
  %v651 = vpop.f32.mrb[0].mxu0
  %v652 = vadd.f32 0.0, %v651
  %v653 = vpop.f32.mrb[0].mxu0
  %654 = vdwg.mxu0
  %v655 = vadd.f32 %v269, %v652
  %v656 = vtanh.pop %v655
  %v657 = vmul.f32 %v656, 0.5
  %v658 = vadd.f32 %v657, 0.5
  %v659 = vmul.f32 %v658, %v403
  %661 = vrot.lane.b32.xlu0 %v656, 64
  %v662 = vpop.permute.xlu0 %661
  %v664 = vmul.f32 %v658, %v662
  %666 = vrot.lane.b32.xlu0 %v664, 32
  %v667 = vpop.permute.xlu0 %666
  %v669 = vadd.f32 %v659, %v667
  %v670 = vtanh.pop %v669
  %672 = vrot.lane.b32.xlu0 %v670, 64
  %v673 = vpop.permute.xlu0 %672
  %v675 = vmul.f32 %v658, %v673
  %v676 = vsel %vm315, %v582, 0
  %678 = vmatprep.subr.mxu0 0.0
  %679 = vmatpush1.msra.mxu0 %v310
  %680 = vmatprep.subr.mxu0 0.0
  %681 = vmatpush1.msra.mxu0 %v311
  %682 = vmatprep.subr.mxu0 0.0
  %683 = vmatpush1.msra.mxu0 %v312
  %684 = vmatprep.subr.mxu0 0.0
  %685 = vmatpush1.msra.mxu0 %v313
  %686 = vmatprep.subr.mxu0 0.0
  %687 = vmatpush1.msra.mxu0 0.0
  %688 = vmatprep.subr.mxu0 0.0
  %689 = vmatpush1.msra.mxu0 0.0
  %690 = vmatprep.subr.mxu0 0.0
  %691 = vmatpush1.msra.mxu0 0.0
  %692 = vmatprep.subr.mxu0 0.0
  %693 = vmatpush1.msra.mxu0 0.0
  %694 = vmatprep.subr.mxu0 0.0
  %695 = vmatpush1.msra.mxu0 0.0
  %696 = vmatprep.subr.mxu0 0.0
  %697 = vmatpush1.msra.mxu0 0.0
  %698 = vmatprep.subr.mxu0 0.0
  %699 = vmatpush1.msra.mxu0 0.0
  %700 = vmatprep.subr.mxu0 0.0
  %701 = vmatpush1.msra.mxu0 0.0
  %702 = vmatprep.subr.mxu0 0.0
  %703 = vmatpush1.msra.mxu0 0.0
  %704 = vmatprep.subr.mxu0 0.0
  %705 = vmatpush1.msra.mxu0 0.0
  %706 = vmatprep.subr.mxu0 0.0
  %707 = vmatpush1.msra.mxu0 0.0
  %708 = vmatprep.subr.mxu0 0.0
  %709 = vmatpush1.msra.mxu0 0.0
  %710 = vmatprep.subr.mxu0 0.0
  %711 = vmatpush1.msra.mxu0 0.0
  %712 = vmatprep.subr.mxu0 0.0
  %713 = vmatpush1.msra.mxu0 0.0
  %714 = vmatprep.subr.mxu0 0.0
  %715 = vmatpush1.msra.mxu0 0.0
  %716 = vmatprep.subr.mxu0 0.0
  %717 = vmatpush1.msra.mxu0 0.0
  %718 = vmatprep.subr.mxu0 0.0
  %719 = vmatpush1.msra.mxu0 0.0
  %720 = vmatprep.subr.mxu0 0.0
  %721 = vmatpush1.msra.mxu0 0.0
  %722 = vmatprep.subr.mxu0 0.0
  %723 = vmatpush1.msra.mxu0 0.0
  %724 = vmatprep.subr.mxu0 0.0
  %725 = vmatpush1.msra.mxu0 0.0
  %726 = vmatprep.subr.mxu0 0.0
  %727 = vmatpush1.msra.mxu0 0.0
  %728 = vmatprep.subr.mxu0 0.0
  %729 = vmatpush1.msra.mxu0 0.0
  %730 = vmatprep.subr.mxu0 0.0
  %731 = vmatpush1.msra.mxu0 0.0
  %732 = vmatprep.subr.mxu0 0.0
  %733 = vmatpush1.msra.mxu0 0.0
  %734 = vmatprep.subr.mxu0 0.0
  %735 = vmatpush1.msra.mxu0 0.0
  %736 = vmatprep.subr.mxu0 0.0
  %737 = vmatpush1.msra.mxu0 0.0
  %738 = vmatprep.subr.mxu0 0.0
  %739 = vmatpush1.msra.mxu0 0.0
  %740 = vmatprep.subr.mxu0 0.0
  %741 = vmatpush1.msra.mxu0 0.0
  %742 = vmatprep.mubr.f32.mxu0 0.0
  %743 = vmatmul.mubr.f32.gmra.mrb[0].mxu0 %v676
  %v744 = vpop.f32.mrb[0].mxu0
  %v745 = vadd.f32 0.0, %v744
  %v746 = vpop.f32.mrb[0].mxu0
  %747 = vdwg.mxu0
  %749 = vrot.lane.b32.xlu0 %v675, 32
  %v750 = vpop.permute.xlu0 %749
  %v751 = vsel %vm315, %v750, 0
  %753 = vmatprep.subr.mxu0 0.0
  %754 = vmatpush1.msra.mxu0 %v306
  %755 = vmatprep.subr.mxu0 0.0
  %756 = vmatpush1.msra.mxu0 %v307
  %757 = vmatprep.subr.mxu0 0.0
  %758 = vmatpush1.msra.mxu0 %v308
  %759 = vmatprep.subr.mxu0 0.0
  %760 = vmatpush1.msra.mxu0 %v309
  %761 = vmatprep.subr.mxu0 0.0
  %762 = vmatpush1.msra.mxu0 0.0
  %763 = vmatprep.subr.mxu0 0.0
  %764 = vmatpush1.msra.mxu0 0.0
  %765 = vmatprep.subr.mxu0 0.0
  %766 = vmatpush1.msra.mxu0 0.0
  %767 = vmatprep.subr.mxu0 0.0
  %768 = vmatpush1.msra.mxu0 0.0
  %769 = vmatprep.subr.mxu0 0.0
  %770 = vmatpush1.msra.mxu0 0.0
  %771 = vmatprep.subr.mxu0 0.0
  %772 = vmatpush1.msra.mxu0 0.0
  %773 = vmatprep.subr.mxu0 0.0
  %774 = vmatpush1.msra.mxu0 0.0
  %775 = vmatprep.subr.mxu0 0.0
  %776 = vmatpush1.msra.mxu0 0.0
  %777 = vmatprep.subr.mxu0 0.0
  %778 = vmatpush1.msra.mxu0 0.0
  %779 = vmatprep.subr.mxu0 0.0
  %780 = vmatpush1.msra.mxu0 0.0
  %781 = vmatprep.subr.mxu0 0.0
  %782 = vmatpush1.msra.mxu0 0.0
  %783 = vmatprep.subr.mxu0 0.0
  %784 = vmatpush1.msra.mxu0 0.0
  %785 = vmatprep.subr.mxu0 0.0
  %786 = vmatpush1.msra.mxu0 0.0
  %787 = vmatprep.subr.mxu0 0.0
  %788 = vmatpush1.msra.mxu0 0.0
  %789 = vmatprep.subr.mxu0 0.0
  %790 = vmatpush1.msra.mxu0 0.0
  %791 = vmatprep.subr.mxu0 0.0
  %792 = vmatpush1.msra.mxu0 0.0
  %793 = vmatprep.subr.mxu0 0.0
  %794 = vmatpush1.msra.mxu0 0.0
  %795 = vmatprep.subr.mxu0 0.0
  %796 = vmatpush1.msra.mxu0 0.0
  %797 = vmatprep.subr.mxu0 0.0
  %798 = vmatpush1.msra.mxu0 0.0
  %799 = vmatprep.subr.mxu0 0.0
  %800 = vmatpush1.msra.mxu0 0.0
  %801 = vmatprep.subr.mxu0 0.0
  %802 = vmatpush1.msra.mxu0 0.0
  %803 = vmatprep.subr.mxu0 0.0
  %804 = vmatpush1.msra.mxu0 0.0
  %805 = vmatprep.subr.mxu0 0.0
  %806 = vmatpush1.msra.mxu0 0.0
  %807 = vmatprep.subr.mxu0 0.0
  %808 = vmatpush1.msra.mxu0 0.0
  %809 = vmatprep.subr.mxu0 0.0
  %810 = vmatpush1.msra.mxu0 0.0
  %811 = vmatprep.subr.mxu0 0.0
  %812 = vmatpush1.msra.mxu0 0.0
  %813 = vmatprep.subr.mxu0 0.0
  %814 = vmatpush1.msra.mxu0 0.0
  %815 = vmatprep.subr.mxu0 0.0
  %816 = vmatpush1.msra.mxu0 0.0
  %817 = vmatprep.mubr.f32.mxu0 0.0
  %818 = vmatmul.mubr.f32.gmra.mrb[0].mxu0 %v751
  %v819 = vpop.f32.mrb[0].mxu0
  %v820 = vadd.f32 %v745, %v819
  %v821 = vpop.f32.mrb[0].mxu0
  %822 = vdwg.mxu0
  %v823 = vadd.f32 %v820, %v558
  %v824 = vtanh.pop %v823
  %v825 = vmul.f32 %v824, 0.5
  %v826 = vadd.f32 %v825, 0.5
  %v827 = vmul.f32 %v826, %v573
  %829 = vrot.lane.b32.xlu0 %v824, 64
  %v830 = vpop.permute.xlu0 %829
  %v832 = vmul.f32 %v826, %v830
  %834 = vrot.lane.b32.xlu0 %v832, 32
  %v835 = vpop.permute.xlu0 %834
  %v837 = vadd.f32 %v827, %v835
  %v838 = vtanh.pop %v837
  %840 = vrot.lane.b32.xlu0 %v838, 64
  %v841 = vpop.permute.xlu0 %840
  %v843 = vmul.f32 %v826, %v841
  %845 = vrot.lane.b32.xlu0 %v843, 32
  %v846 = vpop.permute.xlu0 %845
  %848 = vst.msk [vmem:[#allocation2 + $0x8] sm:$0xff] %vm315, %v846
  %849 = vmatprep.subr.mxu0 0.0
  %850 = vmatpush1.msra.mxu0 %v302
  %851 = vmatprep.subr.mxu0 0.0
  %852 = vmatpush1.msra.mxu0 %v303
  %853 = vmatprep.subr.mxu0 0.0
  %854 = vmatpush1.msra.mxu0 %v304
  %855 = vmatprep.subr.mxu0 0.0
  %856 = vmatpush1.msra.mxu0 %v305
  %857 = vmatprep.subr.mxu0 0.0
  %858 = vmatpush1.msra.mxu0 0.0
  %859 = vmatprep.subr.mxu0 0.0
  %860 = vmatpush1.msra.mxu0 0.0
  %861 = vmatprep.subr.mxu0 0.0
  %862 = vmatpush1.msra.mxu0 0.0
  %863 = vmatprep.subr.mxu0 0.0
  %864 = vmatpush1.msra.mxu0 0.0
  %865 = vmatprep.subr.mxu0 0.0
  %866 = vmatpush1.msra.mxu0 0.0
  %867 = vmatprep.subr.mxu0 0.0
  %868 = vmatpush1.msra.mxu0 0.0
  %869 = vmatprep.subr.mxu0 0.0
  %870 = vmatpush1.msra.mxu0 0.0
  %871 = vmatprep.subr.mxu0 0.0
  %872 = vmatpush1.msra.mxu0 0.0
  %873 = vmatprep.subr.mxu0 0.0
  %874 = vmatpush1.msra.mxu0 0.0
  %875 = vmatprep.subr.mxu0 0.0
  %876 = vmatpush1.msra.mxu0 0.0
  %877 = vmatprep.subr.mxu0 0.0
  %878 = vmatpush1.msra.mxu0 0.0
  %879 = vmatprep.subr.mxu0 0.0
  %880 = vmatpush1.msra.mxu0 0.0
  %881 = vmatprep.subr.mxu0 0.0
  %882 = vmatpush1.msra.mxu0 0.0
  %883 = vmatprep.subr.mxu0 0.0
  %884 = vmatpush1.msra.mxu0 0.0
  %885 = vmatprep.subr.mxu0 0.0
  %886 = vmatpush1.msra.mxu0 0.0
  %887 = vmatprep.subr.mxu0 0.0
  %888 = vmatpush1.msra.mxu0 0.0
  %889 = vmatprep.subr.mxu0 0.0
  %890 = vmatpush1.msra.mxu0 0.0
  %891 = vmatprep.subr.mxu0 0.0
  %892 = vmatpush1.msra.mxu0 0.0
  %893 = vmatprep.subr.mxu0 0.0
  %894 = vmatpush1.msra.mxu0 0.0
  %895 = vmatprep.subr.mxu0 0.0
  %896 = vmatpush1.msra.mxu0 0.0
  %897 = vmatprep.subr.mxu0 0.0
  %898 = vmatpush1.msra.mxu0 0.0
  %899 = vmatprep.subr.mxu0 0.0
  %900 = vmatpush1.msra.mxu0 0.0
  %901 = vmatprep.subr.mxu0 0.0
  %902 = vmatpush1.msra.mxu0 0.0
  %903 = vmatprep.subr.mxu0 0.0
  %904 = vmatpush1.msra.mxu0 0.0
  %905 = vmatprep.subr.mxu0 0.0
  %906 = vmatpush1.msra.mxu0 0.0
  %907 = vmatprep.subr.mxu0 0.0
  %908 = vmatpush1.msra.mxu0 0.0
  %909 = vmatprep.subr.mxu0 0.0
  %910 = vmatpush1.msra.mxu0 0.0
  %911 = vmatprep.subr.mxu0 0.0
  %912 = vmatpush1.msra.mxu0 0.0
  %913 = vmatprep.mubr.f32.mxu0 0.0
  %914 = vmatmul.mubr.f32.gmra.mrb[0].mxu0 %v751
  %v915 = vpop.f32.mrb[0].mxu0
  %v916 = vadd.f32 0.0, %v915
  %v917 = vpop.f32.mrb[0].mxu0
  %918 = vdwg.mxu0
  %v919 = vadd.f32 %v274, %v916
  %v920 = vtanh.pop %v919
  %v921 = vmul.f32 %v920, 0.5
  %v922 = vadd.f32 %v921, 0.5
  %v923 = vmul.f32 %v922, %v669
  %925 = vrot.lane.b32.xlu0 %v920, 64
  %v926 = vpop.permute.xlu0 %925
  %v928 = vmul.f32 %v922, %v926
  %930 = vrot.lane.b32.xlu0 %v928, 32
  %v931 = vpop.permute.xlu0 %930
  %v933 = vadd.f32 %v923, %v931
  %v934 = vtanh.pop %v933
  %936 = vrot.lane.b32.xlu0 %v934, 64
  %v937 = vpop.permute.xlu0 %936
  %v939 = vmul.f32 %v922, %v937
  %v940 = vsel %vm315, %v846, 0
  %942 = vmatprep.subr.mxu0 0.0
  %943 = vmatpush1.msra.mxu0 %v310
  %944 = vmatprep.subr.mxu0 0.0
  %945 = vmatpush1.msra.mxu0 %v311
  %946 = vmatprep.subr.mxu0 0.0
  %947 = vmatpush1.msra.mxu0 %v312
  %948 = vmatprep.subr.mxu0 0.0
  %949 = vmatpush1.msra.mxu0 %v313
  %950 = vmatprep.subr.mxu0 0.0
  %951 = vmatpush1.msra.mxu0 0.0
  %952 = vmatprep.subr.mxu0 0.0
  %953 = vmatpush1.msra.mxu0 0.0
  %954 = vmatprep.subr.mxu0 0.0
  %955 = vmatpush1.msra.mxu0 0.0
  %956 = vmatprep.subr.mxu0 0.0
  %957 = vmatpush1.msra.mxu0 0.0
  %958 = vmatprep.subr.mxu0 0.0
  %959 = vmatpush1.msra.mxu0 0.0
  %960 = vmatprep.subr.mxu0 0.0
  %961 = vmatpush1.msra.mxu0 0.0
  %962 = vmatprep.subr.mxu0 0.0
  %963 = vmatpush1.msra.mxu0 0.0
  %964 = vmatprep.subr.mxu0 0.0
  %965 = vmatpush1.msra.mxu0 0.0
  %966 = vmatprep.subr.mxu0 0.0
  %967 = vmatpush1.msra.mxu0 0.0
  %968 = vmatprep.subr.mxu0 0.0
  %969 = vmatpush1.msra.mxu0 0.0
  %970 = vmatprep.subr.mxu0 0.0
  %971 = vmatpush1.msra.mxu0 0.0
  %972 = vmatprep.subr.mxu0 0.0
  %973 = vmatpush1.msra.mxu0 0.0
  %974 = vmatprep.subr.mxu0 0.0
  %975 = vmatpush1.msra.mxu0 0.0
  %976 = vmatprep.subr.mxu0 0.0
  %977 = vmatpush1.msra.mxu0 0.0
  %978 = vmatprep.subr.mxu0 0.0
  %979 = vmatpush1.msra.mxu0 0.0
  %980 = vmatprep.subr.mxu0 0.0
  %981 = vmatpush1.msra.mxu0 0.0
  %982 = vmatprep.subr.mxu0 0.0
  %983 = vmatpush1.msra.mxu0 0.0
  %984 = vmatprep.subr.mxu0 0.0
  %985 = vmatpush1.msra.mxu0 0.0
  %986 = vmatprep.subr.mxu0 0.0
  %987 = vmatpush1.msra.mxu0 0.0
  %988 = vmatprep.subr.mxu0 0.0
  %989 = vmatpush1.msra.mxu0 0.0
  %990 = vmatprep.subr.mxu0 0.0
  %991 = vmatpush1.msra.mxu0 0.0
  %992 = vmatprep.subr.mxu0 0.0
  %993 = vmatpush1.msra.mxu0 0.0
  %994 = vmatprep.subr.mxu0 0.0
  %995 = vmatpush1.msra.mxu0 0.0
  %996 = vmatprep.subr.mxu0 0.0
  %997 = vmatpush1.msra.mxu0 0.0
  %998 = vmatprep.subr.mxu0 0.0
  %999 = vmatpush1.msra.mxu0 0.0
  %1000 = vmatprep.subr.mxu0 0.0
  %1001 = vmatpush1.msra.mxu0 0.0
  %1002 = vmatprep.subr.mxu0 0.0
  %1003 = vmatpush1.msra.mxu0 0.0
  %1004 = vmatprep.subr.mxu0 0.0
  %1005 = vmatpush1.msra.mxu0 0.0
  %1006 = vmatprep.mubr.f32.mxu0 0.0
  %1007 = vmatmul.mubr.f32.gmra.mrb[0].mxu0 %v940
  %v1008 = vpop.f32.mrb[0].mxu0
  %v1009 = vadd.f32 0.0, %v1008
  %v1010 = vpop.f32.mrb[0].mxu0
  %1011 = vdwg.mxu0
  %1013 = vrot.lane.b32.xlu0 %v939, 32
  %v1014 = vpop.permute.xlu0 %1013
  %v1015 = vsel %vm315, %v1014, 0
  %1017 = vmatprep.subr.mxu0 0.0
  %1018 = vmatpush1.msra.mxu0 %v306
  %1019 = vmatprep.subr.mxu0 0.0
  %1020 = vmatpush1.msra.mxu0 %v307
  %1021 = vmatprep.subr.mxu0 0.0
  %1022 = vmatpush1.msra.mxu0 %v308
  %1023 = vmatprep.subr.mxu0 0.0
  %1024 = vmatpush1.msra.mxu0 %v309
  %1025 = vmatprep.subr.mxu0 0.0
  %1026 = vmatpush1.msra.mxu0 0.0
  %1027 = vmatprep.subr.mxu0 0.0
  %1028 = vmatpush1.msra.mxu0 0.0
  %1029 = vmatprep.subr.mxu0 0.0
  %1030 = vmatpush1.msra.mxu0 0.0
  %1031 = vmatprep.subr.mxu0 0.0
  %1032 = vmatpush1.msra.mxu0 0.0
  %1033 = vmatprep.subr.mxu0 0.0
  %1034 = vmatpush1.msra.mxu0 0.0
  %1035 = vmatprep.subr.mxu0 0.0
  %1036 = vmatpush1.msra.mxu0 0.0
  %1037 = vmatprep.subr.mxu0 0.0
  %1038 = vmatpush1.msra.mxu0 0.0
  %1039 = vmatprep.subr.mxu0 0.0
  %1040 = vmatpush1.msra.mxu0 0.0
  %1041 = vmatprep.subr.mxu0 0.0
  %1042 = vmatpush1.msra.mxu0 0.0
  %1043 = vmatprep.subr.mxu0 0.0
  %1044 = vmatpush1.msra.mxu0 0.0
  %1045 = vmatprep.subr.mxu0 0.0
  %1046 = vmatpush1.msra.mxu0 0.0
  %1047 = vmatprep.subr.mxu0 0.0
  %1048 = vmatpush1.msra.mxu0 0.0
  %1049 = vmatprep.subr.mxu0 0.0
  %1050 = vmatpush1.msra.mxu0 0.0
  %1051 = vmatprep.subr.mxu0 0.0
  %1052 = vmatpush1.msra.mxu0 0.0
  %1053 = vmatprep.subr.mxu0 0.0
  %1054 = vmatpush1.msra.mxu0 0.0
  %1055 = vmatprep.subr.mxu0 0.0
  %1056 = vmatpush1.msra.mxu0 0.0
  %1057 = vmatprep.subr.mxu0 0.0
  %1058 = vmatpush1.msra.mxu0 0.0
  %1059 = vmatprep.subr.mxu0 0.0
  %1060 = vmatpush1.msra.mxu0 0.0
  %1061 = vmatprep.subr.mxu0 0.0
  %1062 = vmatpush1.msra.mxu0 0.0
  %1063 = vmatprep.subr.mxu0 0.0
  %1064 = vmatpush1.msra.mxu0 0.0
  %1065 = vmatprep.subr.mxu0 0.0
  %1066 = vmatpush1.msra.mxu0 0.0
  %1067 = vmatprep.subr.mxu0 0.0
  %1068 = vmatpush1.msra.mxu0 0.0
  %1069 = vmatprep.subr.mxu0 0.0
  %1070 = vmatpush1.msra.mxu0 0.0
  %1071 = vmatprep.subr.mxu0 0.0
  %1072 = vmatpush1.msra.mxu0 0.0
  %1073 = vmatprep.subr.mxu0 0.0
  %1074 = vmatpush1.msra.mxu0 0.0
  %1075 = vmatprep.subr.mxu0 0.0
  %1076 = vmatpush1.msra.mxu0 0.0
  %1077 = vmatprep.subr.mxu0 0.0
  %1078 = vmatpush1.msra.mxu0 0.0
  %1079 = vmatprep.subr.mxu0 0.0
  %1080 = vmatpush1.msra.mxu0 0.0
  %1081 = vmatprep.mubr.f32.mxu0 0.0
  %1082 = vmatmul.mubr.f32.gmra.mrb[0].mxu0 %v1015
  %v1083 = vpop.f32.mrb[0].mxu0
  %v1084 = vadd.f32 %v1009, %v1083
  %v1085 = vpop.f32.mrb[0].mxu0
  %1086 = vdwg.mxu0
  %v1087 = vadd.f32 %v1084, %v558
  %v1088 = vtanh.pop %v1087
  %v1089 = vmul.f32 %v1088, 0.5
  %v1090 = vadd.f32 %v1089, 0.5
  %v1091 = vmul.f32 %v1090, %v837
  %1093 = vrot.lane.b32.xlu0 %v1088, 64
  %v1094 = vpop.permute.xlu0 %1093
  %v1096 = vmul.f32 %v1090, %v1094
  %1098 = vrot.lane.b32.xlu0 %v1096, 32
  %v1099 = vpop.permute.xlu0 %1098
  %v1101 = vadd.f32 %v1091, %v1099
  %v1102 = vtanh.pop %v1101
  %1104 = vrot.lane.b32.xlu0 %v1102, 64
  %v1105 = vpop.permute.xlu0 %1104
  %v1107 = vmul.f32 %v1090, %v1105
  %1109 = vrot.lane.b32.xlu0 %v1107, 32
  %v1110 = vpop.permute.xlu0 %1109
  %1112 = vst.msk [vmem:[#allocation2 + $0x10] sm:$0xff] %vm315, %v1110
  %1113 = vmatprep.subr.mxu0 0.0
  %1114 = vmatpush1.msra.mxu0 %v302
  %1115 = vmatprep.subr.mxu0 0.0
  %1116 = vmatpush1.msra.mxu0 %v303
  %1117 = vmatprep.subr.mxu0 0.0
  %1118 = vmatpush1.msra.mxu0 %v304
  %1119 = vmatprep.subr.mxu0 0.0
  %1120 = vmatpush1.msra.mxu0 %v305
  %1121 = vmatprep.subr.mxu0 0.0
  %1122 = vmatpush1.msra.mxu0 0.0
  %1123 = vmatprep.subr.mxu0 0.0
  %1124 = vmatpush1.msra.mxu0 0.0
  %1125 = vmatprep.subr.mxu0 0.0
  %1126 = vmatpush1.msra.mxu0 0.0
  %1127 = vmatprep.subr.mxu0 0.0
  %1128 = vmatpush1.msra.mxu0 0.0
  %1129 = vmatprep.subr.mxu0 0.0
  %1130 = vmatpush1.msra.mxu0 0.0
  %1131 = vmatprep.subr.mxu0 0.0
  %1132 = vmatpush1.msra.mxu0 0.0
  %1133 = vmatprep.subr.mxu0 0.0
  %1134 = vmatpush1.msra.mxu0 0.0
  %1135 = vmatprep.subr.mxu0 0.0
  %1136 = vmatpush1.msra.mxu0 0.0
  %1137 = vmatprep.subr.mxu0 0.0
  %1138 = vmatpush1.msra.mxu0 0.0
  %1139 = vmatprep.subr.mxu0 0.0
  %1140 = vmatpush1.msra.mxu0 0.0
  %1141 = vmatprep.subr.mxu0 0.0
  %1142 = vmatpush1.msra.mxu0 0.0
  %1143 = vmatprep.subr.mxu0 0.0
  %1144 = vmatpush1.msra.mxu0 0.0
  %1145 = vmatprep.subr.mxu0 0.0
  %1146 = vmatpush1.msra.mxu0 0.0
  %1147 = vmatprep.subr.mxu0 0.0
  %1148 = vmatpush1.msra.mxu0 0.0
  %1149 = vmatprep.subr.mxu0 0.0
  %1150 = vmatpush1.msra.mxu0 0.0
  %1151 = vmatprep.subr.mxu0 0.0
  %1152 = vmatpush1.msra.mxu0 0.0
  %1153 = vmatprep.subr.mxu0 0.0
  %1154 = vmatpush1.msra.mxu0 0.0
  %1155 = vmatprep.subr.mxu0 0.0
  %1156 = vmatpush1.msra.mxu0 0.0
  %1157 = vmatprep.subr.mxu0 0.0
  %1158 = vmatpush1.msra.mxu0 0.0
  %1159 = vmatprep.subr.mxu0 0.0
  %1160 = vmatpush1.msra.mxu0 0.0
  %1161 = vmatprep.subr.mxu0 0.0
  %1162 = vmatpush1.msra.mxu0 0.0
  %1163 = vmatprep.subr.mxu0 0.0
  %1164 = vmatpush1.msra.mxu0 0.0
  %1165 = vmatprep.subr.mxu0 0.0
  %1166 = vmatpush1.msra.mxu0 0.0
  %1167 = vmatprep.subr.mxu0 0.0
  %1168 = vmatpush1.msra.mxu0 0.0
  %1169 = vmatprep.subr.mxu0 0.0
  %1170 = vmatpush1.msra.mxu0 0.0
  %1171 = vmatprep.subr.mxu0 0.0
  %1172 = vmatpush1.msra.mxu0 0.0
  %1173 = vmatprep.subr.mxu0 0.0
  %1174 = vmatpush1.msra.mxu0 0.0
  %1175 = vmatprep.subr.mxu0 0.0
  %1176 = vmatpush1.msra.mxu0 0.0
  %1177 = vmatprep.mubr.f32.mxu0 0.0
  %1178 = vmatmul.mubr.f32.gmra.mrb[0].mxu0 %v1015
  %v1179 = vpop.f32.mrb[0].mxu0
  %v1180 = vadd.f32 0.0, %v1179
  %v1181 = vpop.f32.mrb[0].mxu0
  %1182 = vdwg.mxu0
  %v1183 = vadd.f32 %v279, %v1180
  %v1184 = vtanh.pop %v1183
  %v1185 = vmul.f32 %v1184, 0.5
  %v1186 = vadd.f32 %v1185, 0.5
  %v1187 = vmul.f32 %v1186, %v933
  %1189 = vrot.lane.b32.xlu0 %v1184, 64
  %v1190 = vpop.permute.xlu0 %1189
  %v1192 = vmul.f32 %v1186, %v1190
  %1194 = vrot.lane.b32.xlu0 %v1192, 32
  %v1195 = vpop.permute.xlu0 %1194
  %v1197 = vadd.f32 %v1187, %v1195
  %v1198 = vtanh.pop %v1197
  %1200 = vrot.lane.b32.xlu0 %v1198, 64
  %v1201 = vpop.permute.xlu0 %1200
  %v1203 = vmul.f32 %v1186, %v1201
  %v1204 = vsel %vm315, %v1110, 0
  %1206 = vmatprep.subr.mxu0 0.0
  %1207 = vmatpush1.msra.mxu0 %v310
  %1208 = vmatprep.subr.mxu0 0.0
  %1209 = vmatpush1.msra.mxu0 %v311
  %1210 = vmatprep.subr.mxu0 0.0
  %1211 = vmatpush1.msra.mxu0 %v312
  %1212 = vmatprep.subr.mxu0 0.0
  %1213 = vmatpush1.msra.mxu0 %v313
  %1214 = vmatprep.subr.mxu0 0.0
  %1215 = vmatpush1.msra.mxu0 0.0
  %1216 = vmatprep.subr.mxu0 0.0
  %1217 = vmatpush1.msra.mxu0 0.0
  %1218 = vmatprep.subr.mxu0 0.0
  %1219 = vmatpush1.msra.mxu0 0.0
  %1220 = vmatprep.subr.mxu0 0.0
  %1221 = vmatpush1.msra.mxu0 0.0
  %1222 = vmatprep.subr.mxu0 0.0
  %1223 = vmatpush1.msra.mxu0 0.0
  %1224 = vmatprep.subr.mxu0 0.0
  %1225 = vmatpush1.msra.mxu0 0.0
  %1226 = vmatprep.subr.mxu0 0.0
  %1227 = vmatpush1.msra.mxu0 0.0
  %1228 = vmatprep.subr.mxu0 0.0
  %1229 = vmatpush1.msra.mxu0 0.0
  %1230 = vmatprep.subr.mxu0 0.0
  %1231 = vmatpush1.msra.mxu0 0.0
  %1232 = vmatprep.subr.mxu0 0.0
  %1233 = vmatpush1.msra.mxu0 0.0
  %1234 = vmatprep.subr.mxu0 0.0
  %1235 = vmatpush1.msra.mxu0 0.0
  %1236 = vmatprep.subr.mxu0 0.0
  %1237 = vmatpush1.msra.mxu0 0.0
  %1238 = vmatprep.subr.mxu0 0.0
  %1239 = vmatpush1.msra.mxu0 0.0
  %1240 = vmatprep.subr.mxu0 0.0
  %1241 = vmatpush1.msra.mxu0 0.0
  %1242 = vmatprep.subr.mxu0 0.0
  %1243 = vmatpush1.msra.mxu0 0.0
  %1244 = vmatprep.subr.mxu0 0.0
  %1245 = vmatpush1.msra.mxu0 0.0
  %1246 = vmatprep.subr.mxu0 0.0
  %1247 = vmatpush1.msra.mxu0 0.0
  %1248 = vmatprep.subr.mxu0 0.0
  %1249 = vmatpush1.msra.mxu0 0.0
  %1250 = vmatprep.subr.mxu0 0.0
  %1251 = vmatpush1.msra.mxu0 0.0
  %1252 = vmatprep.subr.mxu0 0.0
  %1253 = vmatpush1.msra.mxu0 0.0
  %1254 = vmatprep.subr.mxu0 0.0
  %1255 = vmatpush1.msra.mxu0 0.0
  %1256 = vmatprep.subr.mxu0 0.0
  %1257 = vmatpush1.msra.mxu0 0.0
  %1258 = vmatprep.subr.mxu0 0.0
  %1259 = vmatpush1.msra.mxu0 0.0
  %1260 = vmatprep.subr.mxu0 0.0
  %1261 = vmatpush1.msra.mxu0 0.0
  %1262 = vmatprep.subr.mxu0 0.0
  %1263 = vmatpush1.msra.mxu0 0.0
  %1264 = vmatprep.subr.mxu0 0.0
  %1265 = vmatpush1.msra.mxu0 0.0
  %1266 = vmatprep.subr.mxu0 0.0
  %1267 = vmatpush1.msra.mxu0 0.0
  %1268 = vmatprep.subr.mxu0 0.0
  %1269 = vmatpush1.msra.mxu0 0.0
  %1270 = vmatprep.mubr.f32.mxu0 0.0
  %1271 = vmatmul.mubr.f32.gmra.mrb[0].mxu0 %v1204
  %v1272 = vpop.f32.mrb[0].mxu0
  %v1273 = vadd.f32 0.0, %v1272
  %v1274 = vpop.f32.mrb[0].mxu0
  %1275 = vdwg.mxu0
  %1277 = vrot.lane.b32.xlu0 %v1203, 32
  %v1278 = vpop.permute.xlu0 %1277
  %v1279 = vsel %vm315, %v1278, 0
  %1281 = vmatprep.subr.mxu0 0.0
  %1282 = vmatpush1.msra.mxu0 %v306
  %1283 = vmatprep.subr.mxu0 0.0
  %1284 = vmatpush1.msra.mxu0 %v307
  %1285 = vmatprep.subr.mxu0 0.0
  %1286 = vmatpush1.msra.mxu0 %v308
  %1287 = vmatprep.subr.mxu0 0.0
  %1288 = vmatpush1.msra.mxu0 %v309
  %1289 = vmatprep.subr.mxu0 0.0
  %1290 = vmatpush1.msra.mxu0 0.0
  %1291 = vmatprep.subr.mxu0 0.0
  %1292 = vmatpush1.msra.mxu0 0.0
  %1293 = vmatprep.subr.mxu0 0.0
  %1294 = vmatpush1.msra.mxu0 0.0
  %1295 = vmatprep.subr.mxu0 0.0
  %1296 = vmatpush1.msra.mxu0 0.0
  %1297 = vmatprep.subr.mxu0 0.0
  %1298 = vmatpush1.msra.mxu0 0.0
  %1299 = vmatprep.subr.mxu0 0.0
  %1300 = vmatpush1.msra.mxu0 0.0
  %1301 = vmatprep.subr.mxu0 0.0
  %1302 = vmatpush1.msra.mxu0 0.0
  %1303 = vmatprep.subr.mxu0 0.0
  %1304 = vmatpush1.msra.mxu0 0.0
  %1305 = vmatprep.subr.mxu0 0.0
  %1306 = vmatpush1.msra.mxu0 0.0
  %1307 = vmatprep.subr.mxu0 0.0
  %1308 = vmatpush1.msra.mxu0 0.0
  %1309 = vmatprep.subr.mxu0 0.0
  %1310 = vmatpush1.msra.mxu0 0.0
  %1311 = vmatprep.subr.mxu0 0.0
  %1312 = vmatpush1.msra.mxu0 0.0
  %1313 = vmatprep.subr.mxu0 0.0
  %1314 = vmatpush1.msra.mxu0 0.0
  %1315 = vmatprep.subr.mxu0 0.0
  %1316 = vmatpush1.msra.mxu0 0.0
  %1317 = vmatprep.subr.mxu0 0.0
  %1318 = vmatpush1.msra.mxu0 0.0
  %1319 = vmatprep.subr.mxu0 0.0
  %1320 = vmatpush1.msra.mxu0 0.0
  %1321 = vmatprep.subr.mxu0 0.0
  %1322 = vmatpush1.msra.mxu0 0.0
  %1323 = vmatprep.subr.mxu0 0.0
  %1324 = vmatpush1.msra.mxu0 0.0
  %1325 = vmatprep.subr.mxu0 0.0
  %1326 = vmatpush1.msra.mxu0 0.0
  %1327 = vmatprep.subr.mxu0 0.0
  %1328 = vmatpush1.msra.mxu0 0.0
  %1329 = vmatprep.subr.mxu0 0.0
  %1330 = vmatpush1.msra.mxu0 0.0
  %1331 = vmatprep.subr.mxu0 0.0
  %1332 = vmatpush1.msra.mxu0 0.0
  %1333 = vmatprep.subr.mxu0 0.0
  %1334 = vmatpush1.msra.mxu0 0.0
  %1335 = vmatprep.subr.mxu0 0.0
  %1336 = vmatpush1.msra.mxu0 0.0
  %1337 = vmatprep.subr.mxu0 0.0
  %1338 = vmatpush1.msra.mxu0 0.0
  %1339 = vmatprep.subr.mxu0 0.0
  %1340 = vmatpush1.msra.mxu0 0.0
  %1341 = vmatprep.subr.mxu0 0.0
  %1342 = vmatpush1.msra.mxu0 0.0
  %1343 = vmatprep.subr.mxu0 0.0
  %1344 = vmatpush1.msra.mxu0 0.0
  %1345 = vmatprep.mubr.f32.mxu0 0.0
  %1346 = vmatmul.mubr.f32.gmra.mrb[0].mxu0 %v1279
  %v1347 = vpop.f32.mrb[0].mxu0
  %v1348 = vadd.f32 %v1273, %v1347
  %v1349 = vpop.f32.mrb[0].mxu0
  %1350 = vdwg.mxu0
  %v1351 = vadd.f32 %v1348, %v558
  %v1352 = vtanh.pop %v1351
  %v1353 = vmul.f32 %v1352, 0.5
  %v1354 = vadd.f32 %v1353, 0.5
  %v1355 = vmul.f32 %v1354, %v1101
  %1357 = vrot.lane.b32.xlu0 %v1352, 64
  %v1358 = vpop.permute.xlu0 %1357
  %v1360 = vmul.f32 %v1354, %v1358
  %1362 = vrot.lane.b32.xlu0 %v1360, 32
  %v1363 = vpop.permute.xlu0 %1362
  %v1365 = vadd.f32 %v1355, %v1363
  %v1366 = vtanh.pop %v1365
  %1368 = vrot.lane.b32.xlu0 %v1366, 64
  %v1369 = vpop.permute.xlu0 %1368
  %v1371 = vmul.f32 %v1354, %v1369
  %1373 = vrot.lane.b32.xlu0 %v1371, 32
  %v1374 = vpop.permute.xlu0 %1373
  %1376 = vst.msk [vmem:[#allocation2 + $0x18] sm:$0xff] %vm315, %v1374
  %1377 = vmatprep.subr.mxu0 0.0
  %1378 = vmatpush1.msra.mxu0 %v302
  %1379 = vmatprep.subr.mxu0 0.0
  %1380 = vmatpush1.msra.mxu0 %v303
  %1381 = vmatprep.subr.mxu0 0.0
  %1382 = vmatpush1.msra.mxu0 %v304
  %1383 = vmatprep.subr.mxu0 0.0
  %1384 = vmatpush1.msra.mxu0 %v305
  %1385 = vmatprep.subr.mxu0 0.0
  %1386 = vmatpush1.msra.mxu0 0.0
  %1387 = vmatprep.subr.mxu0 0.0
  %1388 = vmatpush1.msra.mxu0 0.0
  %1389 = vmatprep.subr.mxu0 0.0
  %1390 = vmatpush1.msra.mxu0 0.0
  %1391 = vmatprep.subr.mxu0 0.0
  %1392 = vmatpush1.msra.mxu0 0.0
  %1393 = vmatprep.subr.mxu0 0.0
  %1394 = vmatpush1.msra.mxu0 0.0
  %1395 = vmatprep.subr.mxu0 0.0
  %1396 = vmatpush1.msra.mxu0 0.0
  %1397 = vmatprep.subr.mxu0 0.0
  %1398 = vmatpush1.msra.mxu0 0.0
  %1399 = vmatprep.subr.mxu0 0.0
  %1400 = vmatpush1.msra.mxu0 0.0
  %1401 = vmatprep.subr.mxu0 0.0
  %1402 = vmatpush1.msra.mxu0 0.0
  %1403 = vmatprep.subr.mxu0 0.0
  %1404 = vmatpush1.msra.mxu0 0.0
  %1405 = vmatprep.subr.mxu0 0.0
  %1406 = vmatpush1.msra.mxu0 0.0
  %1407 = vmatprep.subr.mxu0 0.0
  %1408 = vmatpush1.msra.mxu0 0.0
  %1409 = vmatprep.subr.mxu0 0.0
  %1410 = vmatpush1.msra.mxu0 0.0
  %1411 = vmatprep.subr.mxu0 0.0
  %1412 = vmatpush1.msra.mxu0 0.0
  %1413 = vmatprep.subr.mxu0 0.0
  %1414 = vmatpush1.msra.mxu0 0.0
  %1415 = vmatprep.subr.mxu0 0.0
  %1416 = vmatpush1.msra.mxu0 0.0
  %1417 = vmatprep.subr.mxu0 0.0
  %1418 = vmatpush1.msra.mxu0 0.0
  %1419 = vmatprep.subr.mxu0 0.0
  %1420 = vmatpush1.msra.mxu0 0.0
  %1421 = vmatprep.subr.mxu0 0.0
  %1422 = vmatpush1.msra.mxu0 0.0
  %1423 = vmatprep.subr.mxu0 0.0
  %1424 = vmatpush1.msra.mxu0 0.0
  %1425 = vmatprep.subr.mxu0 0.0
  %1426 = vmatpush1.msra.mxu0 0.0
  %1427 = vmatprep.subr.mxu0 0.0
  %1428 = vmatpush1.msra.mxu0 0.0
  %1429 = vmatprep.subr.mxu0 0.0
  %1430 = vmatpush1.msra.mxu0 0.0
  %1431 = vmatprep.subr.mxu0 0.0
  %1432 = vmatpush1.msra.mxu0 0.0
  %1433 = vmatprep.subr.mxu0 0.0
  %1434 = vmatpush1.msra.mxu0 0.0
  %1435 = vmatprep.subr.mxu0 0.0
  %1436 = vmatpush1.msra.mxu0 0.0
  %1437 = vmatprep.subr.mxu0 0.0
  %1438 = vmatpush1.msra.mxu0 0.0
  %1439 = vmatprep.subr.mxu0 0.0
  %1440 = vmatpush1.msra.mxu0 0.0
  %1441 = vmatprep.mubr.f32.mxu0 0.0
  %1442 = vmatmul.mubr.f32.gmra.mrb[0].mxu0 %v1279
  %v1443 = vpop.f32.mrb[0].mxu0
  %v1444 = vadd.f32 0.0, %v1443
  %v1445 = vpop.f32.mrb[0].mxu0
  %1446 = vdwg.mxu0
  %v1447 = vadd.f32 %v284, %v1444
  %v1448 = vtanh.pop %v1447
  %v1449 = vmul.f32 %v1448, 0.5
  %v1450 = vadd.f32 %v1449, 0.5
  %v1451 = vmul.f32 %v1450, %v1197
  %1453 = vrot.lane.b32.xlu0 %v1448, 64
  %v1454 = vpop.permute.xlu0 %1453
  %v1456 = vmul.f32 %v1450, %v1454
  %1458 = vrot.lane.b32.xlu0 %v1456, 32
  %v1459 = vpop.permute.xlu0 %1458
  %v1461 = vadd.f32 %v1451, %v1459
  %v1462 = vtanh.pop %v1461
  %1464 = vrot.lane.b32.xlu0 %v1462, 64
  %v1465 = vpop.permute.xlu0 %1464
  %v1467 = vmul.f32 %v1450, %v1465
  %v1468 = vsel %vm315, %v1374, 0
  %1470 = vmatprep.subr.mxu0 0.0
  %1471 = vmatpush1.msra.mxu0 %v310
  %1472 = vmatprep.subr.mxu0 0.0
  %1473 = vmatpush1.msra.mxu0 %v311
  %1474 = vmatprep.subr.mxu0 0.0
  %1475 = vmatpush1.msra.mxu0 %v312
  %1476 = vmatprep.subr.mxu0 0.0
  %1477 = vmatpush1.msra.mxu0 %v313
  %1478 = vmatprep.subr.mxu0 0.0
  %1479 = vmatpush1.msra.mxu0 0.0
  %1480 = vmatprep.subr.mxu0 0.0
  %1481 = vmatpush1.msra.mxu0 0.0
  %1482 = vmatprep.subr.mxu0 0.0
  %1483 = vmatpush1.msra.mxu0 0.0
  %1484 = vmatprep.subr.mxu0 0.0
  %1485 = vmatpush1.msra.mxu0 0.0
  %1486 = vmatprep.subr.mxu0 0.0
  %1487 = vmatpush1.msra.mxu0 0.0
  %1488 = vmatprep.subr.mxu0 0.0
  %1489 = vmatpush1.msra.mxu0 0.0
  %1490 = vmatprep.subr.mxu0 0.0
  %1491 = vmatpush1.msra.mxu0 0.0
  %1492 = vmatprep.subr.mxu0 0.0
  %1493 = vmatpush1.msra.mxu0 0.0
  %1494 = vmatprep.subr.mxu0 0.0
  %1495 = vmatpush1.msra.mxu0 0.0
  %1496 = vmatprep.subr.mxu0 0.0
  %1497 = vmatpush1.msra.mxu0 0.0
  %1498 = vmatprep.subr.mxu0 0.0
  %1499 = vmatpush1.msra.mxu0 0.0
  %1500 = vmatprep.subr.mxu0 0.0
  %1501 = vmatpush1.msra.mxu0 0.0
  %1502 = vmatprep.subr.mxu0 0.0
  %1503 = vmatpush1.msra.mxu0 0.0
  %1504 = vmatprep.subr.mxu0 0.0
  %1505 = vmatpush1.msra.mxu0 0.0
  %1506 = vmatprep.subr.mxu0 0.0
  %1507 = vmatpush1.msra.mxu0 0.0
  %1508 = vmatprep.subr.mxu0 0.0
  %1509 = vmatpush1.msra.mxu0 0.0
  %1510 = vmatprep.subr.mxu0 0.0
  %1511 = vmatpush1.msra.mxu0 0.0
  %1512 = vmatprep.subr.mxu0 0.0
  %1513 = vmatpush1.msra.mxu0 0.0
  %1514 = vmatprep.subr.mxu0 0.0
  %1515 = vmatpush1.msra.mxu0 0.0
  %1516 = vmatprep.subr.mxu0 0.0
  %1517 = vmatpush1.msra.mxu0 0.0
  %1518 = vmatprep.subr.mxu0 0.0
  %1519 = vmatpush1.msra.mxu0 0.0
  %1520 = vmatprep.subr.mxu0 0.0
  %1521 = vmatpush1.msra.mxu0 0.0
  %1522 = vmatprep.subr.mxu0 0.0
  %1523 = vmatpush1.msra.mxu0 0.0
  %1524 = vmatprep.subr.mxu0 0.0
  %1525 = vmatpush1.msra.mxu0 0.0
  %1526 = vmatprep.subr.mxu0 0.0
  %1527 = vmatpush1.msra.mxu0 0.0
  %1528 = vmatprep.subr.mxu0 0.0
  %1529 = vmatpush1.msra.mxu0 0.0
  %1530 = vmatprep.subr.mxu0 0.0
  %1531 = vmatpush1.msra.mxu0 0.0
  %1532 = vmatprep.subr.mxu0 0.0
  %1533 = vmatpush1.msra.mxu0 0.0
  %1534 = vmatprep.mubr.f32.mxu0 0.0
  %1535 = vmatmul.mubr.f32.gmra.mrb[0].mxu0 %v1468
  %v1536 = vpop.f32.mrb[0].mxu0
  %v1537 = vadd.f32 0.0, %v1536
  %v1538 = vpop.f32.mrb[0].mxu0
  %1539 = vdwg.mxu0
  %1541 = vrot.lane.b32.xlu0 %v1467, 32
  %v1542 = vpop.permute.xlu0 %1541
  %v1543 = vsel %vm315, %v1542, 0
  %1545 = vmatprep.subr.mxu0 0.0
  %1546 = vmatpush1.msra.mxu0 %v306
  %1547 = vmatprep.subr.mxu0 0.0
  %1548 = vmatpush1.msra.mxu0 %v307
  %1549 = vmatprep.subr.mxu0 0.0
  %1550 = vmatpush1.msra.mxu0 %v308
  %1551 = vmatprep.subr.mxu0 0.0
  %1552 = vmatpush1.msra.mxu0 %v309
  %1553 = vmatprep.subr.mxu0 0.0
  %1554 = vmatpush1.msra.mxu0 0.0
  %1555 = vmatprep.subr.mxu0 0.0
  %1556 = vmatpush1.msra.mxu0 0.0
  %1557 = vmatprep.subr.mxu0 0.0
  %1558 = vmatpush1.msra.mxu0 0.0
  %1559 = vmatprep.subr.mxu0 0.0
  %1560 = vmatpush1.msra.mxu0 0.0
  %1561 = vmatprep.subr.mxu0 0.0
  %1562 = vmatpush1.msra.mxu0 0.0
  %1563 = vmatprep.subr.mxu0 0.0
  %1564 = vmatpush1.msra.mxu0 0.0
  %1565 = vmatprep.subr.mxu0 0.0
  %1566 = vmatpush1.msra.mxu0 0.0
  %1567 = vmatprep.subr.mxu0 0.0
  %1568 = vmatpush1.msra.mxu0 0.0
  %1569 = vmatprep.subr.mxu0 0.0
  %1570 = vmatpush1.msra.mxu0 0.0
  %1571 = vmatprep.subr.mxu0 0.0
  %1572 = vmatpush1.msra.mxu0 0.0
  %1573 = vmatprep.subr.mxu0 0.0
  %1574 = vmatpush1.msra.mxu0 0.0
  %1575 = vmatprep.subr.mxu0 0.0
  %1576 = vmatpush1.msra.mxu0 0.0
  %1577 = vmatprep.subr.mxu0 0.0
  %1578 = vmatpush1.msra.mxu0 0.0
  %1579 = vmatprep.subr.mxu0 0.0
  %1580 = vmatpush1.msra.mxu0 0.0
  %1581 = vmatprep.subr.mxu0 0.0
  %1582 = vmatpush1.msra.mxu0 0.0
  %1583 = vmatprep.subr.mxu0 0.0
  %1584 = vmatpush1.msra.mxu0 0.0
  %1585 = vmatprep.subr.mxu0 0.0
  %1586 = vmatpush1.msra.mxu0 0.0
  %1587 = vmatprep.subr.mxu0 0.0
  %1588 = vmatpush1.msra.mxu0 0.0
  %1589 = vmatprep.subr.mxu0 0.0
  %1590 = vmatpush1.msra.mxu0 0.0
  %1591 = vmatprep.subr.mxu0 0.0
  %1592 = vmatpush1.msra.mxu0 0.0
  %1593 = vmatprep.subr.mxu0 0.0
  %1594 = vmatpush1.msra.mxu0 0.0
  %1595 = vmatprep.subr.mxu0 0.0
  %1596 = vmatpush1.msra.mxu0 0.0
  %1597 = vmatprep.subr.mxu0 0.0
  %1598 = vmatpush1.msra.mxu0 0.0
  %1599 = vmatprep.subr.mxu0 0.0
  %1600 = vmatpush1.msra.mxu0 0.0
  %1601 = vmatprep.subr.mxu0 0.0
  %1602 = vmatpush1.msra.mxu0 0.0
  %1603 = vmatprep.subr.mxu0 0.0
  %1604 = vmatpush1.msra.mxu0 0.0
  %1605 = vmatprep.subr.mxu0 0.0
  %1606 = vmatpush1.msra.mxu0 0.0
  %1607 = vmatprep.subr.mxu0 0.0
  %1608 = vmatpush1.msra.mxu0 0.0
  %1609 = vmatprep.mubr.f32.mxu0 0.0
  %1610 = vmatmul.mubr.f32.gmra.mrb[0].mxu0 %v1543
  %v1611 = vpop.f32.mrb[0].mxu0
  %v1612 = vadd.f32 %v1537, %v1611
  %v1613 = vpop.f32.mrb[0].mxu0
  %1614 = vdwg.mxu0
  %v1615 = vadd.f32 %v1612, %v558
  %v1616 = vtanh.pop %v1615
  %v1617 = vmul.f32 %v1616, 0.5
  %v1618 = vadd.f32 %v1617, 0.5
  %v1619 = vmul.f32 %v1618, %v1365
  %1621 = vrot.lane.b32.xlu0 %v1616, 64
  %v1622 = vpop.permute.xlu0 %1621
  %v1624 = vmul.f32 %v1618, %v1622
  %1626 = vrot.lane.b32.xlu0 %v1624, 32
  %v1627 = vpop.permute.xlu0 %1626
  %v1629 = vadd.f32 %v1619, %v1627
  %v1630 = vtanh.pop %v1629
  %1632 = vrot.lane.b32.xlu0 %v1630, 64
  %v1633 = vpop.permute.xlu0 %1632
  %v1635 = vmul.f32 %v1618, %v1633
  %1637 = vrot.lane.b32.xlu0 %v1635, 32
  %v1638 = vpop.permute.xlu0 %1637
  %1640 = vst.msk [vmem:[#allocation2 + $0x20] sm:$0xff] %vm315, %v1638
  %1641 = vmatprep.subr.mxu0 0.0
  %1642 = vmatpush1.msra.mxu0 %v302
  %1643 = vmatprep.subr.mxu0 0.0
  %1644 = vmatpush1.msra.mxu0 %v303
  %1645 = vmatprep.subr.mxu0 0.0
  %1646 = vmatpush1.msra.mxu0 %v304
  %1647 = vmatprep.subr.mxu0 0.0
  %1648 = vmatpush1.msra.mxu0 %v305
  %1649 = vmatprep.subr.mxu0 0.0
  %1650 = vmatpush1.msra.mxu0 0.0
  %1651 = vmatprep.subr.mxu0 0.0
  %1652 = vmatpush1.msra.mxu0 0.0
  %1653 = vmatprep.subr.mxu0 0.0
  %1654 = vmatpush1.msra.mxu0 0.0
  %1655 = vmatprep.subr.mxu0 0.0
  %1656 = vmatpush1.msra.mxu0 0.0
  %1657 = vmatprep.subr.mxu0 0.0
  %1658 = vmatpush1.msra.mxu0 0.0
  %1659 = vmatprep.subr.mxu0 0.0
  %1660 = vmatpush1.msra.mxu0 0.0
  %1661 = vmatprep.subr.mxu0 0.0
  %1662 = vmatpush1.msra.mxu0 0.0
  %1663 = vmatprep.subr.mxu0 0.0
  %1664 = vmatpush1.msra.mxu0 0.0
  %1665 = vmatprep.subr.mxu0 0.0
  %1666 = vmatpush1.msra.mxu0 0.0
  %1667 = vmatprep.subr.mxu0 0.0
  %1668 = vmatpush1.msra.mxu0 0.0
  %1669 = vmatprep.subr.mxu0 0.0
  %1670 = vmatpush1.msra.mxu0 0.0
  %1671 = vmatprep.subr.mxu0 0.0
  %1672 = vmatpush1.msra.mxu0 0.0
  %1673 = vmatprep.subr.mxu0 0.0
  %1674 = vmatpush1.msra.mxu0 0.0
  %1675 = vmatprep.subr.mxu0 0.0
  %1676 = vmatpush1.msra.mxu0 0.0
  %1677 = vmatprep.subr.mxu0 0.0
  %1678 = vmatpush1.msra.mxu0 0.0
  %1679 = vmatprep.subr.mxu0 0.0
  %1680 = vmatpush1.msra.mxu0 0.0
  %1681 = vmatprep.subr.mxu0 0.0
  %1682 = vmatpush1.msra.mxu0 0.0
  %1683 = vmatprep.subr.mxu0 0.0
  %1684 = vmatpush1.msra.mxu0 0.0
  %1685 = vmatprep.subr.mxu0 0.0
  %1686 = vmatpush1.msra.mxu0 0.0
  %1687 = vmatprep.subr.mxu0 0.0
  %1688 = vmatpush1.msra.mxu0 0.0
  %1689 = vmatprep.subr.mxu0 0.0
  %1690 = vmatpush1.msra.mxu0 0.0
  %1691 = vmatprep.subr.mxu0 0.0
  %1692 = vmatpush1.msra.mxu0 0.0
  %1693 = vmatprep.subr.mxu0 0.0
  %1694 = vmatpush1.msra.mxu0 0.0
  %1695 = vmatprep.subr.mxu0 0.0
  %1696 = vmatpush1.msra.mxu0 0.0
  %1697 = vmatprep.subr.mxu0 0.0
  %1698 = vmatpush1.msra.mxu0 0.0
  %1699 = vmatprep.subr.mxu0 0.0
  %1700 = vmatpush1.msra.mxu0 0.0
  %1701 = vmatprep.subr.mxu0 0.0
  %1702 = vmatpush1.msra.mxu0 0.0
  %1703 = vmatprep.subr.mxu0 0.0
  %1704 = vmatpush1.msra.mxu0 0.0
  %1705 = vmatprep.mubr.f32.mxu0 0.0
  %1706 = vmatmul.mubr.f32.gmra.mrb[0].mxu0 %v1543
  %v1707 = vpop.f32.mrb[0].mxu0
  %v1708 = vadd.f32 0.0, %v1707
  %v1709 = vpop.f32.mrb[0].mxu0
  %1710 = vdwg.mxu0
  %v1711 = vadd.f32 %v289, %v1708
  %v1712 = vtanh.pop %v1711
  %v1713 = vmul.f32 %v1712, 0.5
  %v1714 = vadd.f32 %v1713, 0.5
  %v1715 = vmul.f32 %v1714, %v1461
  %1717 = vrot.lane.b32.xlu0 %v1712, 64
  %v1718 = vpop.permute.xlu0 %1717
  %v1720 = vmul.f32 %v1714, %v1718
  %1722 = vrot.lane.b32.xlu0 %v1720, 32
  %v1723 = vpop.permute.xlu0 %1722
  %v1725 = vadd.f32 %v1715, %v1723
  %v1726 = vtanh.pop %v1725
  %1728 = vrot.lane.b32.xlu0 %v1726, 64
  %v1729 = vpop.permute.xlu0 %1728
  %v1731 = vmul.f32 %v1714, %v1729
  %v1732 = vsel %vm315, %v1638, 0
  %1734 = vmatprep.subr.mxu0 0.0
  %1735 = vmatpush1.msra.mxu0 %v310
  %1736 = vmatprep.subr.mxu0 0.0
  %1737 = vmatpush1.msra.mxu0 %v311
  %1738 = vmatprep.subr.mxu0 0.0
  %1739 = vmatpush1.msra.mxu0 %v312
  %1740 = vmatprep.subr.mxu0 0.0
  %1741 = vmatpush1.msra.mxu0 %v313
  %1742 = vmatprep.subr.mxu0 0.0
  %1743 = vmatpush1.msra.mxu0 0.0
  %1744 = vmatprep.subr.mxu0 0.0
  %1745 = vmatpush1.msra.mxu0 0.0
  %1746 = vmatprep.subr.mxu0 0.0
  %1747 = vmatpush1.msra.mxu0 0.0
  %1748 = vmatprep.subr.mxu0 0.0
  %1749 = vmatpush1.msra.mxu0 0.0
  %1750 = vmatprep.subr.mxu0 0.0
  %1751 = vmatpush1.msra.mxu0 0.0
  %1752 = vmatprep.subr.mxu0 0.0
  %1753 = vmatpush1.msra.mxu0 0.0
  %1754 = vmatprep.subr.mxu0 0.0
  %1755 = vmatpush1.msra.mxu0 0.0
  %1756 = vmatprep.subr.mxu0 0.0
  %1757 = vmatpush1.msra.mxu0 0.0
  %1758 = vmatprep.subr.mxu0 0.0
  %1759 = vmatpush1.msra.mxu0 0.0
  %1760 = vmatprep.subr.mxu0 0.0
  %1761 = vmatpush1.msra.mxu0 0.0
  %1762 = vmatprep.subr.mxu0 0.0
  %1763 = vmatpush1.msra.mxu0 0.0
  %1764 = vmatprep.subr.mxu0 0.0
  %1765 = vmatpush1.msra.mxu0 0.0
  %1766 = vmatprep.subr.mxu0 0.0
  %1767 = vmatpush1.msra.mxu0 0.0
  %1768 = vmatprep.subr.mxu0 0.0
  %1769 = vmatpush1.msra.mxu0 0.0
  %1770 = vmatprep.subr.mxu0 0.0
  %1771 = vmatpush1.msra.mxu0 0.0
  %1772 = vmatprep.subr.mxu0 0.0
  %1773 = vmatpush1.msra.mxu0 0.0
  %1774 = vmatprep.subr.mxu0 0.0
  %1775 = vmatpush1.msra.mxu0 0.0
  %1776 = vmatprep.subr.mxu0 0.0
  %1777 = vmatpush1.msra.mxu0 0.0
  %1778 = vmatprep.subr.mxu0 0.0
  %1779 = vmatpush1.msra.mxu0 0.0
  %1780 = vmatprep.subr.mxu0 0.0
  %1781 = vmatpush1.msra.mxu0 0.0
  %1782 = vmatprep.subr.mxu0 0.0
  %1783 = vmatpush1.msra.mxu0 0.0
  %1784 = vmatprep.subr.mxu0 0.0
  %1785 = vmatpush1.msra.mxu0 0.0
  %1786 = vmatprep.subr.mxu0 0.0
  %1787 = vmatpush1.msra.mxu0 0.0
  %1788 = vmatprep.subr.mxu0 0.0
  %1789 = vmatpush1.msra.mxu0 0.0
  %1790 = vmatprep.subr.mxu0 0.0
  %1791 = vmatpush1.msra.mxu0 0.0
  %1792 = vmatprep.subr.mxu0 0.0
  %1793 = vmatpush1.msra.mxu0 0.0
  %1794 = vmatprep.subr.mxu0 0.0
  %1795 = vmatpush1.msra.mxu0 0.0
  %1796 = vmatprep.subr.mxu0 0.0
  %1797 = vmatpush1.msra.mxu0 0.0
  %1798 = vmatprep.mubr.f32.mxu0 0.0
  %1799 = vmatmul.mubr.f32.gmra.mrb[0].mxu0 %v1732
  %v1800 = vpop.f32.mrb[0].mxu0
  %v1801 = vadd.f32 0.0, %v1800
  %v1802 = vpop.f32.mrb[0].mxu0
  %1803 = vdwg.mxu0
  %1805 = vrot.lane.b32.xlu0 %v1731, 32
  %v1806 = vpop.permute.xlu0 %1805
  %v1807 = vsel %vm315, %v1806, 0
  %1809 = vmatprep.subr.mxu0 0.0
  %1810 = vmatpush1.msra.mxu0 %v306
  %1811 = vmatprep.subr.mxu0 0.0
  %1812 = vmatpush1.msra.mxu0 %v307
  %1813 = vmatprep.subr.mxu0 0.0
  %1814 = vmatpush1.msra.mxu0 %v308
  %1815 = vmatprep.subr.mxu0 0.0
  %1816 = vmatpush1.msra.mxu0 %v309
  %1817 = vmatprep.subr.mxu0 0.0
  %1818 = vmatpush1.msra.mxu0 0.0
  %1819 = vmatprep.subr.mxu0 0.0
  %1820 = vmatpush1.msra.mxu0 0.0
  %1821 = vmatprep.subr.mxu0 0.0
  %1822 = vmatpush1.msra.mxu0 0.0
  %1823 = vmatprep.subr.mxu0 0.0
  %1824 = vmatpush1.msra.mxu0 0.0
  %1825 = vmatprep.subr.mxu0 0.0
  %1826 = vmatpush1.msra.mxu0 0.0
  %1827 = vmatprep.subr.mxu0 0.0
  %1828 = vmatpush1.msra.mxu0 0.0
  %1829 = vmatprep.subr.mxu0 0.0
  %1830 = vmatpush1.msra.mxu0 0.0
  %1831 = vmatprep.subr.mxu0 0.0
  %1832 = vmatpush1.msra.mxu0 0.0
  %1833 = vmatprep.subr.mxu0 0.0
  %1834 = vmatpush1.msra.mxu0 0.0
  %1835 = vmatprep.subr.mxu0 0.0
  %1836 = vmatpush1.msra.mxu0 0.0
  %1837 = vmatprep.subr.mxu0 0.0
  %1838 = vmatpush1.msra.mxu0 0.0
  %1839 = vmatprep.subr.mxu0 0.0
  %1840 = vmatpush1.msra.mxu0 0.0
  %1841 = vmatprep.subr.mxu0 0.0
  %1842 = vmatpush1.msra.mxu0 0.0
  %1843 = vmatprep.subr.mxu0 0.0
  %1844 = vmatpush1.msra.mxu0 0.0
  %1845 = vmatprep.subr.mxu0 0.0
  %1846 = vmatpush1.msra.mxu0 0.0
  %1847 = vmatprep.subr.mxu0 0.0
  %1848 = vmatpush1.msra.mxu0 0.0
  %1849 = vmatprep.subr.mxu0 0.0
  %1850 = vmatpush1.msra.mxu0 0.0
  %1851 = vmatprep.subr.mxu0 0.0
  %1852 = vmatpush1.msra.mxu0 0.0
  %1853 = vmatprep.subr.mxu0 0.0
  %1854 = vmatpush1.msra.mxu0 0.0
  %1855 = vmatprep.subr.mxu0 0.0
  %1856 = vmatpush1.msra.mxu0 0.0
  %1857 = vmatprep.subr.mxu0 0.0
  %1858 = vmatpush1.msra.mxu0 0.0
  %1859 = vmatprep.subr.mxu0 0.0
  %1860 = vmatpush1.msra.mxu0 0.0
  %1861 = vmatprep.subr.mxu0 0.0
  %1862 = vmatpush1.msra.mxu0 0.0
  %1863 = vmatprep.subr.mxu0 0.0
  %1864 = vmatpush1.msra.mxu0 0.0
  %1865 = vmatprep.subr.mxu0 0.0
  %1866 = vmatpush1.msra.mxu0 0.0
  %1867 = vmatprep.subr.mxu0 0.0
  %1868 = vmatpush1.msra.mxu0 0.0
  %1869 = vmatprep.subr.mxu0 0.0
  %1870 = vmatpush1.msra.mxu0 0.0
  %1871 = vmatprep.subr.mxu0 0.0
  %1872 = vmatpush1.msra.mxu0 0.0
  %1873 = vmatprep.mubr.f32.mxu0 0.0
  %1874 = vmatmul.mubr.f32.gmra.mrb[0].mxu0 %v1807
  %v1875 = vpop.f32.mrb[0].mxu0
  %v1876 = vadd.f32 %v1801, %v1875
  %v1877 = vpop.f32.mrb[0].mxu0
  %1878 = vdwg.mxu0
  %v1879 = vadd.f32 %v1876, %v558
  %v1880 = vtanh.pop %v1879
  %v1881 = vmul.f32 %v1880, 0.5
  %v1882 = vadd.f32 %v1881, 0.5
  %v1883 = vmul.f32 %v1882, %v1629
  %1885 = vrot.lane.b32.xlu0 %v1880, 64
  %v1886 = vpop.permute.xlu0 %1885
  %v1888 = vmul.f32 %v1882, %v1886
  %1890 = vrot.lane.b32.xlu0 %v1888, 32
  %v1891 = vpop.permute.xlu0 %1890
  %v1893 = vadd.f32 %v1883, %v1891
  %v1894 = vtanh.pop %v1893
  %1896 = vrot.lane.b32.xlu0 %v1894, 64
  %v1897 = vpop.permute.xlu0 %1896
  %v1899 = vmul.f32 %v1882, %v1897
  %1901 = vrot.lane.b32.xlu0 %v1899, 32
  %v1902 = vpop.permute.xlu0 %1901
  %1904 = vst.msk [vmem:[#allocation2 + $0x28] sm:$0xff] %vm315, %v1902
  %1905 = vmatprep.subr.mxu0 0.0
  %1906 = vmatpush1.msra.mxu0 %v302
  %1907 = vmatprep.subr.mxu0 0.0
  %1908 = vmatpush1.msra.mxu0 %v303
  %1909 = vmatprep.subr.mxu0 0.0
  %1910 = vmatpush1.msra.mxu0 %v304
  %1911 = vmatprep.subr.mxu0 0.0
  %1912 = vmatpush1.msra.mxu0 %v305
  %1913 = vmatprep.subr.mxu0 0.0
  %1914 = vmatpush1.msra.mxu0 0.0
  %1915 = vmatprep.subr.mxu0 0.0
  %1916 = vmatpush1.msra.mxu0 0.0
  %1917 = vmatprep.subr.mxu0 0.0
  %1918 = vmatpush1.msra.mxu0 0.0
  %1919 = vmatprep.subr.mxu0 0.0
  %1920 = vmatpush1.msra.mxu0 0.0
  %1921 = vmatprep.subr.mxu0 0.0
  %1922 = vmatpush1.msra.mxu0 0.0
  %1923 = vmatprep.subr.mxu0 0.0
  %1924 = vmatpush1.msra.mxu0 0.0
  %1925 = vmatprep.subr.mxu0 0.0
  %1926 = vmatpush1.msra.mxu0 0.0
  %1927 = vmatprep.subr.mxu0 0.0
  %1928 = vmatpush1.msra.mxu0 0.0
  %1929 = vmatprep.subr.mxu0 0.0
  %1930 = vmatpush1.msra.mxu0 0.0
  %1931 = vmatprep.subr.mxu0 0.0
  %1932 = vmatpush1.msra.mxu0 0.0
  %1933 = vmatprep.subr.mxu0 0.0
  %1934 = vmatpush1.msra.mxu0 0.0
  %1935 = vmatprep.subr.mxu0 0.0
  %1936 = vmatpush1.msra.mxu0 0.0
  %1937 = vmatprep.subr.mxu0 0.0
  %1938 = vmatpush1.msra.mxu0 0.0
  %1939 = vmatprep.subr.mxu0 0.0
  %1940 = vmatpush1.msra.mxu0 0.0
  %1941 = vmatprep.subr.mxu0 0.0
  %1942 = vmatpush1.msra.mxu0 0.0
  %1943 = vmatprep.subr.mxu0 0.0
  %1944 = vmatpush1.msra.mxu0 0.0
  %1945 = vmatprep.subr.mxu0 0.0
  %1946 = vmatpush1.msra.mxu0 0.0
  %1947 = vmatprep.subr.mxu0 0.0
  %1948 = vmatpush1.msra.mxu0 0.0
  %1949 = vmatprep.subr.mxu0 0.0
  %1950 = vmatpush1.msra.mxu0 0.0
  %1951 = vmatprep.subr.mxu0 0.0
  %1952 = vmatpush1.msra.mxu0 0.0
  %1953 = vmatprep.subr.mxu0 0.0
  %1954 = vmatpush1.msra.mxu0 0.0
  %1955 = vmatprep.subr.mxu0 0.0
  %1956 = vmatpush1.msra.mxu0 0.0
  %1957 = vmatprep.subr.mxu0 0.0
  %1958 = vmatpush1.msra.mxu0 0.0
  %1959 = vmatprep.subr.mxu0 0.0
  %1960 = vmatpush1.msra.mxu0 0.0
  %1961 = vmatprep.subr.mxu0 0.0
  %1962 = vmatpush1.msra.mxu0 0.0
  %1963 = vmatprep.subr.mxu0 0.0
  %1964 = vmatpush1.msra.mxu0 0.0
  %1965 = vmatprep.subr.mxu0 0.0
  %1966 = vmatpush1.msra.mxu0 0.0
  %1967 = vmatprep.subr.mxu0 0.0
  %1968 = vmatpush1.msra.mxu0 0.0
  %1969 = vmatprep.mubr.f32.mxu0 0.0
  %1970 = vmatmul.mubr.f32.gmra.mrb[0].mxu0 %v1807
  %v1971 = vpop.f32.mrb[0].mxu0
  %v1972 = vadd.f32 0.0, %v1971
  %v1973 = vpop.f32.mrb[0].mxu0
  %1974 = vdwg.mxu0
  %v1975 = vadd.f32 %v294, %v1972
  %v1976 = vtanh.pop %v1975
  %v1977 = vmul.f32 %v1976, 0.5
  %v1978 = vadd.f32 %v1977, 0.5
  %v1979 = vmul.f32 %v1978, %v1725
  %1981 = vrot.lane.b32.xlu0 %v1976, 64
  %v1982 = vpop.permute.xlu0 %1981
  %v1984 = vmul.f32 %v1978, %v1982
  %1986 = vrot.lane.b32.xlu0 %v1984, 32
  %v1987 = vpop.permute.xlu0 %1986
  %v1989 = vadd.f32 %v1979, %v1987
  %v1990 = vtanh.pop %v1989
  %1992 = vrot.lane.b32.xlu0 %v1990, 64
  %v1993 = vpop.permute.xlu0 %1992
  %v1995 = vmul.f32 %v1978, %v1993
  %v1996 = vsel %vm315, %v1902, 0
  %1998 = vmatprep.subr.mxu0 0.0
  %1999 = vmatpush1.msra.mxu0 %v310
  %2000 = vmatprep.subr.mxu0 0.0
  %2001 = vmatpush1.msra.mxu0 %v311
  %2002 = vmatprep.subr.mxu0 0.0
  %2003 = vmatpush1.msra.mxu0 %v312
  %2004 = vmatprep.subr.mxu0 0.0
  %2005 = vmatpush1.msra.mxu0 %v313
  %2006 = vmatprep.subr.mxu0 0.0
  %2007 = vmatpush1.msra.mxu0 0.0
  %2008 = vmatprep.subr.mxu0 0.0
  %2009 = vmatpush1.msra.mxu0 0.0
  %2010 = vmatprep.subr.mxu0 0.0
  %2011 = vmatpush1.msra.mxu0 0.0
  %2012 = vmatprep.subr.mxu0 0.0
  %2013 = vmatpush1.msra.mxu0 0.0
  %2014 = vmatprep.subr.mxu0 0.0
  %2015 = vmatpush1.msra.mxu0 0.0
  %2016 = vmatprep.subr.mxu0 0.0
  %2017 = vmatpush1.msra.mxu0 0.0
  %2018 = vmatprep.subr.mxu0 0.0
  %2019 = vmatpush1.msra.mxu0 0.0
  %2020 = vmatprep.subr.mxu0 0.0
  %2021 = vmatpush1.msra.mxu0 0.0
  %2022 = vmatprep.subr.mxu0 0.0
  %2023 = vmatpush1.msra.mxu0 0.0
  %2024 = vmatprep.subr.mxu0 0.0
  %2025 = vmatpush1.msra.mxu0 0.0
  %2026 = vmatprep.subr.mxu0 0.0
  %2027 = vmatpush1.msra.mxu0 0.0
  %2028 = vmatprep.subr.mxu0 0.0
  %2029 = vmatpush1.msra.mxu0 0.0
  %2030 = vmatprep.subr.mxu0 0.0
  %2031 = vmatpush1.msra.mxu0 0.0
  %2032 = vmatprep.subr.mxu0 0.0
  %2033 = vmatpush1.msra.mxu0 0.0
  %2034 = vmatprep.subr.mxu0 0.0
  %2035 = vmatpush1.msra.mxu0 0.0
  %2036 = vmatprep.subr.mxu0 0.0
  %2037 = vmatpush1.msra.mxu0 0.0
  %2038 = vmatprep.subr.mxu0 0.0
  %2039 = vmatpush1.msra.mxu0 0.0
  %2040 = vmatprep.subr.mxu0 0.0
  %2041 = vmatpush1.msra.mxu0 0.0
  %2042 = vmatprep.subr.mxu0 0.0
  %2043 = vmatpush1.msra.mxu0 0.0
  %2044 = vmatprep.subr.mxu0 0.0
  %2045 = vmatpush1.msra.mxu0 0.0
  %2046 = vmatprep.subr.mxu0 0.0
  %2047 = vmatpush1.msra.mxu0 0.0
  %2048 = vmatprep.subr.mxu0 0.0
  %2049 = vmatpush1.msra.mxu0 0.0
  %2050 = vmatprep.subr.mxu0 0.0
  %2051 = vmatpush1.msra.mxu0 0.0
  %2052 = vmatprep.subr.mxu0 0.0
  %2053 = vmatpush1.msra.mxu0 0.0
  %2054 = vmatprep.subr.mxu0 0.0
  %2055 = vmatpush1.msra.mxu0 0.0
  %2056 = vmatprep.subr.mxu0 0.0
  %2057 = vmatpush1.msra.mxu0 0.0
  %2058 = vmatprep.subr.mxu0 0.0
  %2059 = vmatpush1.msra.mxu0 0.0
  %2060 = vmatprep.subr.mxu0 0.0
  %2061 = vmatpush1.msra.mxu0 0.0
  %2062 = vmatprep.mubr.f32.mxu0 0.0
  %2063 = vmatmul.mubr.f32.gmra.mrb[0].mxu0 %v1996
  %v2064 = vpop.f32.mrb[0].mxu0
  %v2065 = vadd.f32 0.0, %v2064
  %v2066 = vpop.f32.mrb[0].mxu0
  %2067 = vdwg.mxu0
  %2069 = vrot.lane.b32.xlu0 %v1995, 32
  %v2070 = vpop.permute.xlu0 %2069
  %v2071 = vsel %vm315, %v2070, 0
  %2073 = vmatprep.subr.mxu0 0.0
  %2074 = vmatpush1.msra.mxu0 %v306
  %2075 = vmatprep.subr.mxu0 0.0
  %2076 = vmatpush1.msra.mxu0 %v307
  %2077 = vmatprep.subr.mxu0 0.0
  %2078 = vmatpush1.msra.mxu0 %v308
  %2079 = vmatprep.subr.mxu0 0.0
  %2080 = vmatpush1.msra.mxu0 %v309
  %2081 = vmatprep.subr.mxu0 0.0
  %2082 = vmatpush1.msra.mxu0 0.0
  %2083 = vmatprep.subr.mxu0 0.0
  %2084 = vmatpush1.msra.mxu0 0.0
  %2085 = vmatprep.subr.mxu0 0.0
  %2086 = vmatpush1.msra.mxu0 0.0
  %2087 = vmatprep.subr.mxu0 0.0
  %2088 = vmatpush1.msra.mxu0 0.0
  %2089 = vmatprep.subr.mxu0 0.0
  %2090 = vmatpush1.msra.mxu0 0.0
  %2091 = vmatprep.subr.mxu0 0.0
  %2092 = vmatpush1.msra.mxu0 0.0
  %2093 = vmatprep.subr.mxu0 0.0
  %2094 = vmatpush1.msra.mxu0 0.0
  %2095 = vmatprep.subr.mxu0 0.0
  %2096 = vmatpush1.msra.mxu0 0.0
  %2097 = vmatprep.subr.mxu0 0.0
  %2098 = vmatpush1.msra.mxu0 0.0
  %2099 = vmatprep.subr.mxu0 0.0
  %2100 = vmatpush1.msra.mxu0 0.0
  %2101 = vmatprep.subr.mxu0 0.0
  %2102 = vmatpush1.msra.mxu0 0.0
  %2103 = vmatprep.subr.mxu0 0.0
  %2104 = vmatpush1.msra.mxu0 0.0
  %2105 = vmatprep.subr.mxu0 0.0
  %2106 = vmatpush1.msra.mxu0 0.0
  %2107 = vmatprep.subr.mxu0 0.0
  %2108 = vmatpush1.msra.mxu0 0.0
  %2109 = vmatprep.subr.mxu0 0.0
  %2110 = vmatpush1.msra.mxu0 0.0
  %2111 = vmatprep.subr.mxu0 0.0
  %2112 = vmatpush1.msra.mxu0 0.0
  %2113 = vmatprep.subr.mxu0 0.0
  %2114 = vmatpush1.msra.mxu0 0.0
  %2115 = vmatprep.subr.mxu0 0.0
  %2116 = vmatpush1.msra.mxu0 0.0
  %2117 = vmatprep.subr.mxu0 0.0
  %2118 = vmatpush1.msra.mxu0 0.0
  %2119 = vmatprep.subr.mxu0 0.0
  %2120 = vmatpush1.msra.mxu0 0.0
  %2121 = vmatprep.subr.mxu0 0.0
  %2122 = vmatpush1.msra.mxu0 0.0
  %2123 = vmatprep.subr.mxu0 0.0
  %2124 = vmatpush1.msra.mxu0 0.0
  %2125 = vmatprep.subr.mxu0 0.0
  %2126 = vmatpush1.msra.mxu0 0.0
  %2127 = vmatprep.subr.mxu0 0.0
  %2128 = vmatpush1.msra.mxu0 0.0
  %2129 = vmatprep.subr.mxu0 0.0
  %2130 = vmatpush1.msra.mxu0 0.0
  %2131 = vmatprep.subr.mxu0 0.0
  %2132 = vmatpush1.msra.mxu0 0.0
  %2133 = vmatprep.subr.mxu0 0.0
  %2134 = vmatpush1.msra.mxu0 0.0
  %2135 = vmatprep.subr.mxu0 0.0
  %2136 = vmatpush1.msra.mxu0 0.0
  %2137 = vmatprep.mubr.f32.mxu0 0.0
  %2138 = vmatmul.mubr.f32.gmra.mrb[0].mxu0 %v2071
  %v2139 = vpop.f32.mrb[0].mxu0
  %v2140 = vadd.f32 %v2065, %v2139
  %v2141 = vpop.f32.mrb[0].mxu0
  %2142 = vdwg.mxu0
  %v2143 = vadd.f32 %v2140, %v558
  %v2144 = vtanh.pop %v2143
  %v2145 = vmul.f32 %v2144, 0.5
  %v2146 = vadd.f32 %v2145, 0.5
  %v2147 = vmul.f32 %v2146, %v1893
  %2149 = vrot.lane.b32.xlu0 %v2144, 64
  %v2150 = vpop.permute.xlu0 %2149
  %v2152 = vmul.f32 %v2146, %v2150
  %2154 = vrot.lane.b32.xlu0 %v2152, 32
  %v2155 = vpop.permute.xlu0 %2154
  %v2157 = vadd.f32 %v2147, %v2155
  %v2158 = vtanh.pop %v2157
  %2160 = vrot.lane.b32.xlu0 %v2158, 64
  %v2161 = vpop.permute.xlu0 %2160
  %v2163 = vmul.f32 %v2146, %v2161
  %2165 = vrot.lane.b32.xlu0 %v2163, 32
  %v2166 = vpop.permute.xlu0 %2165
  %2168 = vst.msk [vmem:[#allocation2 + $0x30] sm:$0xff] %vm315, %v2166
  %2169 = vmatprep.subr.mxu0 0.0
  %2170 = vmatpush1.msra.mxu0 %v302
  %2171 = vmatprep.subr.mxu0 0.0
  %2172 = vmatpush1.msra.mxu0 %v303
  %2173 = vmatprep.subr.mxu0 0.0
  %2174 = vmatpush1.msra.mxu0 %v304
  %2175 = vmatprep.subr.mxu0 0.0
  %2176 = vmatpush1.msra.mxu0 %v305
  %2177 = vmatprep.subr.mxu0 0.0
  %2178 = vmatpush1.msra.mxu0 0.0
  %2179 = vmatprep.subr.mxu0 0.0
  %2180 = vmatpush1.msra.mxu0 0.0
  %2181 = vmatprep.subr.mxu0 0.0
  %2182 = vmatpush1.msra.mxu0 0.0
  %2183 = vmatprep.subr.mxu0 0.0
  %2184 = vmatpush1.msra.mxu0 0.0
  %2185 = vmatprep.subr.mxu0 0.0
  %2186 = vmatpush1.msra.mxu0 0.0
  %2187 = vmatprep.subr.mxu0 0.0
  %2188 = vmatpush1.msra.mxu0 0.0
  %2189 = vmatprep.subr.mxu0 0.0
  %2190 = vmatpush1.msra.mxu0 0.0
  %2191 = vmatprep.subr.mxu0 0.0
  %2192 = vmatpush1.msra.mxu0 0.0
  %2193 = vmatprep.subr.mxu0 0.0
  %2194 = vmatpush1.msra.mxu0 0.0
  %2195 = vmatprep.subr.mxu0 0.0
  %2196 = vmatpush1.msra.mxu0 0.0
  %2197 = vmatprep.subr.mxu0 0.0
  %2198 = vmatpush1.msra.mxu0 0.0
  %2199 = vmatprep.subr.mxu0 0.0
  %2200 = vmatpush1.msra.mxu0 0.0
  %2201 = vmatprep.subr.mxu0 0.0
  %2202 = vmatpush1.msra.mxu0 0.0
  %2203 = vmatprep.subr.mxu0 0.0
  %2204 = vmatpush1.msra.mxu0 0.0
  %2205 = vmatprep.subr.mxu0 0.0
  %2206 = vmatpush1.msra.mxu0 0.0
  %2207 = vmatprep.subr.mxu0 0.0
  %2208 = vmatpush1.msra.mxu0 0.0
  %2209 = vmatprep.subr.mxu0 0.0
  %2210 = vmatpush1.msra.mxu0 0.0
  %2211 = vmatprep.subr.mxu0 0.0
  %2212 = vmatpush1.msra.mxu0 0.0
  %2213 = vmatprep.subr.mxu0 0.0
  %2214 = vmatpush1.msra.mxu0 0.0
  %2215 = vmatprep.subr.mxu0 0.0
  %2216 = vmatpush1.msra.mxu0 0.0
  %2217 = vmatprep.subr.mxu0 0.0
  %2218 = vmatpush1.msra.mxu0 0.0
  %2219 = vmatprep.subr.mxu0 0.0
  %2220 = vmatpush1.msra.mxu0 0.0
  %2221 = vmatprep.subr.mxu0 0.0
  %2222 = vmatpush1.msra.mxu0 0.0
  %2223 = vmatprep.subr.mxu0 0.0
  %2224 = vmatpush1.msra.mxu0 0.0
  %2225 = vmatprep.subr.mxu0 0.0
  %2226 = vmatpush1.msra.mxu0 0.0
  %2227 = vmatprep.subr.mxu0 0.0
  %2228 = vmatpush1.msra.mxu0 0.0
  %2229 = vmatprep.subr.mxu0 0.0
  %2230 = vmatpush1.msra.mxu0 0.0
  %2231 = vmatprep.subr.mxu0 0.0
  %2232 = vmatpush1.msra.mxu0 0.0
  %2233 = vmatprep.mubr.f32.mxu0 0.0
  %2234 = vmatmul.mubr.f32.gmra.mrb[0].mxu0 %v2071
  %v2235 = vpop.f32.mrb[0].mxu0
  %v2236 = vadd.f32 0.0, %v2235
  %v2237 = vpop.f32.mrb[0].mxu0
  %2238 = vdwg.mxu0
  %v2239 = vadd.f32 %v299, %v2236
  %v2240 = vtanh.pop %v2239
  %v2241 = vmul.f32 %v2240, 0.5
  %v2242 = vadd.f32 %v2241, 0.5
  %v2243 = vmul.f32 %v2242, %v1989
  %2245 = vrot.lane.b32.xlu0 %v2240, 64
  %v2246 = vpop.permute.xlu0 %2245
  %v2248 = vmul.f32 %v2242, %v2246
  %2250 = vrot.lane.b32.xlu0 %v2248, 32
  %v2251 = vpop.permute.xlu0 %2250
  %v2253 = vadd.f32 %v2243, %v2251
  %v2254 = vtanh.pop %v2253
  %2256 = vrot.lane.b32.xlu0 %v2254, 64
  %v2257 = vpop.permute.xlu0 %2256
  %v2259 = vmul.f32 %v2242, %v2257
  %v2260 = vsel %vm315, %v2166, 0
  %2262 = vmatprep.subr.mxu0 0.0
  %2263 = vmatpush1.msra.mxu0 %v310
  %2264 = vmatprep.subr.mxu0 0.0
  %2265 = vmatpush1.msra.mxu0 %v311
  %2266 = vmatprep.subr.mxu0 0.0
  %2267 = vmatpush1.msra.mxu0 %v312
  %2268 = vmatprep.subr.mxu0 0.0
  %2269 = vmatpush1.msra.mxu0 %v313
  %2270 = vmatprep.subr.mxu0 0.0
  %2271 = vmatpush1.msra.mxu0 0.0
  %2272 = vmatprep.subr.mxu0 0.0
  %2273 = vmatpush1.msra.mxu0 0.0
  %2274 = vmatprep.subr.mxu0 0.0
  %2275 = vmatpush1.msra.mxu0 0.0
  %2276 = vmatprep.subr.mxu0 0.0
  %2277 = vmatpush1.msra.mxu0 0.0
  %2278 = vmatprep.subr.mxu0 0.0
  %2279 = vmatpush1.msra.mxu0 0.0
  %2280 = vmatprep.subr.mxu0 0.0
  %2281 = vmatpush1.msra.mxu0 0.0
  %2282 = vmatprep.subr.mxu0 0.0
  %2283 = vmatpush1.msra.mxu0 0.0
  %2284 = vmatprep.subr.mxu0 0.0
  %2285 = vmatpush1.msra.mxu0 0.0
  %2286 = vmatprep.subr.mxu0 0.0
  %2287 = vmatpush1.msra.mxu0 0.0
  %2288 = vmatprep.subr.mxu0 0.0
  %2289 = vmatpush1.msra.mxu0 0.0
  %2290 = vmatprep.subr.mxu0 0.0
  %2291 = vmatpush1.msra.mxu0 0.0
  %2292 = vmatprep.subr.mxu0 0.0
  %2293 = vmatpush1.msra.mxu0 0.0
  %2294 = vmatprep.subr.mxu0 0.0
  %2295 = vmatpush1.msra.mxu0 0.0
  %2296 = vmatprep.subr.mxu0 0.0
  %2297 = vmatpush1.msra.mxu0 0.0
  %2298 = vmatprep.subr.mxu0 0.0
  %2299 = vmatpush1.msra.mxu0 0.0
  %2300 = vmatprep.subr.mxu0 0.0
  %2301 = vmatpush1.msra.mxu0 0.0
  %2302 = vmatprep.subr.mxu0 0.0
  %2303 = vmatpush1.msra.mxu0 0.0
  %2304 = vmatprep.subr.mxu0 0.0
  %2305 = vmatpush1.msra.mxu0 0.0
  %2306 = vmatprep.subr.mxu0 0.0
  %2307 = vmatpush1.msra.mxu0 0.0
  %2308 = vmatprep.subr.mxu0 0.0
  %2309 = vmatpush1.msra.mxu0 0.0
  %2310 = vmatprep.subr.mxu0 0.0
  %2311 = vmatpush1.msra.mxu0 0.0
  %2312 = vmatprep.subr.mxu0 0.0
  %2313 = vmatpush1.msra.mxu0 0.0
  %2314 = vmatprep.subr.mxu0 0.0
  %2315 = vmatpush1.msra.mxu0 0.0
  %2316 = vmatprep.subr.mxu0 0.0
  %2317 = vmatpush1.msra.mxu0 0.0
  %2318 = vmatprep.subr.mxu0 0.0
  %2319 = vmatpush1.msra.mxu0 0.0
  %2320 = vmatprep.subr.mxu0 0.0
  %2321 = vmatpush1.msra.mxu0 0.0
  %2322 = vmatprep.subr.mxu0 0.0
  %2323 = vmatpush1.msra.mxu0 0.0
  %2324 = vmatprep.subr.mxu0 0.0
  %2325 = vmatpush1.msra.mxu0 0.0
  %2326 = vmatprep.mubr.f32.mxu0 0.0
  %2327 = vmatmul.mubr.f32.gmra.mrb[0].mxu0 %v2260
  %v2328 = vpop.f32.mrb[0].mxu0
  %v2329 = vadd.f32 0.0, %v2328
  %v2330 = vpop.f32.mrb[0].mxu0
  %2331 = vdwg.mxu0
  %2333 = vrot.lane.b32.xlu0 %v2259, 32
  %v2334 = vpop.permute.xlu0 %2333
  %v2335 = vsel %vm315, %v2334, 0
  %2337 = vmatprep.subr.mxu0 0.0
  %2338 = vmatpush1.msra.mxu0 %v306
  %2339 = vmatprep.subr.mxu0 0.0
  %2340 = vmatpush1.msra.mxu0 %v307
  %2341 = vmatprep.subr.mxu0 0.0
  %2342 = vmatpush1.msra.mxu0 %v308
  %2343 = vmatprep.subr.mxu0 0.0
  %2344 = vmatpush1.msra.mxu0 %v309
  %2345 = vmatprep.subr.mxu0 0.0
  %2346 = vmatpush1.msra.mxu0 0.0
  %2347 = vmatprep.subr.mxu0 0.0
  %2348 = vmatpush1.msra.mxu0 0.0
  %2349 = vmatprep.subr.mxu0 0.0
  %2350 = vmatpush1.msra.mxu0 0.0
  %2351 = vmatprep.subr.mxu0 0.0
  %2352 = vmatpush1.msra.mxu0 0.0
  %2353 = vmatprep.subr.mxu0 0.0
  %2354 = vmatpush1.msra.mxu0 0.0
  %2355 = vmatprep.subr.mxu0 0.0
  %2356 = vmatpush1.msra.mxu0 0.0
  %2357 = vmatprep.subr.mxu0 0.0
  %2358 = vmatpush1.msra.mxu0 0.0
  %2359 = vmatprep.subr.mxu0 0.0
  %2360 = vmatpush1.msra.mxu0 0.0
  %2361 = vmatprep.subr.mxu0 0.0
  %2362 = vmatpush1.msra.mxu0 0.0
  %2363 = vmatprep.subr.mxu0 0.0
  %2364 = vmatpush1.msra.mxu0 0.0
  %2365 = vmatprep.subr.mxu0 0.0
  %2366 = vmatpush1.msra.mxu0 0.0
  %2367 = vmatprep.subr.mxu0 0.0
  %2368 = vmatpush1.msra.mxu0 0.0
  %2369 = vmatprep.subr.mxu0 0.0
  %2370 = vmatpush1.msra.mxu0 0.0
  %2371 = vmatprep.subr.mxu0 0.0
  %2372 = vmatpush1.msra.mxu0 0.0
  %2373 = vmatprep.subr.mxu0 0.0
  %2374 = vmatpush1.msra.mxu0 0.0
  %2375 = vmatprep.subr.mxu0 0.0
  %2376 = vmatpush1.msra.mxu0 0.0
  %2377 = vmatprep.subr.mxu0 0.0
  %2378 = vmatpush1.msra.mxu0 0.0
  %2379 = vmatprep.subr.mxu0 0.0
  %2380 = vmatpush1.msra.mxu0 0.0
  %2381 = vmatprep.subr.mxu0 0.0
  %2382 = vmatpush1.msra.mxu0 0.0
  %2383 = vmatprep.subr.mxu0 0.0
  %2384 = vmatpush1.msra.mxu0 0.0
  %2385 = vmatprep.subr.mxu0 0.0
  %2386 = vmatpush1.msra.mxu0 0.0
  %2387 = vmatprep.subr.mxu0 0.0
  %2388 = vmatpush1.msra.mxu0 0.0
  %2389 = vmatprep.subr.mxu0 0.0
  %2390 = vmatpush1.msra.mxu0 0.0
  %2391 = vmatprep.subr.mxu0 0.0
  %2392 = vmatpush1.msra.mxu0 0.0
  %2393 = vmatprep.subr.mxu0 0.0
  %2394 = vmatpush1.msra.mxu0 0.0
  %2395 = vmatprep.subr.mxu0 0.0
  %2396 = vmatpush1.msra.mxu0 0.0
  %2397 = vmatprep.subr.mxu0 0.0
  %2398 = vmatpush1.msra.mxu0 0.0
  %2399 = vmatprep.subr.mxu0 0.0
  %2400 = vmatpush1.msra.mxu0 0.0
  %2401 = vmatprep.mubr.f32.mxu0 0.0
  %2402 = vmatmul.mubr.f32.gmra.mrb[0].mxu0 %v2335
  %v2403 = vpop.f32.mrb[0].mxu0
  %v2404 = vadd.f32 %v2329, %v2403
  %v2405 = vpop.f32.mrb[0].mxu0
  %2406 = vdwg.mxu0
  %v2407 = vadd.f32 %v2404, %v558
  %v2408 = vtanh.pop %v2407
  %v2409 = vmul.f32 %v2408, 0.5
  %v2410 = vadd.f32 %v2409, 0.5
  %v2411 = vmul.f32 %v2410, %v2157
  %2413 = vrot.lane.b32.xlu0 %v2408, 64
  %v2414 = vpop.permute.xlu0 %2413
  %v2416 = vmul.f32 %v2410, %v2414
  %2418 = vrot.lane.b32.xlu0 %v2416, 32
  %v2419 = vpop.permute.xlu0 %2418
  %v2421 = vadd.f32 %v2411, %v2419
  %v2422 = vtanh.pop %v2421
  %2424 = vrot.lane.b32.xlu0 %v2422, 64
  %v2425 = vpop.permute.xlu0 %2424
  %v2427 = vmul.f32 %v2410, %v2425
  %2429 = vrot.lane.b32.xlu0 %v2427, 32
  %v2430 = vpop.permute.xlu0 %2429
  %2432 = vst.msk [vmem:[#allocation2 + $0x38] sm:$0xff] %vm315, %v2430
  %v2433 = vld [vmem:[%s3] sm:$0xff]
  %v2434 = vld [vmem:[%s3 + $0x8] sm:$0xff]
  %v2435 = vld [vmem:[%s3 + $0x10] sm:$0xff]
  %v2436 = vld [vmem:[%s3 + $0x18] sm:$0xff]
  %v2437 = vld [vmem:[#allocation2] sm:$0xff]
  %v2438 = vld [vmem:[#allocation2 + $0x8] sm:$0xff]
  %v2439 = vld [vmem:[#allocation2 + $0x10] sm:$0xff]
  %v2440 = vld [vmem:[#allocation2 + $0x18] sm:$0xff]
  %v2441 = vld [vmem:[#allocation2 + $0x20] sm:$0xff]
  %v2442 = vld [vmem:[#allocation2 + $0x28] sm:$0xff]
  %v2443 = vld [vmem:[#allocation2 + $0x30] sm:$0xff]
  %v2444 = vld [vmem:[#allocation2 + $0x38] sm:$0xff]
  %vm2445 = vcmask 523264
  %v2447 = vsel %vm2445, %v2433, 0
  %v2450 = vsel %vm2445, %v2434, 0
  %v2453 = vsel %vm2445, %v2435, 0
  %v2456 = vsel %vm2445, %v2436, 0
  %2458 = vmatprep.subr.mxu0 0.0
  %2459 = vmatpush1.msra.mxu0 %v2437
  %2460 = vmatprep.subr.mxu0 0.0
  %2461 = vmatpush1.msra.mxu0 %v2438
  %2462 = vmatprep.subr.mxu0 0.0
  %2463 = vmatpush1.msra.mxu0 %v2439
  %2464 = vmatprep.subr.mxu0 0.0
  %2465 = vmatpush1.msra.mxu0 %v2440
  %2466 = vmatprep.subr.mxu0 0.0
  %2467 = vmatpush1.msra.mxu0 %v2441
  %2468 = vmatprep.subr.mxu0 0.0
  %2469 = vmatpush1.msra.mxu0 %v2442
  %2470 = vmatprep.subr.mxu0 0.0
  %2471 = vmatpush1.msra.mxu0 %v2443
  %2472 = vmatprep.subr.mxu0 0.0
  %2473 = vmatpush1.msra.mxu0 %v2444
  %2474 = vmatprep.subr.mxu0 0.0
  %2475 = vmatpush1.msra.mxu0 0.0
  %2476 = vmatprep.subr.mxu0 0.0
  %2477 = vmatpush1.msra.mxu0 0.0
  %2478 = vmatprep.subr.mxu0 0.0
  %2479 = vmatpush1.msra.mxu0 0.0
  %2480 = vmatprep.subr.mxu0 0.0
  %2481 = vmatpush1.msra.mxu0 0.0
  %2482 = vmatprep.subr.mxu0 0.0
  %2483 = vmatpush1.msra.mxu0 0.0
  %2484 = vmatprep.subr.mxu0 0.0
  %2485 = vmatpush1.msra.mxu0 0.0
  %2486 = vmatprep.subr.mxu0 0.0
  %2487 = vmatpush1.msra.mxu0 0.0
  %2488 = vmatprep.subr.mxu0 0.0
  %2489 = vmatpush1.msra.mxu0 0.0
  %2490 = vmatprep.subr.mxu0 0.0
  %2491 = vmatpush1.msra.mxu0 0.0
  %2492 = vmatprep.subr.mxu0 0.0
  %2493 = vmatpush1.msra.mxu0 0.0
  %2494 = vmatprep.subr.mxu0 0.0
  %2495 = vmatpush1.msra.mxu0 0.0
  %2496 = vmatprep.subr.mxu0 0.0
  %2497 = vmatpush1.msra.mxu0 0.0
  %2498 = vmatprep.subr.mxu0 0.0
  %2499 = vmatpush1.msra.mxu0 0.0
  %2500 = vmatprep.subr.mxu0 0.0
  %2501 = vmatpush1.msra.mxu0 0.0
  %2502 = vmatprep.subr.mxu0 0.0
  %2503 = vmatpush1.msra.mxu0 0.0
  %2504 = vmatprep.subr.mxu0 0.0
  %2505 = vmatpush1.msra.mxu0 0.0
  %2506 = vmatprep.subr.mxu0 0.0
  %2507 = vmatpush1.msra.mxu0 0.0
  %2508 = vmatprep.subr.mxu0 0.0
  %2509 = vmatpush1.msra.mxu0 0.0
  %2510 = vmatprep.subr.mxu0 0.0
  %2511 = vmatpush1.msra.mxu0 0.0
  %2512 = vmatprep.subr.mxu0 0.0
  %2513 = vmatpush1.msra.mxu0 0.0
  %2514 = vmatprep.subr.mxu0 0.0
  %2515 = vmatpush1.msra.mxu0 0.0
  %2516 = vmatprep.subr.mxu0 0.0
  %2517 = vmatpush1.msra.mxu0 0.0
  %2518 = vmatprep.subr.mxu0 0.0
  %2519 = vmatpush1.msra.mxu0 0.0
  %2520 = vmatprep.subr.mxu0 0.0
  %2521 = vmatpush1.msra.mxu0 0.0
  %2522 = vmatprep.mubr.f32.mxu0 0.0
  %2523 = vmatmul.mubr.f32.gmra.mrb[0].mxu0 %v2447
  %v2524 = vpop.f32.mrb[0].mxu0
  %v2525 = vadd.f32 0.0, %v2524
  %v2526 = vpop.f32.mrb[0].mxu0
  %2527 = vmatprep.mubr.f32.mxu0 0.0
  %2528 = vmatmul.mubr.f32.gmra.mrb[0].mxu0 %v2450
  %v2529 = vpop.f32.mrb[0].mxu0
  %v2530 = vadd.f32 0.0, %v2529
  %v2531 = vpop.f32.mrb[0].mxu0
  %2532 = vmatprep.mubr.f32.mxu0 0.0
  %2533 = vmatmul.mubr.f32.gmra.mrb[0].mxu0 %v2453
  %v2534 = vpop.f32.mrb[0].mxu0
  %v2535 = vadd.f32 0.0, %v2534
  %v2536 = vpop.f32.mrb[0].mxu0
  %2537 = vmatprep.mubr.f32.mxu0 0.0
  %2538 = vmatmul.mubr.f32.gmra.mrb[0].mxu0 %v2456
  %v2539 = vpop.f32.mrb[0].mxu0
  %v2540 = vadd.f32 0.0, %v2539
  %v2541 = vpop.f32.mrb[0].mxu0
  %2542 = vdwg.mxu0
  %v2543 = vld [vmem:[%s4] sm:$0xff]
  %v2544 = vld [vmem:[%s4 + $0x8] sm:$0xff]
  %v2545 = vld [vmem:[%s4 + $0x10] sm:$0xff]
  %v2546 = vld [vmem:[%s4 + $0x18] sm:$0xff]
  %v2547 = vld [vmem:[%s4 + $0x20] sm:$0x1]
  %v2548 = vlaneseq
  %v2549 = vshrl.u32 %v2548, 7
  %v2550 = vsub.s32 0, %v2549
  %v2551 = vrot.slane %v2547, %v2550
  %v2553 = vsel %vm315, %v2525, 0
  %v2556 = vsel %vm315, %v2530, 0
  %v2559 = vsel %vm315, %v2535, 0
  %v2562 = vsel %vm315, %v2540, 0
  %2564 = vmatprep.subr.mxu0 0.0
  %2565 = vmatpush1.msra.mxu0 %v2543
  %2566 = vmatprep.subr.mxu0 0.0
  %2567 = vmatpush1.msra.mxu0 %v2544
  %2568 = vmatprep.subr.mxu0 0.0
  %2569 = vmatpush1.msra.mxu0 %v2545
  %2570 = vmatprep.subr.mxu0 0.0
  %2571 = vmatpush1.msra.mxu0 %v2546
  %2572 = vmatprep.subr.mxu0 0.0
  %2573 = vmatpush1.msra.mxu0 0.0
  %2574 = vmatprep.subr.mxu0 0.0
  %2575 = vmatpush1.msra.mxu0 0.0
  %2576 = vmatprep.subr.mxu0 0.0
  %2577 = vmatpush1.msra.mxu0 0.0
  %2578 = vmatprep.subr.mxu0 0.0
  %2579 = vmatpush1.msra.mxu0 0.0
  %2580 = vmatprep.subr.mxu0 0.0
  %2581 = vmatpush1.msra.mxu0 0.0
  %2582 = vmatprep.subr.mxu0 0.0
  %2583 = vmatpush1.msra.mxu0 0.0
  %2584 = vmatprep.subr.mxu0 0.0
  %2585 = vmatpush1.msra.mxu0 0.0
  %2586 = vmatprep.subr.mxu0 0.0
  %2587 = vmatpush1.msra.mxu0 0.0
  %2588 = vmatprep.subr.mxu0 0.0
  %2589 = vmatpush1.msra.mxu0 0.0
  %2590 = vmatprep.subr.mxu0 0.0
  %2591 = vmatpush1.msra.mxu0 0.0
  %2592 = vmatprep.subr.mxu0 0.0
  %2593 = vmatpush1.msra.mxu0 0.0
  %2594 = vmatprep.subr.mxu0 0.0
  %2595 = vmatpush1.msra.mxu0 0.0
  %2596 = vmatprep.subr.mxu0 0.0
  %2597 = vmatpush1.msra.mxu0 0.0
  %2598 = vmatprep.subr.mxu0 0.0
  %2599 = vmatpush1.msra.mxu0 0.0
  %2600 = vmatprep.subr.mxu0 0.0
  %2601 = vmatpush1.msra.mxu0 0.0
  %2602 = vmatprep.subr.mxu0 0.0
  %2603 = vmatpush1.msra.mxu0 0.0
  %2604 = vmatprep.subr.mxu0 0.0
  %2605 = vmatpush1.msra.mxu0 0.0
  %2606 = vmatprep.subr.mxu0 0.0
  %2607 = vmatpush1.msra.mxu0 0.0
  %2608 = vmatprep.subr.mxu0 0.0
  %2609 = vmatpush1.msra.mxu0 0.0
  %2610 = vmatprep.subr.mxu0 0.0
  %2611 = vmatpush1.msra.mxu0 0.0
  %2612 = vmatprep.subr.mxu0 0.0
  %2613 = vmatpush1.msra.mxu0 0.0
  %2614 = vmatprep.subr.mxu0 0.0
  %2615 = vmatpush1.msra.mxu0 0.0
  %2616 = vmatprep.subr.mxu0 0.0
  %2617 = vmatpush1.msra.mxu0 0.0
  %2618 = vmatprep.subr.mxu0 0.0
  %2619 = vmatpush1.msra.mxu0 0.0
  %2620 = vmatprep.subr.mxu0 0.0
  %2621 = vmatpush1.msra.mxu0 0.0
  %2622 = vmatprep.subr.mxu0 0.0
  %2623 = vmatpush1.msra.mxu0 0.0
  %2624 = vmatprep.subr.mxu0 0.0
  %2625 = vmatpush1.msra.mxu0 0.0
  %2626 = vmatprep.subr.mxu0 0.0
  %2627 = vmatpush1.msra.mxu0 0.0
  %2628 = vmatprep.mubr.f32.mxu0 0.0
  %2629 = vmatmul.mubr.f32.gmra.mrb[0].mxu0 %v2553
  %v2630 = vpop.f32.mrb[0].mxu0
  %v2631 = vadd.f32 %v2551, %v2630
  %v2632 = vpop.f32.mrb[0].mxu0
  %2633 = vmatprep.mubr.f32.mxu0 0.0
  %2634 = vmatmul.mubr.f32.gmra.mrb[0].mxu0 %v2556
  %v2635 = vpop.f32.mrb[0].mxu0
  %v2636 = vadd.f32 %v2551, %v2635
  %v2637 = vpop.f32.mrb[0].mxu0
  %2638 = vmatprep.mubr.f32.mxu0 0.0
  %2639 = vmatmul.mubr.f32.gmra.mrb[0].mxu0 %v2559
  %v2640 = vpop.f32.mrb[0].mxu0
  %v2641 = vadd.f32 %v2551, %v2640
  %v2642 = vpop.f32.mrb[0].mxu0
  %2643 = vmatprep.mubr.f32.mxu0 0.0
  %2644 = vmatmul.mubr.f32.gmra.mrb[0].mxu0 %v2562
  %v2645 = vpop.f32.mrb[0].mxu0
  %v2646 = vadd.f32 %v2551, %v2645
  %v2647 = vpop.f32.mrb[0].mxu0
  %2648 = vdwg.mxu0
  %vm2649 = vcmask 15360
  %2650 = vst.msk [vmem:[%s5] sm:$0xff] %vm2649, %v2631
  %2651 = vst.msk [vmem:[%s5 + $0x8] sm:$0xff] %vm2649, %v2636
  %2652 = vst.msk [vmem:[%s5 + $0x10] sm:$0xff] %vm2649, %v2641
  %2653 = vst.msk [vmem:[%s5 + $0x18] sm:$0xff] %vm2649, %v2646
  // Predicated region
  $region22: #{rnconv_forward.1} parent=0 // pred_check
    _
  $region23: #{rnconv_forward.1} parent=0 // pred_check_branch
    %2655 = sbr.rel (0) target = $region25
  $region24: #{rnconv_forward.1} parent=0 // pred_region
    _
  $region25: #{rnconv_forward.1} parent=0 // pred_fallthru
    _
  // Predicated region
  $region26: #{rnconv_forward.1} parent=0 // pred_check
    _
  $region27: #{rnconv_forward.1} parent=0 // pred_check_branch
    %2657 = sbr.rel (0) target = $region29
  $region28: #{rnconv_forward.1} parent=0 // pred_region
    _
  $region29: #{rnconv_forward.1} parent=0 // pred_fallthru
    _

</llo_original>
